<compile_context>
chip_gen: v7x
topology: tpu7x:2x2x1
jax: 0.10.0
libtpu: 0.0.40
codegen_flags: <defaults>
</compile_context>

<pallas_src>
import functools

import jax
import jax.numpy as jnp
import numpy as np
from jax.experimental import pallas as pl
from jax.experimental.pallas import tpu as pltpu


def _cmi_sa_kernel(rgb_ref, t_ref, w1_ref, w2_ref, wr1_ref, wr2_ref,
                   wt1_ref, wt2_ref, rgb_out_ref, t_out_ref, *, im_w):
    C, H, NW = rgb_ref.shape
    N = NW // im_w

    # ---- border masks (validity of each 3x3 tap at every output coordinate) ------
    row = jax.lax.broadcasted_iota(jnp.int32, (H, NW), 0)
    col = jax.lax.broadcasted_iota(jnp.int32, (H, NW), 1)
    not_top = row != 0           # reading y-1 is in-bounds
    not_bot = row != H - 1       # reading y+1 is in-bounds
    not_left = col != 0          # reading x-1 stays inside the same image
    not_right = col != NW - 1    # reading x+1 stays inside the same image
    for n in range(1, N):        # seams between batch images packed along lanes
        not_left = jnp.logical_and(not_left, col != n * im_w)
        not_right = jnp.logical_and(not_right, col != n * im_w - 1)

    def shift2d(x, dy, dx):
        """s[y, x] = x[y+dy, x+dx] inside the image, 0 outside (zero padding)."""
        s = x
        if dy != 0:
            s = pltpu.roll(s, (-dy) % H, 0)     # sublane roll (XLU slot)
        if dx != 0:
            s = pltpu.roll(s, (-dx) % NW, 1)    # lane roll (XLU slot)
        mask = None
        if dy == 1:
            mask = not_bot
        elif dy == -1:
            mask = not_top
        if dx == 1:
            mask = not_right if mask is None else jnp.logical_and(mask, not_right)
        elif dx == -1:
            mask = not_left if mask is None else jnp.logical_and(mask, not_left)
        if mask is not None:
            s = jnp.where(mask, s, 0.0)
        return s

    # ---- load per-channel (H, N*W) planes once ------------------------------------
    rgb_c = [rgb_ref[c].astype(jnp.float32) for c in range(C)]
    t_c = [t_ref[c].astype(jnp.float32) for c in range(C)]

    # channel-wise max (computed while the planes are live)
    rgb_max = rgb_c[0]
    t_max = t_c[0]
    for c in range(1, C):
        rgb_max = jnp.maximum(rgb_max, rgb_c[c])
        t_max = jnp.maximum(t_max, t_c[c])

    # ---- transitionLayer stage 1: 1x1 conv (2C -> C, no bias) + ReLU --------------
    # torch.cat([rgb, t], dim=1): rgb half = input channels [0, C), t half = [C, 2C).
    y = []
    for d in range(C):
        acc = w1_ref[d * 2 * C] * rgb_c[0]
        for c in range(1, C):
            acc = acc + w1_ref[d * 2 * C + c] * rgb_c[c]
        for c in range(C):
            acc = acc + w1_ref[d * 2 * C + C + c] * t_c[c]
        y.append(jnp.maximum(acc, 0.0))                     # ReLU, stays in vregs

    # ---- transitionLayer stage 2: 3x3 conv (C -> C, pad=1, no bias) ---------------
    # Input channel c is the OUTER loop: each shifted view is built once (9*C rolls)
    # and accumulated into all C output-channel accumulators.
    tl = [jnp.zeros((H, NW), jnp.float32) for _ in range(C)]
    for c in range(C):
        for ky in range(3):
            for kx in range(3):
                s = shift2d(y[c], ky - 1, kx - 1)
                for d in range(C):
                    tl[d] = tl[d] + w2_ref[((d * C + c) * 3 + ky) * 3 + kx] * s

    # ---- single-channel 3x3 conv (pad=1, no bias), fully in registers -------------
    def conv3x3_1ch(x2d, wref):
        acc = wref[4] * x2d                                  # center tap, no shift
        for ky in range(3):
            for kx in range(3):
                if ky == 1 and kx == 1:
                    continue
                acc = acc + wref[ky * 3 + kx] * shift2d(x2d, ky - 1, kx - 1)
        return acc

    sa_rgb = jax.nn.sigmoid(conv3x3_1ch(conv3x3_1ch(rgb_max, wr1_ref), wr2_ref))
    sa_t = jax.nn.sigmoid(conv3x3_1ch(conv3x3_1ch(t_max, wt1_ref), wt2_ref))

    # ---- enhance + writeback (re-read residual planes from VMEM to cut vreg use) --
    for d in range(C):
        rgb_out_ref[d] = (tl[d] * sa_rgb + rgb_ref[d]).astype(rgb_out_ref.dtype)
        t_out_ref[d] = (tl[d] * sa_t + t_ref[d]).astype(t_out_ref.dtype)


def cmi_sa_pallas(rgb, t, params):
    """rgb, t: (N, C, H, W) float32. params: dict of PyTorch-layout conv weights."""
    N, C, H, W = rgb.shape
    NW = N * W

    # Lane-dense packing: (N, C, H, W) -> (C, H, N*W): batch images side-by-side
    # along the lane axis.  Pure layout plumbing in the wrapper.
    def pack(x):
        return jnp.transpose(x, (1, 2, 0, 3)).reshape(C, H, NW)

    def unpack(x):
        return jnp.transpose(x.reshape(C, H, N, W), (2, 0, 1, 3))

    rgb_p = pack(rgb.astype(jnp.float32))
    t_p = pack(t.astype(jnp.float32))

    # Flatten PyTorch OIHW weights to 1-D f32 for SMEM scalar access.
    w1 = params["w1"].astype(jnp.float32).reshape(-1)    # (C, 2C, 1, 1) -> (2C*C,)
    w2 = params["w2"].astype(jnp.float32).reshape(-1)    # (C, C, 3, 3)  -> (C*C*9,)
    wr1 = params["wr1"].astype(jnp.float32).reshape(-1)  # (1, 1, 3, 3)  -> (9,)
    wr2 = params["wr2"].astype(jnp.float32).reshape(-1)
    wt1 = params["wt1"].astype(jnp.float32).reshape(-1)
    wt2 = params["wt2"].astype(jnp.float32).reshape(-1)

    img_spec = pl.BlockSpec((C, H, NW), lambda i: (0, 0, 0))
    smem_spec = pl.BlockSpec(memory_space=pltpu.MemorySpace.SMEM)

    out_shape = (jax.ShapeDtypeStruct((C, H, NW), jnp.float32),
                 jax.ShapeDtypeStruct((C, H, NW), jnp.float32))

    rgb_pk, t_pk = pl.pallas_call(
        functools.partial(_cmi_sa_kernel, im_w=W),
        out_shape=out_shape,
        grid=(1,),                       # whole (tiny) batch in one step
        in_specs=[img_spec, img_spec,
                  smem_spec, smem_spec, smem_spec, smem_spec, smem_spec, smem_spec],
        out_specs=(img_spec, img_spec),
        compiler_params=pltpu.CompilerParams(dimension_semantics=("arbitrary",)),
    )(rgb_p, t_p, w1, w2, wr1, wr2, wt1, wt2)

    return unpack(rgb_pk).astype(rgb.dtype), unpack(t_pk).astype(t.dtype)


# --------------------------- plain-JAX reference -------------------------------------
def _conv(x, w, pad):
    return jax.lax.conv_general_dilated(
        x, w, window_strides=(1, 1), padding=[(pad, pad), (pad, pad)],
        dimension_numbers=("NCHW", "OIHW", "NCHW"),
        precision=jax.lax.Precision.HIGHEST)


def cmi_sa_reference(rgb, t, params):
    rgbt = jnp.concatenate([rgb, t], axis=1)
    y = jax.nn.relu(_conv(rgbt, params["w1"], 0))
    rgbt_tl = _conv(y, params["w2"], 1)
    rgb_max = jnp.max(rgb, axis=1, keepdims=True)
    sa_rgb = jax.nn.sigmoid(_conv(_conv(rgb_max, params["wr1"], 1), params["wr2"], 1))
    t_max = jnp.max(t, axis=1, keepdims=True)
    sa_t = jax.nn.sigmoid(_conv(_conv(t_max, params["wt1"], 1), params["wt2"], 1))
    return rgbt_tl * sa_rgb + rgb, rgbt_tl * sa_t + t


if __name__ == "__main__":
    key = jax.random.PRNGKey(0)
    N, C, H, W = 2, 4, 16, 16
    k = jax.random.split(key, 8)
    rgb = jax.random.normal(k[0], (N, C, H, W), jnp.float32)
    t = jax.random.normal(k[1], (N, C, H, W), jnp.float32)
    params = {
        "w1": 0.1 * jax.random.normal(k[2], (C, 2 * C, 1, 1), jnp.float32),
        "w2": 0.1 * jax.random.normal(k[3], (C, C, 3, 3), jnp.float32),
        "wr1": 0.1 * jax.random.normal(k[4], (1, 1, 3, 3), jnp.float32),
        "wr2": 0.1 * jax.random.normal(k[5], (1, 1, 3, 3), jnp.float32),
        "wt1": 0.1 * jax.random.normal(k[6], (1, 1, 3, 3), jnp.float32),
        "wt2": 0.1 * jax.random.normal(k[7], (1, 1, 3, 3), jnp.float32),
    }

    fused = jax.jit(cmi_sa_pallas)
    rgb_enh, t_enh = jax.block_until_ready(fused(rgb, t, params))
    rgb_gold, t_gold = cmi_sa_reference(rgb, t, params)

    assert np.allclose(np.asarray(rgb_enh), np.asarray(rgb_gold), atol=1e-3, rtol=1e-3)
    assert np.allclose(np.asarray(t_enh), np.asarray(t_gold), atol=1e-3, rtol=1e-3)
    print("KERNEL_OK")
</pallas_src>

<mosaic_0001>
module attributes {stable_mosaic.version = 11 : i64} {
  func.func @_cmi_sa_kernel(%arg0: i32, %arg1: memref<4x16x32xf32, #tpu.memory_space<vmem>>, %arg2: memref<4x16x32xf32, #tpu.memory_space<vmem>>, %arg3: memref<32xf32, #tpu.memory_space<smem>>, %arg4: memref<144xf32, #tpu.memory_space<smem>>, %arg5: memref<9xf32, #tpu.memory_space<smem>>, %arg6: memref<9xf32, #tpu.memory_space<smem>>, %arg7: memref<9xf32, #tpu.memory_space<smem>>, %arg8: memref<9xf32, #tpu.memory_space<smem>>, %arg9: memref<4x16x32xf32, #tpu.memory_space<vmem>>, %arg10: memref<4x16x32xf32, #tpu.memory_space<vmem>>) attributes {dimension_semantics = [#tpu.dimension_semantics<arbitrary>], iteration_bounds = array<i64: 1>, scalar_prefetch = 0 : i64, scratch_operands = 0 : i64, tpu.core_type = #tpu.core_type<tc>, window_params = [{pipeline_mode = #tpu.pipeline_mode<synchronous>, transform_indices = @transform_0, window_bounds = array<i64: 4, 16, 32>}, {pipeline_mode = #tpu.pipeline_mode<synchronous>, transform_indices = @transform_1, window_bounds = array<i64: 4, 16, 32>}, {transform_indices = @transform_2, window_bounds = array<i64: 32>}, {transform_indices = @transform_3, window_bounds = array<i64: 144>}, {transform_indices = @transform_4, window_bounds = array<i64: 9>}, {transform_indices = @transform_5, window_bounds = array<i64: 9>}, {transform_indices = @transform_6, window_bounds = array<i64: 9>}, {transform_indices = @transform_7, window_bounds = array<i64: 9>}, {pipeline_mode = #tpu.pipeline_mode<synchronous>, transform_indices = @transform_8, window_bounds = array<i64: 4, 16, 32>}, {pipeline_mode = #tpu.pipeline_mode<synchronous>, transform_indices = @transform_9, window_bounds = array<i64: 4, 16, 32>}]} {
    %0 = tpu.iota {dimensions = array<i32: 0>} : vector<16x32xi32>
    %1 = tpu.iota {dimensions = array<i32: 1>} : vector<16x32xi32>
    %c0_i32 = arith.constant 0 : i32
    %2 = vector.broadcast %c0_i32 : i32 to vector<16x32xi32>
    %3 = arith.cmpi ne, %0, %2 : vector<16x32xi32>
    %c15_i32 = arith.constant 15 : i32
    %4 = vector.broadcast %c15_i32 : i32 to vector<16x32xi32>
    %5 = arith.cmpi ne, %0, %4 : vector<16x32xi32>
    %c0_i32_0 = arith.constant 0 : i32
    %6 = vector.broadcast %c0_i32_0 : i32 to vector<16x32xi32>
    %7 = arith.cmpi ne, %1, %6 : vector<16x32xi32>
    %c31_i32 = arith.constant 31 : i32
    %8 = vector.broadcast %c31_i32 : i32 to vector<16x32xi32>
    %9 = arith.cmpi ne, %1, %8 : vector<16x32xi32>
    %c16_i32 = arith.constant 16 : i32
    %10 = vector.broadcast %c16_i32 : i32 to vector<16x32xi32>
    %11 = arith.cmpi ne, %1, %10 : vector<16x32xi32>
    %12 = arith.andi %7, %11 : vector<16x32xi1>
    %c15_i32_1 = arith.constant 15 : i32
    %13 = vector.broadcast %c15_i32_1 : i32 to vector<16x32xi32>
    %14 = arith.cmpi ne, %1, %13 : vector<16x32xi32>
    %15 = arith.andi %9, %14 : vector<16x32xi1>
    %c0 = arith.constant 0 : index
    %c0_2 = arith.constant 0 : index
    %c0_3 = arith.constant 0 : index
    %16 = vector.load %arg1[%c0, %c0_2, %c0_3] : memref<4x16x32xf32, #tpu.memory_space<vmem>>, vector<1x16x32xf32>
    %17 = vector.shape_cast %16 : vector<1x16x32xf32> to vector<16x32xf32>
    %c1 = arith.constant 1 : index
    %c0_4 = arith.constant 0 : index
    %c0_5 = arith.constant 0 : index
    %18 = vector.load %arg1[%c1, %c0_4, %c0_5] : memref<4x16x32xf32, #tpu.memory_space<vmem>>, vector<1x16x32xf32>
    %19 = vector.shape_cast %18 : vector<1x16x32xf32> to vector<16x32xf32>
    %c2 = arith.constant 2 : index
    %c0_6 = arith.constant 0 : index
    %c0_7 = arith.constant 0 : index
    %20 = vector.load %arg1[%c2, %c0_6, %c0_7] : memref<4x16x32xf32, #tpu.memory_space<vmem>>, vector<1x16x32xf32>
    %21 = vector.shape_cast %20 : vector<1x16x32xf32> to vector<16x32xf32>
    %c3 = arith.constant 3 : index
    %c0_8 = arith.constant 0 : index
    %c0_9 = arith.constant 0 : index
    %22 = vector.load %arg1[%c3, %c0_8, %c0_9] : memref<4x16x32xf32, #tpu.memory_space<vmem>>, vector<1x16x32xf32>
    %23 = vector.shape_cast %22 : vector<1x16x32xf32> to vector<16x32xf32>
    %c0_10 = arith.constant 0 : index
    %c0_11 = arith.constant 0 : index
    %c0_12 = arith.constant 0 : index
    %24 = vector.load %arg2[%c0_10, %c0_11, %c0_12] : memref<4x16x32xf32, #tpu.memory_space<vmem>>, vector<1x16x32xf32>
    %25 = vector.shape_cast %24 : vector<1x16x32xf32> to vector<16x32xf32>
    %c1_13 = arith.constant 1 : index
    %c0_14 = arith.constant 0 : index
    %c0_15 = arith.constant 0 : index
    %26 = vector.load %arg2[%c1_13, %c0_14, %c0_15] : memref<4x16x32xf32, #tpu.memory_space<vmem>>, vector<1x16x32xf32>
    %27 = vector.shape_cast %26 : vector<1x16x32xf32> to vector<16x32xf32>
    %c2_16 = arith.constant 2 : index
    %c0_17 = arith.constant 0 : index
    %c0_18 = arith.constant 0 : index
    %28 = vector.load %arg2[%c2_16, %c0_17, %c0_18] : memref<4x16x32xf32, #tpu.memory_space<vmem>>, vector<1x16x32xf32>
    %29 = vector.shape_cast %28 : vector<1x16x32xf32> to vector<16x32xf32>
    %c3_19 = arith.constant 3 : index
    %c0_20 = arith.constant 0 : index
    %c0_21 = arith.constant 0 : index
    %30 = vector.load %arg2[%c3_19, %c0_20, %c0_21] : memref<4x16x32xf32, #tpu.memory_space<vmem>>, vector<1x16x32xf32>
    %31 = vector.shape_cast %30 : vector<1x16x32xf32> to vector<16x32xf32>
    %32 = arith.maximumf %17, %19 : vector<16x32xf32>
    %33 = arith.maximumf %25, %27 : vector<16x32xf32>
    %34 = arith.maximumf %32, %21 : vector<16x32xf32>
    %35 = arith.maximumf %33, %29 : vector<16x32xf32>
    %36 = arith.maximumf %34, %23 : vector<16x32xf32>
    %37 = arith.maximumf %35, %31 : vector<16x32xf32>
    %c0_22 = arith.constant 0 : index
    %38 = memref.load %arg3[%c0_22] : memref<32xf32, #tpu.memory_space<smem>>
    %39 = vector.broadcast %38 : f32 to vector<16x32xf32>
    %40 = arith.mulf %39, %17 : vector<16x32xf32>
    %c1_23 = arith.constant 1 : index
    %41 = memref.load %arg3[%c1_23] : memref<32xf32, #tpu.memory_space<smem>>
    %42 = vector.broadcast %41 : f32 to vector<16x32xf32>
    %43 = arith.mulf %42, %19 : vector<16x32xf32>
    %44 = arith.addf %40, %43 : vector<16x32xf32>
    %c2_24 = arith.constant 2 : index
    %45 = memref.load %arg3[%c2_24] : memref<32xf32, #tpu.memory_space<smem>>
    %46 = vector.broadcast %45 : f32 to vector<16x32xf32>
    %47 = arith.mulf %46, %21 : vector<16x32xf32>
    %48 = arith.addf %44, %47 : vector<16x32xf32>
    %c3_25 = arith.constant 3 : index
    %49 = memref.load %arg3[%c3_25] : memref<32xf32, #tpu.memory_space<smem>>
    %50 = vector.broadcast %49 : f32 to vector<16x32xf32>
    %51 = arith.mulf %50, %23 : vector<16x32xf32>
    %52 = arith.addf %48, %51 : vector<16x32xf32>
    %c4 = arith.constant 4 : index
    %53 = memref.load %arg3[%c4] : memref<32xf32, #tpu.memory_space<smem>>
    %54 = vector.broadcast %53 : f32 to vector<16x32xf32>
    %55 = arith.mulf %54, %25 : vector<16x32xf32>
    %56 = arith.addf %52, %55 : vector<16x32xf32>
    %c5 = arith.constant 5 : index
    %57 = memref.load %arg3[%c5] : memref<32xf32, #tpu.memory_space<smem>>
    %58 = vector.broadcast %57 : f32 to vector<16x32xf32>
    %59 = arith.mulf %58, %27 : vector<16x32xf32>
    %60 = arith.addf %56, %59 : vector<16x32xf32>
    %c6 = arith.constant 6 : index
    %61 = memref.load %arg3[%c6] : memref<32xf32, #tpu.memory_space<smem>>
    %62 = vector.broadcast %61 : f32 to vector<16x32xf32>
    %63 = arith.mulf %62, %29 : vector<16x32xf32>
    %64 = arith.addf %60, %63 : vector<16x32xf32>
    %c7 = arith.constant 7 : index
    %65 = memref.load %arg3[%c7] : memref<32xf32, #tpu.memory_space<smem>>
    %66 = vector.broadcast %65 : f32 to vector<16x32xf32>
    %67 = arith.mulf %66, %31 : vector<16x32xf32>
    %68 = arith.addf %64, %67 : vector<16x32xf32>
    %cst = arith.constant 0.000000e+00 : f32
    %69 = vector.broadcast %cst : f32 to vector<16x32xf32>
    %70 = arith.maximumf %68, %69 : vector<16x32xf32>
    %c8 = arith.constant 8 : index
    %71 = memref.load %arg3[%c8] : memref<32xf32, #tpu.memory_space<smem>>
    %72 = vector.broadcast %71 : f32 to vector<16x32xf32>
    %73 = arith.mulf %72, %17 : vector<16x32xf32>
    %c9 = arith.constant 9 : index
    %74 = memref.load %arg3[%c9] : memref<32xf32, #tpu.memory_space<smem>>
    %75 = vector.broadcast %74 : f32 to vector<16x32xf32>
    %76 = arith.mulf %75, %19 : vector<16x32xf32>
    %77 = arith.addf %73, %76 : vector<16x32xf32>
    %c10 = arith.constant 10 : index
    %78 = memref.load %arg3[%c10] : memref<32xf32, #tpu.memory_space<smem>>
    %79 = vector.broadcast %78 : f32 to vector<16x32xf32>
    %80 = arith.mulf %79, %21 : vector<16x32xf32>
    %81 = arith.addf %77, %80 : vector<16x32xf32>
    %c11 = arith.constant 11 : index
    %82 = memref.load %arg3[%c11] : memref<32xf32, #tpu.memory_space<smem>>
    %83 = vector.broadcast %82 : f32 to vector<16x32xf32>
    %84 = arith.mulf %83, %23 : vector<16x32xf32>
    %85 = arith.addf %81, %84 : vector<16x32xf32>
    %c12 = arith.constant 12 : index
    %86 = memref.load %arg3[%c12] : memref<32xf32, #tpu.memory_space<smem>>
    %87 = vector.broadcast %86 : f32 to vector<16x32xf32>
    %88 = arith.mulf %87, %25 : vector<16x32xf32>
    %89 = arith.addf %85, %88 : vector<16x32xf32>
    %c13 = arith.constant 13 : index
    %90 = memref.load %arg3[%c13] : memref<32xf32, #tpu.memory_space<smem>>
    %91 = vector.broadcast %90 : f32 to vector<16x32xf32>
    %92 = arith.mulf %91, %27 : vector<16x32xf32>
    %93 = arith.addf %89, %92 : vector<16x32xf32>
    %c14 = arith.constant 14 : index
    %94 = memref.load %arg3[%c14] : memref<32xf32, #tpu.memory_space<smem>>
    %95 = vector.broadcast %94 : f32 to vector<16x32xf32>
    %96 = arith.mulf %95, %29 : vector<16x32xf32>
    %97 = arith.addf %93, %96 : vector<16x32xf32>
    %c15 = arith.constant 15 : index
    %98 = memref.load %arg3[%c15] : memref<32xf32, #tpu.memory_space<smem>>
    %99 = vector.broadcast %98 : f32 to vector<16x32xf32>
    %100 = arith.mulf %99, %31 : vector<16x32xf32>
    %101 = arith.addf %97, %100 : vector<16x32xf32>
    %cst_26 = arith.constant 0.000000e+00 : f32
    %102 = vector.broadcast %cst_26 : f32 to vector<16x32xf32>
    %103 = arith.maximumf %101, %102 : vector<16x32xf32>
    %c16 = arith.constant 16 : index
    %104 = memref.load %arg3[%c16] : memref<32xf32, #tpu.memory_space<smem>>
    %105 = vector.broadcast %104 : f32 to vector<16x32xf32>
    %106 = arith.mulf %105, %17 : vector<16x32xf32>
    %c17 = arith.constant 17 : index
    %107 = memref.load %arg3[%c17] : memref<32xf32, #tpu.memory_space<smem>>
    %108 = vector.broadcast %107 : f32 to vector<16x32xf32>
    %109 = arith.mulf %108, %19 : vector<16x32xf32>
    %110 = arith.addf %106, %109 : vector<16x32xf32>
    %c18 = arith.constant 18 : index
    %111 = memref.load %arg3[%c18] : memref<32xf32, #tpu.memory_space<smem>>
    %112 = vector.broadcast %111 : f32 to vector<16x32xf32>
    %113 = arith.mulf %112, %21 : vector<16x32xf32>
    %114 = arith.addf %110, %113 : vector<16x32xf32>
    %c19 = arith.constant 19 : index
    %115 = memref.load %arg3[%c19] : memref<32xf32, #tpu.memory_space<smem>>
    %116 = vector.broadcast %115 : f32 to vector<16x32xf32>
    %117 = arith.mulf %116, %23 : vector<16x32xf32>
    %118 = arith.addf %114, %117 : vector<16x32xf32>
    %c20 = arith.constant 20 : index
    %119 = memref.load %arg3[%c20] : memref<32xf32, #tpu.memory_space<smem>>
    %120 = vector.broadcast %119 : f32 to vector<16x32xf32>
    %121 = arith.mulf %120, %25 : vector<16x32xf32>
    %122 = arith.addf %118, %121 : vector<16x32xf32>
    %c21 = arith.constant 21 : index
    %123 = memref.load %arg3[%c21] : memref<32xf32, #tpu.memory_space<smem>>
    %124 = vector.broadcast %123 : f32 to vector<16x32xf32>
    %125 = arith.mulf %124, %27 : vector<16x32xf32>
    %126 = arith.addf %122, %125 : vector<16x32xf32>
    %c22 = arith.constant 22 : index
    %127 = memref.load %arg3[%c22] : memref<32xf32, #tpu.memory_space<smem>>
    %128 = vector.broadcast %127 : f32 to vector<16x32xf32>
    %129 = arith.mulf %128, %29 : vector<16x32xf32>
    %130 = arith.addf %126, %129 : vector<16x32xf32>
    %c23 = arith.constant 23 : index
    %131 = memref.load %arg3[%c23] : memref<32xf32, #tpu.memory_space<smem>>
    %132 = vector.broadcast %131 : f32 to vector<16x32xf32>
    %133 = arith.mulf %132, %31 : vector<16x32xf32>
    %134 = arith.addf %130, %133 : vector<16x32xf32>
    %cst_27 = arith.constant 0.000000e+00 : f32
    %135 = vector.broadcast %cst_27 : f32 to vector<16x32xf32>
    %136 = arith.maximumf %134, %135 : vector<16x32xf32>
    %c24 = arith.constant 24 : index
    %137 = memref.load %arg3[%c24] : memref<32xf32, #tpu.memory_space<smem>>
    %138 = vector.broadcast %137 : f32 to vector<16x32xf32>
    %139 = arith.mulf %138, %17 : vector<16x32xf32>
    %c25 = arith.constant 25 : index
    %140 = memref.load %arg3[%c25] : memref<32xf32, #tpu.memory_space<smem>>
    %141 = vector.broadcast %140 : f32 to vector<16x32xf32>
    %142 = arith.mulf %141, %19 : vector<16x32xf32>
    %143 = arith.addf %139, %142 : vector<16x32xf32>
    %c26 = arith.constant 26 : index
    %144 = memref.load %arg3[%c26] : memref<32xf32, #tpu.memory_space<smem>>
    %145 = vector.broadcast %144 : f32 to vector<16x32xf32>
    %146 = arith.mulf %145, %21 : vector<16x32xf32>
    %147 = arith.addf %143, %146 : vector<16x32xf32>
    %c27 = arith.constant 27 : index
    %148 = memref.load %arg3[%c27] : memref<32xf32, #tpu.memory_space<smem>>
    %149 = vector.broadcast %148 : f32 to vector<16x32xf32>
    %150 = arith.mulf %149, %23 : vector<16x32xf32>
    %151 = arith.addf %147, %150 : vector<16x32xf32>
    %c28 = arith.constant 28 : index
    %152 = memref.load %arg3[%c28] : memref<32xf32, #tpu.memory_space<smem>>
    %153 = vector.broadcast %152 : f32 to vector<16x32xf32>
    %154 = arith.mulf %153, %25 : vector<16x32xf32>
    %155 = arith.addf %151, %154 : vector<16x32xf32>
    %c29 = arith.constant 29 : index
    %156 = memref.load %arg3[%c29] : memref<32xf32, #tpu.memory_space<smem>>
    %157 = vector.broadcast %156 : f32 to vector<16x32xf32>
    %158 = arith.mulf %157, %27 : vector<16x32xf32>
    %159 = arith.addf %155, %158 : vector<16x32xf32>
    %c30 = arith.constant 30 : index
    %160 = memref.load %arg3[%c30] : memref<32xf32, #tpu.memory_space<smem>>
    %161 = vector.broadcast %160 : f32 to vector<16x32xf32>
    %162 = arith.mulf %161, %29 : vector<16x32xf32>
    %163 = arith.addf %159, %162 : vector<16x32xf32>
    %c31 = arith.constant 31 : index
    %164 = memref.load %arg3[%c31] : memref<32xf32, #tpu.memory_space<smem>>
    %165 = vector.broadcast %164 : f32 to vector<16x32xf32>
    %166 = arith.mulf %165, %31 : vector<16x32xf32>
    %167 = arith.addf %163, %166 : vector<16x32xf32>
    %cst_28 = arith.constant 0.000000e+00 : f32
    %168 = vector.broadcast %cst_28 : f32 to vector<16x32xf32>
    %169 = arith.maximumf %167, %168 : vector<16x32xf32>
    %cst_29 = arith.constant 0.000000e+00 : f32
    %170 = vector.broadcast %cst_29 : f32 to vector<16x32xf32>
    %cst_30 = arith.constant 0.000000e+00 : f32
    %171 = vector.broadcast %cst_30 : f32 to vector<16x32xf32>
    %cst_31 = arith.constant 0.000000e+00 : f32
    %172 = vector.broadcast %cst_31 : f32 to vector<16x32xf32>
    %cst_32 = arith.constant 0.000000e+00 : f32
    %173 = vector.broadcast %cst_32 : f32 to vector<16x32xf32>
    %c1_i32 = arith.constant 1 : i32
    %174 = tpu.dynamic_rotate %70 by %c1_i32 dim 0 : vector<16x32xf32>, i32 -> vector<16x32xf32>
    %c1_i32_33 = arith.constant 1 : i32
    %175 = tpu.dynamic_rotate %174 by %c1_i32_33 dim 1 : vector<16x32xf32>, i32 -> vector<16x32xf32>
    %176 = arith.andi %3, %12 : vector<16x32xi1>
    %cst_34 = arith.constant 0.000000e+00 : f32
    %177 = vector.broadcast %cst_34 : f32 to vector<16x32xf32>
    %178 = arith.select %176, %175, %177 : vector<16x32xi1>, vector<16x32xf32>
    %c0_35 = arith.constant 0 : index
    %179 = memref.load %arg4[%c0_35] : memref<144xf32, #tpu.memory_space<smem>>
    %180 = vector.broadcast %179 : f32 to vector<16x32xf32>
    %181 = arith.mulf %180, %178 : vector<16x32xf32>
    %182 = arith.addf %170, %181 : vector<16x32xf32>
    %c36 = arith.constant 36 : index
    %183 = memref.load %arg4[%c36] : memref<144xf32, #tpu.memory_space<smem>>
    %184 = vector.broadcast %183 : f32 to vector<16x32xf32>
    %185 = arith.mulf %184, %178 : vector<16x32xf32>
    %186 = arith.addf %171, %185 : vector<16x32xf32>
    %c72 = arith.constant 72 : index
    %187 = memref.load %arg4[%c72] : memref<144xf32, #tpu.memory_space<smem>>
    %188 = vector.broadcast %187 : f32 to vector<16x32xf32>
    %189 = arith.mulf %188, %178 : vector<16x32xf32>
    %190 = arith.addf %172, %189 : vector<16x32xf32>
    %c108 = arith.constant 108 : index
    %191 = memref.load %arg4[%c108] : memref<144xf32, #tpu.memory_space<smem>>
    %192 = vector.broadcast %191 : f32 to vector<16x32xf32>
    %193 = arith.mulf %192, %178 : vector<16x32xf32>
    %194 = arith.addf %173, %193 : vector<16x32xf32>
    %c1_i32_36 = arith.constant 1 : i32
    %195 = tpu.dynamic_rotate %70 by %c1_i32_36 dim 0 : vector<16x32xf32>, i32 -> vector<16x32xf32>
    %cst_37 = arith.constant 0.000000e+00 : f32
    %196 = vector.broadcast %cst_37 : f32 to vector<16x32xf32>
    %197 = arith.select %3, %195, %196 : vector<16x32xi1>, vector<16x32xf32>
    %c1_38 = arith.constant 1 : index
    %198 = memref.load %arg4[%c1_38] : memref<144xf32, #tpu.memory_space<smem>>
    %199 = vector.broadcast %198 : f32 to vector<16x32xf32>
    %200 = arith.mulf %199, %197 : vector<16x32xf32>
    %201 = arith.addf %182, %200 : vector<16x32xf32>
    %c37 = arith.constant 37 : index
    %202 = memref.load %arg4[%c37] : memref<144xf32, #tpu.memory_space<smem>>
    %203 = vector.broadcast %202 : f32 to vector<16x32xf32>
    %204 = arith.mulf %203, %197 : vector<16x32xf32>
    %205 = arith.addf %186, %204 : vector<16x32xf32>
    %c73 = arith.constant 73 : index
    %206 = memref.load %arg4[%c73] : memref<144xf32, #tpu.memory_space<smem>>
    %207 = vector.broadcast %206 : f32 to vector<16x32xf32>
    %208 = arith.mulf %207, %197 : vector<16x32xf32>
    %209 = arith.addf %190, %208 : vector<16x32xf32>
    %c109 = arith.constant 109 : index
    %210 = memref.load %arg4[%c109] : memref<144xf32, #tpu.memory_space<smem>>
    %211 = vector.broadcast %210 : f32 to vector<16x32xf32>
    %212 = arith.mulf %211, %197 : vector<16x32xf32>
    %213 = arith.addf %194, %212 : vector<16x32xf32>
    %c1_i32_39 = arith.constant 1 : i32
    %214 = tpu.dynamic_rotate %70 by %c1_i32_39 dim 0 : vector<16x32xf32>, i32 -> vector<16x32xf32>
    %c31_i32_40 = arith.constant 31 : i32
    %215 = tpu.dynamic_rotate %214 by %c31_i32_40 dim 1 : vector<16x32xf32>, i32 -> vector<16x32xf32>
    %216 = arith.andi %3, %15 : vector<16x32xi1>
    %cst_41 = arith.constant 0.000000e+00 : f32
    %217 = vector.broadcast %cst_41 : f32 to vector<16x32xf32>
    %218 = arith.select %216, %215, %217 : vector<16x32xi1>, vector<16x32xf32>
    %c2_42 = arith.constant 2 : index
    %219 = memref.load %arg4[%c2_42] : memref<144xf32, #tpu.memory_space<smem>>
    %220 = vector.broadcast %219 : f32 to vector<16x32xf32>
    %221 = arith.mulf %220, %218 : vector<16x32xf32>
    %222 = arith.addf %201, %221 : vector<16x32xf32>
    %c38 = arith.constant 38 : index
    %223 = memref.load %arg4[%c38] : memref<144xf32, #tpu.memory_space<smem>>
    %224 = vector.broadcast %223 : f32 to vector<16x32xf32>
    %225 = arith.mulf %224, %218 : vector<16x32xf32>
    %226 = arith.addf %205, %225 : vector<16x32xf32>
    %c74 = arith.constant 74 : index
    %227 = memref.load %arg4[%c74] : memref<144xf32, #tpu.memory_space<smem>>
    %228 = vector.broadcast %227 : f32 to vector<16x32xf32>
    %229 = arith.mulf %228, %218 : vector<16x32xf32>
    %230 = arith.addf %209, %229 : vector<16x32xf32>
    %c110 = arith.constant 110 : index
    %231 = memref.load %arg4[%c110] : memref<144xf32, #tpu.memory_space<smem>>
    %232 = vector.broadcast %231 : f32 to vector<16x32xf32>
    %233 = arith.mulf %232, %218 : vector<16x32xf32>
    %234 = arith.addf %213, %233 : vector<16x32xf32>
    %c1_i32_43 = arith.constant 1 : i32
    %235 = tpu.dynamic_rotate %70 by %c1_i32_43 dim 1 : vector<16x32xf32>, i32 -> vector<16x32xf32>
    %cst_44 = arith.constant 0.000000e+00 : f32
    %236 = vector.broadcast %cst_44 : f32 to vector<16x32xf32>
    %237 = arith.select %12, %235, %236 : vector<16x32xi1>, vector<16x32xf32>
    %c3_45 = arith.constant 3 : index
    %238 = memref.load %arg4[%c3_45] : memref<144xf32, #tpu.memory_space<smem>>
    %239 = vector.broadcast %238 : f32 to vector<16x32xf32>
    %240 = arith.mulf %239, %237 : vector<16x32xf32>
    %241 = arith.addf %222, %240 : vector<16x32xf32>
    %c39 = arith.constant 39 : index
    %242 = memref.load %arg4[%c39] : memref<144xf32, #tpu.memory_space<smem>>
    %243 = vector.broadcast %242 : f32 to vector<16x32xf32>
    %244 = arith.mulf %243, %237 : vector<16x32xf32>
    %245 = arith.addf %226, %244 : vector<16x32xf32>
    %c75 = arith.constant 75 : index
    %246 = memref.load %arg4[%c75] : memref<144xf32, #tpu.memory_space<smem>>
    %247 = vector.broadcast %246 : f32 to vector<16x32xf32>
    %248 = arith.mulf %247, %237 : vector<16x32xf32>
    %249 = arith.addf %230, %248 : vector<16x32xf32>
    %c111 = arith.constant 111 : index
    %250 = memref.load %arg4[%c111] : memref<144xf32, #tpu.memory_space<smem>>
    %251 = vector.broadcast %250 : f32 to vector<16x32xf32>
    %252 = arith.mulf %251, %237 : vector<16x32xf32>
    %253 = arith.addf %234, %252 : vector<16x32xf32>
    %c4_46 = arith.constant 4 : index
    %254 = memref.load %arg4[%c4_46] : memref<144xf32, #tpu.memory_space<smem>>
    %255 = vector.broadcast %254 : f32 to vector<16x32xf32>
    %256 = arith.mulf %255, %70 : vector<16x32xf32>
    %257 = arith.addf %241, %256 : vector<16x32xf32>
    %c40 = arith.constant 40 : index
    %258 = memref.load %arg4[%c40] : memref<144xf32, #tpu.memory_space<smem>>
    %259 = vector.broadcast %258 : f32 to vector<16x32xf32>
    %260 = arith.mulf %259, %70 : vector<16x32xf32>
    %261 = arith.addf %245, %260 : vector<16x32xf32>
    %c76 = arith.constant 76 : index
    %262 = memref.load %arg4[%c76] : memref<144xf32, #tpu.memory_space<smem>>
    %263 = vector.broadcast %262 : f32 to vector<16x32xf32>
    %264 = arith.mulf %263, %70 : vector<16x32xf32>
    %265 = arith.addf %249, %264 : vector<16x32xf32>
    %c112 = arith.constant 112 : index
    %266 = memref.load %arg4[%c112] : memref<144xf32, #tpu.memory_space<smem>>
    %267 = vector.broadcast %266 : f32 to vector<16x32xf32>
    %268 = arith.mulf %267, %70 : vector<16x32xf32>
    %269 = arith.addf %253, %268 : vector<16x32xf32>
    %c31_i32_47 = arith.constant 31 : i32
    %270 = tpu.dynamic_rotate %70 by %c31_i32_47 dim 1 : vector<16x32xf32>, i32 -> vector<16x32xf32>
    %cst_48 = arith.constant 0.000000e+00 : f32
    %271 = vector.broadcast %cst_48 : f32 to vector<16x32xf32>
    %272 = arith.select %15, %270, %271 : vector<16x32xi1>, vector<16x32xf32>
    %c5_49 = arith.constant 5 : index
    %273 = memref.load %arg4[%c5_49] : memref<144xf32, #tpu.memory_space<smem>>
    %274 = vector.broadcast %273 : f32 to vector<16x32xf32>
    %275 = arith.mulf %274, %272 : vector<16x32xf32>
    %276 = arith.addf %257, %275 : vector<16x32xf32>
    %c41 = arith.constant 41 : index
    %277 = memref.load %arg4[%c41] : memref<144xf32, #tpu.memory_space<smem>>
    %278 = vector.broadcast %277 : f32 to vector<16x32xf32>
    %279 = arith.mulf %278, %272 : vector<16x32xf32>
    %280 = arith.addf %261, %279 : vector<16x32xf32>
    %c77 = arith.constant 77 : index
    %281 = memref.load %arg4[%c77] : memref<144xf32, #tpu.memory_space<smem>>
    %282 = vector.broadcast %281 : f32 to vector<16x32xf32>
    %283 = arith.mulf %282, %272 : vector<16x32xf32>
    %284 = arith.addf %265, %283 : vector<16x32xf32>
    %c113 = arith.constant 113 : index
    %285 = memref.load %arg4[%c113] : memref<144xf32, #tpu.memory_space<smem>>
    %286 = vector.broadcast %285 : f32 to vector<16x32xf32>
    %287 = arith.mulf %286, %272 : vector<16x32xf32>
    %288 = arith.addf %269, %287 : vector<16x32xf32>
    %c15_i32_50 = arith.constant 15 : i32
    %289 = tpu.dynamic_rotate %70 by %c15_i32_50 dim 0 : vector<16x32xf32>, i32 -> vector<16x32xf32>
    %c1_i32_51 = arith.constant 1 : i32
    %290 = tpu.dynamic_rotate %289 by %c1_i32_51 dim 1 : vector<16x32xf32>, i32 -> vector<16x32xf32>
    %291 = arith.andi %5, %12 : vector<16x32xi1>
    %cst_52 = arith.constant 0.000000e+00 : f32
    %292 = vector.broadcast %cst_52 : f32 to vector<16x32xf32>
    %293 = arith.select %291, %290, %292 : vector<16x32xi1>, vector<16x32xf32>
    %c6_53 = arith.constant 6 : index
    %294 = memref.load %arg4[%c6_53] : memref<144xf32, #tpu.memory_space<smem>>
    %295 = vector.broadcast %294 : f32 to vector<16x32xf32>
    %296 = arith.mulf %295, %293 : vector<16x32xf32>
    %297 = arith.addf %276, %296 : vector<16x32xf32>
    %c42 = arith.constant 42 : index
    %298 = memref.load %arg4[%c42] : memref<144xf32, #tpu.memory_space<smem>>
    %299 = vector.broadcast %298 : f32 to vector<16x32xf32>
    %300 = arith.mulf %299, %293 : vector<16x32xf32>
    %301 = arith.addf %280, %300 : vector<16x32xf32>
    %c78 = arith.constant 78 : index
    %302 = memref.load %arg4[%c78] : memref<144xf32, #tpu.memory_space<smem>>
    %303 = vector.broadcast %302 : f32 to vector<16x32xf32>
    %304 = arith.mulf %303, %293 : vector<16x32xf32>
    %305 = arith.addf %284, %304 : vector<16x32xf32>
    %c114 = arith.constant 114 : index
    %306 = memref.load %arg4[%c114] : memref<144xf32, #tpu.memory_space<smem>>
    %307 = vector.broadcast %306 : f32 to vector<16x32xf32>
    %308 = arith.mulf %307, %293 : vector<16x32xf32>
    %309 = arith.addf %288, %308 : vector<16x32xf32>
    %c15_i32_54 = arith.constant 15 : i32
    %310 = tpu.dynamic_rotate %70 by %c15_i32_54 dim 0 : vector<16x32xf32>, i32 -> vector<16x32xf32>
    %cst_55 = arith.constant 0.000000e+00 : f32
    %311 = vector.broadcast %cst_55 : f32 to vector<16x32xf32>
    %312 = arith.select %5, %310, %311 : vector<16x32xi1>, vector<16x32xf32>
    %c7_56 = arith.constant 7 : index
    %313 = memref.load %arg4[%c7_56] : memref<144xf32, #tpu.memory_space<smem>>
    %314 = vector.broadcast %313 : f32 to vector<16x32xf32>
    %315 = arith.mulf %314, %312 : vector<16x32xf32>
    %316 = arith.addf %297, %315 : vector<16x32xf32>
    %c43 = arith.constant 43 : index
    %317 = memref.load %arg4[%c43] : memref<144xf32, #tpu.memory_space<smem>>
    %318 = vector.broadcast %317 : f32 to vector<16x32xf32>
    %319 = arith.mulf %318, %312 : vector<16x32xf32>
    %320 = arith.addf %301, %319 : vector<16x32xf32>
    %c79 = arith.constant 79 : index
    %321 = memref.load %arg4[%c79] : memref<144xf32, #tpu.memory_space<smem>>
    %322 = vector.broadcast %321 : f32 to vector<16x32xf32>
    %323 = arith.mulf %322, %312 : vector<16x32xf32>
    %324 = arith.addf %305, %323 : vector<16x32xf32>
    %c115 = arith.constant 115 : index
    %325 = memref.load %arg4[%c115] : memref<144xf32, #tpu.memory_space<smem>>
    %326 = vector.broadcast %325 : f32 to vector<16x32xf32>
    %327 = arith.mulf %326, %312 : vector<16x32xf32>
    %328 = arith.addf %309, %327 : vector<16x32xf32>
    %c15_i32_57 = arith.constant 15 : i32
    %329 = tpu.dynamic_rotate %70 by %c15_i32_57 dim 0 : vector<16x32xf32>, i32 -> vector<16x32xf32>
    %c31_i32_58 = arith.constant 31 : i32
    %330 = tpu.dynamic_rotate %329 by %c31_i32_58 dim 1 : vector<16x32xf32>, i32 -> vector<16x32xf32>
    %331 = arith.andi %5, %15 : vector<16x32xi1>
    %cst_59 = arith.constant 0.000000e+00 : f32
    %332 = vector.broadcast %cst_59 : f32 to vector<16x32xf32>
    %333 = arith.select %331, %330, %332 : vector<16x32xi1>, vector<16x32xf32>
    %c8_60 = arith.constant 8 : index
    %334 = memref.load %arg4[%c8_60] : memref<144xf32, #tpu.memory_space<smem>>
    %335 = vector.broadcast %334 : f32 to vector<16x32xf32>
    %336 = arith.mulf %335, %333 : vector<16x32xf32>
    %337 = arith.addf %316, %336 : vector<16x32xf32>
    %c44 = arith.constant 44 : index
    %338 = memref.load %arg4[%c44] : memref<144xf32, #tpu.memory_space<smem>>
    %339 = vector.broadcast %338 : f32 to vector<16x32xf32>
    %340 = arith.mulf %339, %333 : vector<16x32xf32>
    %341 = arith.addf %320, %340 : vector<16x32xf32>
    %c80 = arith.constant 80 : index
    %342 = memref.load %arg4[%c80] : memref<144xf32, #tpu.memory_space<smem>>
    %343 = vector.broadcast %342 : f32 to vector<16x32xf32>
    %344 = arith.mulf %343, %333 : vector<16x32xf32>
    %345 = arith.addf %324, %344 : vector<16x32xf32>
    %c116 = arith.constant 116 : index
    %346 = memref.load %arg4[%c116] : memref<144xf32, #tpu.memory_space<smem>>
    %347 = vector.broadcast %346 : f32 to vector<16x32xf32>
    %348 = arith.mulf %347, %333 : vector<16x32xf32>
    %349 = arith.addf %328, %348 : vector<16x32xf32>
    %c1_i32_61 = arith.constant 1 : i32
    %350 = tpu.dynamic_rotate %103 by %c1_i32_61 dim 0 : vector<16x32xf32>, i32 -> vector<16x32xf32>
    %c1_i32_62 = arith.constant 1 : i32
    %351 = tpu.dynamic_rotate %350 by %c1_i32_62 dim 1 : vector<16x32xf32>, i32 -> vector<16x32xf32>
    %352 = arith.andi %3, %12 : vector<16x32xi1>
    %cst_63 = arith.constant 0.000000e+00 : f32
    %353 = vector.broadcast %cst_63 : f32 to vector<16x32xf32>
    %354 = arith.select %352, %351, %353 : vector<16x32xi1>, vector<16x32xf32>
    %c9_64 = arith.constant 9 : index
    %355 = memref.load %arg4[%c9_64] : memref<144xf32, #tpu.memory_space<smem>>
    %356 = vector.broadcast %355 : f32 to vector<16x32xf32>
    %357 = arith.mulf %356, %354 : vector<16x32xf32>
    %358 = arith.addf %337, %357 : vector<16x32xf32>
    %c45 = arith.constant 45 : index
    %359 = memref.load %arg4[%c45] : memref<144xf32, #tpu.memory_space<smem>>
    %360 = vector.broadcast %359 : f32 to vector<16x32xf32>
    %361 = arith.mulf %360, %354 : vector<16x32xf32>
    %362 = arith.addf %341, %361 : vector<16x32xf32>
    %c81 = arith.constant 81 : index
    %363 = memref.load %arg4[%c81] : memref<144xf32, #tpu.memory_space<smem>>
    %364 = vector.broadcast %363 : f32 to vector<16x32xf32>
    %365 = arith.mulf %364, %354 : vector<16x32xf32>
    %366 = arith.addf %345, %365 : vector<16x32xf32>
    %c117 = arith.constant 117 : index
    %367 = memref.load %arg4[%c117] : memref<144xf32, #tpu.memory_space<smem>>
    %368 = vector.broadcast %367 : f32 to vector<16x32xf32>
    %369 = arith.mulf %368, %354 : vector<16x32xf32>
    %370 = arith.addf %349, %369 : vector<16x32xf32>
    %c1_i32_65 = arith.constant 1 : i32
    %371 = tpu.dynamic_rotate %103 by %c1_i32_65 dim 0 : vector<16x32xf32>, i32 -> vector<16x32xf32>
    %cst_66 = arith.constant 0.000000e+00 : f32
    %372 = vector.broadcast %cst_66 : f32 to vector<16x32xf32>
    %373 = arith.select %3, %371, %372 : vector<16x32xi1>, vector<16x32xf32>
    %c10_67 = arith.constant 10 : index
    %374 = memref.load %arg4[%c10_67] : memref<144xf32, #tpu.memory_space<smem>>
    %375 = vector.broadcast %374 : f32 to vector<16x32xf32>
    %376 = arith.mulf %375, %373 : vector<16x32xf32>
    %377 = arith.addf %358, %376 : vector<16x32xf32>
    %c46 = arith.constant 46 : index
    %378 = memref.load %arg4[%c46] : memref<144xf32, #tpu.memory_space<smem>>
    %379 = vector.broadcast %378 : f32 to vector<16x32xf32>
    %380 = arith.mulf %379, %373 : vector<16x32xf32>
    %381 = arith.addf %362, %380 : vector<16x32xf32>
    %c82 = arith.constant 82 : index
    %382 = memref.load %arg4[%c82] : memref<144xf32, #tpu.memory_space<smem>>
    %383 = vector.broadcast %382 : f32 to vector<16x32xf32>
    %384 = arith.mulf %383, %373 : vector<16x32xf32>
    %385 = arith.addf %366, %384 : vector<16x32xf32>
    %c118 = arith.constant 118 : index
    %386 = memref.load %arg4[%c118] : memref<144xf32, #tpu.memory_space<smem>>
    %387 = vector.broadcast %386 : f32 to vector<16x32xf32>
    %388 = arith.mulf %387, %373 : vector<16x32xf32>
    %389 = arith.addf %370, %388 : vector<16x32xf32>
    %c1_i32_68 = arith.constant 1 : i32
    %390 = tpu.dynamic_rotate %103 by %c1_i32_68 dim 0 : vector<16x32xf32>, i32 -> vector<16x32xf32>
    %c31_i32_69 = arith.constant 31 : i32
    %391 = tpu.dynamic_rotate %390 by %c31_i32_69 dim 1 : vector<16x32xf32>, i32 -> vector<16x32xf32>
    %392 = arith.andi %3, %15 : vector<16x32xi1>
    %cst_70 = arith.constant 0.000000e+00 : f32
    %393 = vector.broadcast %cst_70 : f32 to vector<16x32xf32>
    %394 = arith.select %392, %391, %393 : vector<16x32xi1>, vector<16x32xf32>
    %c11_71 = arith.constant 11 : index
    %395 = memref.load %arg4[%c11_71] : memref<144xf32, #tpu.memory_space<smem>>
    %396 = vector.broadcast %395 : f32 to vector<16x32xf32>
    %397 = arith.mulf %396, %394 : vector<16x32xf32>
    %398 = arith.addf %377, %397 : vector<16x32xf32>
    %c47 = arith.constant 47 : index
    %399 = memref.load %arg4[%c47] : memref<144xf32, #tpu.memory_space<smem>>
    %400 = vector.broadcast %399 : f32 to vector<16x32xf32>
    %401 = arith.mulf %400, %394 : vector<16x32xf32>
    %402 = arith.addf %381, %401 : vector<16x32xf32>
    %c83 = arith.constant 83 : index
    %403 = memref.load %arg4[%c83] : memref<144xf32, #tpu.memory_space<smem>>
    %404 = vector.broadcast %403 : f32 to vector<16x32xf32>
    %405 = arith.mulf %404, %394 : vector<16x32xf32>
    %406 = arith.addf %385, %405 : vector<16x32xf32>
    %c119 = arith.constant 119 : index
    %407 = memref.load %arg4[%c119] : memref<144xf32, #tpu.memory_space<smem>>
    %408 = vector.broadcast %407 : f32 to vector<16x32xf32>
    %409 = arith.mulf %408, %394 : vector<16x32xf32>
    %410 = arith.addf %389, %409 : vector<16x32xf32>
    %c1_i32_72 = arith.constant 1 : i32
    %411 = tpu.dynamic_rotate %103 by %c1_i32_72 dim 1 : vector<16x32xf32>, i32 -> vector<16x32xf32>
    %cst_73 = arith.constant 0.000000e+00 : f32
    %412 = vector.broadcast %cst_73 : f32 to vector<16x32xf32>
    %413 = arith.select %12, %411, %412 : vector<16x32xi1>, vector<16x32xf32>
    %c12_74 = arith.constant 12 : index
    %414 = memref.load %arg4[%c12_74] : memref<144xf32, #tpu.memory_space<smem>>
    %415 = vector.broadcast %414 : f32 to vector<16x32xf32>
    %416 = arith.mulf %415, %413 : vector<16x32xf32>
    %417 = arith.addf %398, %416 : vector<16x32xf32>
    %c48 = arith.constant 48 : index
    %418 = memref.load %arg4[%c48] : memref<144xf32, #tpu.memory_space<smem>>
    %419 = vector.broadcast %418 : f32 to vector<16x32xf32>
    %420 = arith.mulf %419, %413 : vector<16x32xf32>
    %421 = arith.addf %402, %420 : vector<16x32xf32>
    %c84 = arith.constant 84 : index
    %422 = memref.load %arg4[%c84] : memref<144xf32, #tpu.memory_space<smem>>
    %423 = vector.broadcast %422 : f32 to vector<16x32xf32>
    %424 = arith.mulf %423, %413 : vector<16x32xf32>
    %425 = arith.addf %406, %424 : vector<16x32xf32>
    %c120 = arith.constant 120 : index
    %426 = memref.load %arg4[%c120] : memref<144xf32, #tpu.memory_space<smem>>
    %427 = vector.broadcast %426 : f32 to vector<16x32xf32>
    %428 = arith.mulf %427, %413 : vector<16x32xf32>
    %429 = arith.addf %410, %428 : vector<16x32xf32>
    %c13_75 = arith.constant 13 : index
    %430 = memref.load %arg4[%c13_75] : memref<144xf32, #tpu.memory_space<smem>>
    %431 = vector.broadcast %430 : f32 to vector<16x32xf32>
    %432 = arith.mulf %431, %103 : vector<16x32xf32>
    %433 = arith.addf %417, %432 : vector<16x32xf32>
    %c49 = arith.constant 49 : index
    %434 = memref.load %arg4[%c49] : memref<144xf32, #tpu.memory_space<smem>>
    %435 = vector.broadcast %434 : f32 to vector<16x32xf32>
    %436 = arith.mulf %435, %103 : vector<16x32xf32>
    %437 = arith.addf %421, %436 : vector<16x32xf32>
    %c85 = arith.constant 85 : index
    %438 = memref.load %arg4[%c85] : memref<144xf32, #tpu.memory_space<smem>>
    %439 = vector.broadcast %438 : f32 to vector<16x32xf32>
    %440 = arith.mulf %439, %103 : vector<16x32xf32>
    %441 = arith.addf %425, %440 : vector<16x32xf32>
    %c121 = arith.constant 121 : index
    %442 = memref.load %arg4[%c121] : memref<144xf32, #tpu.memory_space<smem>>
    %443 = vector.broadcast %442 : f32 to vector<16x32xf32>
    %444 = arith.mulf %443, %103 : vector<16x32xf32>
    %445 = arith.addf %429, %444 : vector<16x32xf32>
    %c31_i32_76 = arith.constant 31 : i32
    %446 = tpu.dynamic_rotate %103 by %c31_i32_76 dim 1 : vector<16x32xf32>, i32 -> vector<16x32xf32>
    %cst_77 = arith.constant 0.000000e+00 : f32
    %447 = vector.broadcast %cst_77 : f32 to vector<16x32xf32>
    %448 = arith.select %15, %446, %447 : vector<16x32xi1>, vector<16x32xf32>
    %c14_78 = arith.constant 14 : index
    %449 = memref.load %arg4[%c14_78] : memref<144xf32, #tpu.memory_space<smem>>
    %450 = vector.broadcast %449 : f32 to vector<16x32xf32>
    %451 = arith.mulf %450, %448 : vector<16x32xf32>
    %452 = arith.addf %433, %451 : vector<16x32xf32>
    %c50 = arith.constant 50 : index
    %453 = memref.load %arg4[%c50] : memref<144xf32, #tpu.memory_space<smem>>
    %454 = vector.broadcast %453 : f32 to vector<16x32xf32>
    %455 = arith.mulf %454, %448 : vector<16x32xf32>
    %456 = arith.addf %437, %455 : vector<16x32xf32>
    %c86 = arith.constant 86 : index
    %457 = memref.load %arg4[%c86] : memref<144xf32, #tpu.memory_space<smem>>
    %458 = vector.broadcast %457 : f32 to vector<16x32xf32>
    %459 = arith.mulf %458, %448 : vector<16x32xf32>
    %460 = arith.addf %441, %459 : vector<16x32xf32>
    %c122 = arith.constant 122 : index
    %461 = memref.load %arg4[%c122] : memref<144xf32, #tpu.memory_space<smem>>
    %462 = vector.broadcast %461 : f32 to vector<16x32xf32>
    %463 = arith.mulf %462, %448 : vector<16x32xf32>
    %464 = arith.addf %445, %463 : vector<16x32xf32>
    %c15_i32_79 = arith.constant 15 : i32
    %465 = tpu.dynamic_rotate %103 by %c15_i32_79 dim 0 : vector<16x32xf32>, i32 -> vector<16x32xf32>
    %c1_i32_80 = arith.constant 1 : i32
    %466 = tpu.dynamic_rotate %465 by %c1_i32_80 dim 1 : vector<16x32xf32>, i32 -> vector<16x32xf32>
    %467 = arith.andi %5, %12 : vector<16x32xi1>
    %cst_81 = arith.constant 0.000000e+00 : f32
    %468 = vector.broadcast %cst_81 : f32 to vector<16x32xf32>
    %469 = arith.select %467, %466, %468 : vector<16x32xi1>, vector<16x32xf32>
    %c15_82 = arith.constant 15 : index
    %470 = memref.load %arg4[%c15_82] : memref<144xf32, #tpu.memory_space<smem>>
    %471 = vector.broadcast %470 : f32 to vector<16x32xf32>
    %472 = arith.mulf %471, %469 : vector<16x32xf32>
    %473 = arith.addf %452, %472 : vector<16x32xf32>
    %c51 = arith.constant 51 : index
    %474 = memref.load %arg4[%c51] : memref<144xf32, #tpu.memory_space<smem>>
    %475 = vector.broadcast %474 : f32 to vector<16x32xf32>
    %476 = arith.mulf %475, %469 : vector<16x32xf32>
    %477 = arith.addf %456, %476 : vector<16x32xf32>
    %c87 = arith.constant 87 : index
    %478 = memref.load %arg4[%c87] : memref<144xf32, #tpu.memory_space<smem>>
    %479 = vector.broadcast %478 : f32 to vector<16x32xf32>
    %480 = arith.mulf %479, %469 : vector<16x32xf32>
    %481 = arith.addf %460, %480 : vector<16x32xf32>
    %c123 = arith.constant 123 : index
    %482 = memref.load %arg4[%c123] : memref<144xf32, #tpu.memory_space<smem>>
    %483 = vector.broadcast %482 : f32 to vector<16x32xf32>
    %484 = arith.mulf %483, %469 : vector<16x32xf32>
    %485 = arith.addf %464, %484 : vector<16x32xf32>
    %c15_i32_83 = arith.constant 15 : i32
    %486 = tpu.dynamic_rotate %103 by %c15_i32_83 dim 0 : vector<16x32xf32>, i32 -> vector<16x32xf32>
    %cst_84 = arith.constant 0.000000e+00 : f32
    %487 = vector.broadcast %cst_84 : f32 to vector<16x32xf32>
    %488 = arith.select %5, %486, %487 : vector<16x32xi1>, vector<16x32xf32>
    %c16_85 = arith.constant 16 : index
    %489 = memref.load %arg4[%c16_85] : memref<144xf32, #tpu.memory_space<smem>>
    %490 = vector.broadcast %489 : f32 to vector<16x32xf32>
    %491 = arith.mulf %490, %488 : vector<16x32xf32>
    %492 = arith.addf %473, %491 : vector<16x32xf32>
    %c52 = arith.constant 52 : index
    %493 = memref.load %arg4[%c52] : memref<144xf32, #tpu.memory_space<smem>>
    %494 = vector.broadcast %493 : f32 to vector<16x32xf32>
    %495 = arith.mulf %494, %488 : vector<16x32xf32>
    %496 = arith.addf %477, %495 : vector<16x32xf32>
    %c88 = arith.constant 88 : index
    %497 = memref.load %arg4[%c88] : memref<144xf32, #tpu.memory_space<smem>>
    %498 = vector.broadcast %497 : f32 to vector<16x32xf32>
    %499 = arith.mulf %498, %488 : vector<16x32xf32>
    %500 = arith.addf %481, %499 : vector<16x32xf32>
    %c124 = arith.constant 124 : index
    %501 = memref.load %arg4[%c124] : memref<144xf32, #tpu.memory_space<smem>>
    %502 = vector.broadcast %501 : f32 to vector<16x32xf32>
    %503 = arith.mulf %502, %488 : vector<16x32xf32>
    %504 = arith.addf %485, %503 : vector<16x32xf32>
    %c15_i32_86 = arith.constant 15 : i32
    %505 = tpu.dynamic_rotate %103 by %c15_i32_86 dim 0 : vector<16x32xf32>, i32 -> vector<16x32xf32>
    %c31_i32_87 = arith.constant 31 : i32
    %506 = tpu.dynamic_rotate %505 by %c31_i32_87 dim 1 : vector<16x32xf32>, i32 -> vector<16x32xf32>
    %507 = arith.andi %5, %15 : vector<16x32xi1>
    %cst_88 = arith.constant 0.000000e+00 : f32
    %508 = vector.broadcast %cst_88 : f32 to vector<16x32xf32>
    %509 = arith.select %507, %506, %508 : vector<16x32xi1>, vector<16x32xf32>
    %c17_89 = arith.constant 17 : index
    %510 = memref.load %arg4[%c17_89] : memref<144xf32, #tpu.memory_space<smem>>
    %511 = vector.broadcast %510 : f32 to vector<16x32xf32>
    %512 = arith.mulf %511, %509 : vector<16x32xf32>
    %513 = arith.addf %492, %512 : vector<16x32xf32>
    %c53 = arith.constant 53 : index
    %514 = memref.load %arg4[%c53] : memref<144xf32, #tpu.memory_space<smem>>
    %515 = vector.broadcast %514 : f32 to vector<16x32xf32>
    %516 = arith.mulf %515, %509 : vector<16x32xf32>
    %517 = arith.addf %496, %516 : vector<16x32xf32>
    %c89 = arith.constant 89 : index
    %518 = memref.load %arg4[%c89] : memref<144xf32, #tpu.memory_space<smem>>
    %519 = vector.broadcast %518 : f32 to vector<16x32xf32>
    %520 = arith.mulf %519, %509 : vector<16x32xf32>
    %521 = arith.addf %500, %520 : vector<16x32xf32>
    %c125 = arith.constant 125 : index
    %522 = memref.load %arg4[%c125] : memref<144xf32, #tpu.memory_space<smem>>
    %523 = vector.broadcast %522 : f32 to vector<16x32xf32>
    %524 = arith.mulf %523, %509 : vector<16x32xf32>
    %525 = arith.addf %504, %524 : vector<16x32xf32>
    %c1_i32_90 = arith.constant 1 : i32
    %526 = tpu.dynamic_rotate %136 by %c1_i32_90 dim 0 : vector<16x32xf32>, i32 -> vector<16x32xf32>
    %c1_i32_91 = arith.constant 1 : i32
    %527 = tpu.dynamic_rotate %526 by %c1_i32_91 dim 1 : vector<16x32xf32>, i32 -> vector<16x32xf32>
    %528 = arith.andi %3, %12 : vector<16x32xi1>
    %cst_92 = arith.constant 0.000000e+00 : f32
    %529 = vector.broadcast %cst_92 : f32 to vector<16x32xf32>
    %530 = arith.select %528, %527, %529 : vector<16x32xi1>, vector<16x32xf32>
    %c18_93 = arith.constant 18 : index
    %531 = memref.load %arg4[%c18_93] : memref<144xf32, #tpu.memory_space<smem>>
    %532 = vector.broadcast %531 : f32 to vector<16x32xf32>
    %533 = arith.mulf %532, %530 : vector<16x32xf32>
    %534 = arith.addf %513, %533 : vector<16x32xf32>
    %c54 = arith.constant 54 : index
    %535 = memref.load %arg4[%c54] : memref<144xf32, #tpu.memory_space<smem>>
    %536 = vector.broadcast %535 : f32 to vector<16x32xf32>
    %537 = arith.mulf %536, %530 : vector<16x32xf32>
    %538 = arith.addf %517, %537 : vector<16x32xf32>
    %c90 = arith.constant 90 : index
    %539 = memref.load %arg4[%c90] : memref<144xf32, #tpu.memory_space<smem>>
    %540 = vector.broadcast %539 : f32 to vector<16x32xf32>
    %541 = arith.mulf %540, %530 : vector<16x32xf32>
    %542 = arith.addf %521, %541 : vector<16x32xf32>
    %c126 = arith.constant 126 : index
    %543 = memref.load %arg4[%c126] : memref<144xf32, #tpu.memory_space<smem>>
    %544 = vector.broadcast %543 : f32 to vector<16x32xf32>
    %545 = arith.mulf %544, %530 : vector<16x32xf32>
    %546 = arith.addf %525, %545 : vector<16x32xf32>
    %c1_i32_94 = arith.constant 1 : i32
    %547 = tpu.dynamic_rotate %136 by %c1_i32_94 dim 0 : vector<16x32xf32>, i32 -> vector<16x32xf32>
    %cst_95 = arith.constant 0.000000e+00 : f32
    %548 = vector.broadcast %cst_95 : f32 to vector<16x32xf32>
    %549 = arith.select %3, %547, %548 : vector<16x32xi1>, vector<16x32xf32>
    %c19_96 = arith.constant 19 : index
    %550 = memref.load %arg4[%c19_96] : memref<144xf32, #tpu.memory_space<smem>>
    %551 = vector.broadcast %550 : f32 to vector<16x32xf32>
    %552 = arith.mulf %551, %549 : vector<16x32xf32>
    %553 = arith.addf %534, %552 : vector<16x32xf32>
    %c55 = arith.constant 55 : index
    %554 = memref.load %arg4[%c55] : memref<144xf32, #tpu.memory_space<smem>>
    %555 = vector.broadcast %554 : f32 to vector<16x32xf32>
    %556 = arith.mulf %555, %549 : vector<16x32xf32>
    %557 = arith.addf %538, %556 : vector<16x32xf32>
    %c91 = arith.constant 91 : index
    %558 = memref.load %arg4[%c91] : memref<144xf32, #tpu.memory_space<smem>>
    %559 = vector.broadcast %558 : f32 to vector<16x32xf32>
    %560 = arith.mulf %559, %549 : vector<16x32xf32>
    %561 = arith.addf %542, %560 : vector<16x32xf32>
    %c127 = arith.constant 127 : index
    %562 = memref.load %arg4[%c127] : memref<144xf32, #tpu.memory_space<smem>>
    %563 = vector.broadcast %562 : f32 to vector<16x32xf32>
    %564 = arith.mulf %563, %549 : vector<16x32xf32>
    %565 = arith.addf %546, %564 : vector<16x32xf32>
    %c1_i32_97 = arith.constant 1 : i32
    %566 = tpu.dynamic_rotate %136 by %c1_i32_97 dim 0 : vector<16x32xf32>, i32 -> vector<16x32xf32>
    %c31_i32_98 = arith.constant 31 : i32
    %567 = tpu.dynamic_rotate %566 by %c31_i32_98 dim 1 : vector<16x32xf32>, i32 -> vector<16x32xf32>
    %568 = arith.andi %3, %15 : vector<16x32xi1>
    %cst_99 = arith.constant 0.000000e+00 : f32
    %569 = vector.broadcast %cst_99 : f32 to vector<16x32xf32>
    %570 = arith.select %568, %567, %569 : vector<16x32xi1>, vector<16x32xf32>
    %c20_100 = arith.constant 20 : index
    %571 = memref.load %arg4[%c20_100] : memref<144xf32, #tpu.memory_space<smem>>
    %572 = vector.broadcast %571 : f32 to vector<16x32xf32>
    %573 = arith.mulf %572, %570 : vector<16x32xf32>
    %574 = arith.addf %553, %573 : vector<16x32xf32>
    %c56 = arith.constant 56 : index
    %575 = memref.load %arg4[%c56] : memref<144xf32, #tpu.memory_space<smem>>
    %576 = vector.broadcast %575 : f32 to vector<16x32xf32>
    %577 = arith.mulf %576, %570 : vector<16x32xf32>
    %578 = arith.addf %557, %577 : vector<16x32xf32>
    %c92 = arith.constant 92 : index
    %579 = memref.load %arg4[%c92] : memref<144xf32, #tpu.memory_space<smem>>
    %580 = vector.broadcast %579 : f32 to vector<16x32xf32>
    %581 = arith.mulf %580, %570 : vector<16x32xf32>
    %582 = arith.addf %561, %581 : vector<16x32xf32>
    %c128 = arith.constant 128 : index
    %583 = memref.load %arg4[%c128] : memref<144xf32, #tpu.memory_space<smem>>
    %584 = vector.broadcast %583 : f32 to vector<16x32xf32>
    %585 = arith.mulf %584, %570 : vector<16x32xf32>
    %586 = arith.addf %565, %585 : vector<16x32xf32>
    %c1_i32_101 = arith.constant 1 : i32
    %587 = tpu.dynamic_rotate %136 by %c1_i32_101 dim 1 : vector<16x32xf32>, i32 -> vector<16x32xf32>
    %cst_102 = arith.constant 0.000000e+00 : f32
    %588 = vector.broadcast %cst_102 : f32 to vector<16x32xf32>
    %589 = arith.select %12, %587, %588 : vector<16x32xi1>, vector<16x32xf32>
    %c21_103 = arith.constant 21 : index
    %590 = memref.load %arg4[%c21_103] : memref<144xf32, #tpu.memory_space<smem>>
    %591 = vector.broadcast %590 : f32 to vector<16x32xf32>
    %592 = arith.mulf %591, %589 : vector<16x32xf32>
    %593 = arith.addf %574, %592 : vector<16x32xf32>
    %c57 = arith.constant 57 : index
    %594 = memref.load %arg4[%c57] : memref<144xf32, #tpu.memory_space<smem>>
    %595 = vector.broadcast %594 : f32 to vector<16x32xf32>
    %596 = arith.mulf %595, %589 : vector<16x32xf32>
    %597 = arith.addf %578, %596 : vector<16x32xf32>
    %c93 = arith.constant 93 : index
    %598 = memref.load %arg4[%c93] : memref<144xf32, #tpu.memory_space<smem>>
    %599 = vector.broadcast %598 : f32 to vector<16x32xf32>
    %600 = arith.mulf %599, %589 : vector<16x32xf32>
    %601 = arith.addf %582, %600 : vector<16x32xf32>
    %c129 = arith.constant 129 : index
    %602 = memref.load %arg4[%c129] : memref<144xf32, #tpu.memory_space<smem>>
    %603 = vector.broadcast %602 : f32 to vector<16x32xf32>
    %604 = arith.mulf %603, %589 : vector<16x32xf32>
    %605 = arith.addf %586, %604 : vector<16x32xf32>
    %c22_104 = arith.constant 22 : index
    %606 = memref.load %arg4[%c22_104] : memref<144xf32, #tpu.memory_space<smem>>
    %607 = vector.broadcast %606 : f32 to vector<16x32xf32>
    %608 = arith.mulf %607, %136 : vector<16x32xf32>
    %609 = arith.addf %593, %608 : vector<16x32xf32>
    %c58 = arith.constant 58 : index
    %610 = memref.load %arg4[%c58] : memref<144xf32, #tpu.memory_space<smem>>
    %611 = vector.broadcast %610 : f32 to vector<16x32xf32>
    %612 = arith.mulf %611, %136 : vector<16x32xf32>
    %613 = arith.addf %597, %612 : vector<16x32xf32>
    %c94 = arith.constant 94 : index
    %614 = memref.load %arg4[%c94] : memref<144xf32, #tpu.memory_space<smem>>
    %615 = vector.broadcast %614 : f32 to vector<16x32xf32>
    %616 = arith.mulf %615, %136 : vector<16x32xf32>
    %617 = arith.addf %601, %616 : vector<16x32xf32>
    %c130 = arith.constant 130 : index
    %618 = memref.load %arg4[%c130] : memref<144xf32, #tpu.memory_space<smem>>
    %619 = vector.broadcast %618 : f32 to vector<16x32xf32>
    %620 = arith.mulf %619, %136 : vector<16x32xf32>
    %621 = arith.addf %605, %620 : vector<16x32xf32>
    %c31_i32_105 = arith.constant 31 : i32
    %622 = tpu.dynamic_rotate %136 by %c31_i32_105 dim 1 : vector<16x32xf32>, i32 -> vector<16x32xf32>
    %cst_106 = arith.constant 0.000000e+00 : f32
    %623 = vector.broadcast %cst_106 : f32 to vector<16x32xf32>
    %624 = arith.select %15, %622, %623 : vector<16x32xi1>, vector<16x32xf32>
    %c23_107 = arith.constant 23 : index
    %625 = memref.load %arg4[%c23_107] : memref<144xf32, #tpu.memory_space<smem>>
    %626 = vector.broadcast %625 : f32 to vector<16x32xf32>
    %627 = arith.mulf %626, %624 : vector<16x32xf32>
    %628 = arith.addf %609, %627 : vector<16x32xf32>
    %c59 = arith.constant 59 : index
    %629 = memref.load %arg4[%c59] : memref<144xf32, #tpu.memory_space<smem>>
    %630 = vector.broadcast %629 : f32 to vector<16x32xf32>
    %631 = arith.mulf %630, %624 : vector<16x32xf32>
    %632 = arith.addf %613, %631 : vector<16x32xf32>
    %c95 = arith.constant 95 : index
    %633 = memref.load %arg4[%c95] : memref<144xf32, #tpu.memory_space<smem>>
    %634 = vector.broadcast %633 : f32 to vector<16x32xf32>
    %635 = arith.mulf %634, %624 : vector<16x32xf32>
    %636 = arith.addf %617, %635 : vector<16x32xf32>
    %c131 = arith.constant 131 : index
    %637 = memref.load %arg4[%c131] : memref<144xf32, #tpu.memory_space<smem>>
    %638 = vector.broadcast %637 : f32 to vector<16x32xf32>
    %639 = arith.mulf %638, %624 : vector<16x32xf32>
    %640 = arith.addf %621, %639 : vector<16x32xf32>
    %c15_i32_108 = arith.constant 15 : i32
    %641 = tpu.dynamic_rotate %136 by %c15_i32_108 dim 0 : vector<16x32xf32>, i32 -> vector<16x32xf32>
    %c1_i32_109 = arith.constant 1 : i32
    %642 = tpu.dynamic_rotate %641 by %c1_i32_109 dim 1 : vector<16x32xf32>, i32 -> vector<16x32xf32>
    %643 = arith.andi %5, %12 : vector<16x32xi1>
    %cst_110 = arith.constant 0.000000e+00 : f32
    %644 = vector.broadcast %cst_110 : f32 to vector<16x32xf32>
    %645 = arith.select %643, %642, %644 : vector<16x32xi1>, vector<16x32xf32>
    %c24_111 = arith.constant 24 : index
    %646 = memref.load %arg4[%c24_111] : memref<144xf32, #tpu.memory_space<smem>>
    %647 = vector.broadcast %646 : f32 to vector<16x32xf32>
    %648 = arith.mulf %647, %645 : vector<16x32xf32>
    %649 = arith.addf %628, %648 : vector<16x32xf32>
    %c60 = arith.constant 60 : index
    %650 = memref.load %arg4[%c60] : memref<144xf32, #tpu.memory_space<smem>>
    %651 = vector.broadcast %650 : f32 to vector<16x32xf32>
    %652 = arith.mulf %651, %645 : vector<16x32xf32>
    %653 = arith.addf %632, %652 : vector<16x32xf32>
    %c96 = arith.constant 96 : index
    %654 = memref.load %arg4[%c96] : memref<144xf32, #tpu.memory_space<smem>>
    %655 = vector.broadcast %654 : f32 to vector<16x32xf32>
    %656 = arith.mulf %655, %645 : vector<16x32xf32>
    %657 = arith.addf %636, %656 : vector<16x32xf32>
    %c132 = arith.constant 132 : index
    %658 = memref.load %arg4[%c132] : memref<144xf32, #tpu.memory_space<smem>>
    %659 = vector.broadcast %658 : f32 to vector<16x32xf32>
    %660 = arith.mulf %659, %645 : vector<16x32xf32>
    %661 = arith.addf %640, %660 : vector<16x32xf32>
    %c15_i32_112 = arith.constant 15 : i32
    %662 = tpu.dynamic_rotate %136 by %c15_i32_112 dim 0 : vector<16x32xf32>, i32 -> vector<16x32xf32>
    %cst_113 = arith.constant 0.000000e+00 : f32
    %663 = vector.broadcast %cst_113 : f32 to vector<16x32xf32>
    %664 = arith.select %5, %662, %663 : vector<16x32xi1>, vector<16x32xf32>
    %c25_114 = arith.constant 25 : index
    %665 = memref.load %arg4[%c25_114] : memref<144xf32, #tpu.memory_space<smem>>
    %666 = vector.broadcast %665 : f32 to vector<16x32xf32>
    %667 = arith.mulf %666, %664 : vector<16x32xf32>
    %668 = arith.addf %649, %667 : vector<16x32xf32>
    %c61 = arith.constant 61 : index
    %669 = memref.load %arg4[%c61] : memref<144xf32, #tpu.memory_space<smem>>
    %670 = vector.broadcast %669 : f32 to vector<16x32xf32>
    %671 = arith.mulf %670, %664 : vector<16x32xf32>
    %672 = arith.addf %653, %671 : vector<16x32xf32>
    %c97 = arith.constant 97 : index
    %673 = memref.load %arg4[%c97] : memref<144xf32, #tpu.memory_space<smem>>
    %674 = vector.broadcast %673 : f32 to vector<16x32xf32>
    %675 = arith.mulf %674, %664 : vector<16x32xf32>
    %676 = arith.addf %657, %675 : vector<16x32xf32>
    %c133 = arith.constant 133 : index
    %677 = memref.load %arg4[%c133] : memref<144xf32, #tpu.memory_space<smem>>
    %678 = vector.broadcast %677 : f32 to vector<16x32xf32>
    %679 = arith.mulf %678, %664 : vector<16x32xf32>
    %680 = arith.addf %661, %679 : vector<16x32xf32>
    %c15_i32_115 = arith.constant 15 : i32
    %681 = tpu.dynamic_rotate %136 by %c15_i32_115 dim 0 : vector<16x32xf32>, i32 -> vector<16x32xf32>
    %c31_i32_116 = arith.constant 31 : i32
    %682 = tpu.dynamic_rotate %681 by %c31_i32_116 dim 1 : vector<16x32xf32>, i32 -> vector<16x32xf32>
    %683 = arith.andi %5, %15 : vector<16x32xi1>
    %cst_117 = arith.constant 0.000000e+00 : f32
    %684 = vector.broadcast %cst_117 : f32 to vector<16x32xf32>
    %685 = arith.select %683, %682, %684 : vector<16x32xi1>, vector<16x32xf32>
    %c26_118 = arith.constant 26 : index
    %686 = memref.load %arg4[%c26_118] : memref<144xf32, #tpu.memory_space<smem>>
    %687 = vector.broadcast %686 : f32 to vector<16x32xf32>
    %688 = arith.mulf %687, %685 : vector<16x32xf32>
    %689 = arith.addf %668, %688 : vector<16x32xf32>
    %c62 = arith.constant 62 : index
    %690 = memref.load %arg4[%c62] : memref<144xf32, #tpu.memory_space<smem>>
    %691 = vector.broadcast %690 : f32 to vector<16x32xf32>
    %692 = arith.mulf %691, %685 : vector<16x32xf32>
    %693 = arith.addf %672, %692 : vector<16x32xf32>
    %c98 = arith.constant 98 : index
    %694 = memref.load %arg4[%c98] : memref<144xf32, #tpu.memory_space<smem>>
    %695 = vector.broadcast %694 : f32 to vector<16x32xf32>
    %696 = arith.mulf %695, %685 : vector<16x32xf32>
    %697 = arith.addf %676, %696 : vector<16x32xf32>
    %c134 = arith.constant 134 : index
    %698 = memref.load %arg4[%c134] : memref<144xf32, #tpu.memory_space<smem>>
    %699 = vector.broadcast %698 : f32 to vector<16x32xf32>
    %700 = arith.mulf %699, %685 : vector<16x32xf32>
    %701 = arith.addf %680, %700 : vector<16x32xf32>
    %c1_i32_119 = arith.constant 1 : i32
    %702 = tpu.dynamic_rotate %169 by %c1_i32_119 dim 0 : vector<16x32xf32>, i32 -> vector<16x32xf32>
    %c1_i32_120 = arith.constant 1 : i32
    %703 = tpu.dynamic_rotate %702 by %c1_i32_120 dim 1 : vector<16x32xf32>, i32 -> vector<16x32xf32>
    %704 = arith.andi %3, %12 : vector<16x32xi1>
    %cst_121 = arith.constant 0.000000e+00 : f32
    %705 = vector.broadcast %cst_121 : f32 to vector<16x32xf32>
    %706 = arith.select %704, %703, %705 : vector<16x32xi1>, vector<16x32xf32>
    %c27_122 = arith.constant 27 : index
    %707 = memref.load %arg4[%c27_122] : memref<144xf32, #tpu.memory_space<smem>>
    %708 = vector.broadcast %707 : f32 to vector<16x32xf32>
    %709 = arith.mulf %708, %706 : vector<16x32xf32>
    %710 = arith.addf %689, %709 : vector<16x32xf32>
    %c63 = arith.constant 63 : index
    %711 = memref.load %arg4[%c63] : memref<144xf32, #tpu.memory_space<smem>>
    %712 = vector.broadcast %711 : f32 to vector<16x32xf32>
    %713 = arith.mulf %712, %706 : vector<16x32xf32>
    %714 = arith.addf %693, %713 : vector<16x32xf32>
    %c99 = arith.constant 99 : index
    %715 = memref.load %arg4[%c99] : memref<144xf32, #tpu.memory_space<smem>>
    %716 = vector.broadcast %715 : f32 to vector<16x32xf32>
    %717 = arith.mulf %716, %706 : vector<16x32xf32>
    %718 = arith.addf %697, %717 : vector<16x32xf32>
    %c135 = arith.constant 135 : index
    %719 = memref.load %arg4[%c135] : memref<144xf32, #tpu.memory_space<smem>>
    %720 = vector.broadcast %719 : f32 to vector<16x32xf32>
    %721 = arith.mulf %720, %706 : vector<16x32xf32>
    %722 = arith.addf %701, %721 : vector<16x32xf32>
    %c1_i32_123 = arith.constant 1 : i32
    %723 = tpu.dynamic_rotate %169 by %c1_i32_123 dim 0 : vector<16x32xf32>, i32 -> vector<16x32xf32>
    %cst_124 = arith.constant 0.000000e+00 : f32
    %724 = vector.broadcast %cst_124 : f32 to vector<16x32xf32>
    %725 = arith.select %3, %723, %724 : vector<16x32xi1>, vector<16x32xf32>
    %c28_125 = arith.constant 28 : index
    %726 = memref.load %arg4[%c28_125] : memref<144xf32, #tpu.memory_space<smem>>
    %727 = vector.broadcast %726 : f32 to vector<16x32xf32>
    %728 = arith.mulf %727, %725 : vector<16x32xf32>
    %729 = arith.addf %710, %728 : vector<16x32xf32>
    %c64 = arith.constant 64 : index
    %730 = memref.load %arg4[%c64] : memref<144xf32, #tpu.memory_space<smem>>
    %731 = vector.broadcast %730 : f32 to vector<16x32xf32>
    %732 = arith.mulf %731, %725 : vector<16x32xf32>
    %733 = arith.addf %714, %732 : vector<16x32xf32>
    %c100 = arith.constant 100 : index
    %734 = memref.load %arg4[%c100] : memref<144xf32, #tpu.memory_space<smem>>
    %735 = vector.broadcast %734 : f32 to vector<16x32xf32>
    %736 = arith.mulf %735, %725 : vector<16x32xf32>
    %737 = arith.addf %718, %736 : vector<16x32xf32>
    %c136 = arith.constant 136 : index
    %738 = memref.load %arg4[%c136] : memref<144xf32, #tpu.memory_space<smem>>
    %739 = vector.broadcast %738 : f32 to vector<16x32xf32>
    %740 = arith.mulf %739, %725 : vector<16x32xf32>
    %741 = arith.addf %722, %740 : vector<16x32xf32>
    %c1_i32_126 = arith.constant 1 : i32
    %742 = tpu.dynamic_rotate %169 by %c1_i32_126 dim 0 : vector<16x32xf32>, i32 -> vector<16x32xf32>
    %c31_i32_127 = arith.constant 31 : i32
    %743 = tpu.dynamic_rotate %742 by %c31_i32_127 dim 1 : vector<16x32xf32>, i32 -> vector<16x32xf32>
    %744 = arith.andi %3, %15 : vector<16x32xi1>
    %cst_128 = arith.constant 0.000000e+00 : f32
    %745 = vector.broadcast %cst_128 : f32 to vector<16x32xf32>
    %746 = arith.select %744, %743, %745 : vector<16x32xi1>, vector<16x32xf32>
    %c29_129 = arith.constant 29 : index
    %747 = memref.load %arg4[%c29_129] : memref<144xf32, #tpu.memory_space<smem>>
    %748 = vector.broadcast %747 : f32 to vector<16x32xf32>
    %749 = arith.mulf %748, %746 : vector<16x32xf32>
    %750 = arith.addf %729, %749 : vector<16x32xf32>
    %c65 = arith.constant 65 : index
    %751 = memref.load %arg4[%c65] : memref<144xf32, #tpu.memory_space<smem>>
    %752 = vector.broadcast %751 : f32 to vector<16x32xf32>
    %753 = arith.mulf %752, %746 : vector<16x32xf32>
    %754 = arith.addf %733, %753 : vector<16x32xf32>
    %c101 = arith.constant 101 : index
    %755 = memref.load %arg4[%c101] : memref<144xf32, #tpu.memory_space<smem>>
    %756 = vector.broadcast %755 : f32 to vector<16x32xf32>
    %757 = arith.mulf %756, %746 : vector<16x32xf32>
    %758 = arith.addf %737, %757 : vector<16x32xf32>
    %c137 = arith.constant 137 : index
    %759 = memref.load %arg4[%c137] : memref<144xf32, #tpu.memory_space<smem>>
    %760 = vector.broadcast %759 : f32 to vector<16x32xf32>
    %761 = arith.mulf %760, %746 : vector<16x32xf32>
    %762 = arith.addf %741, %761 : vector<16x32xf32>
    %c1_i32_130 = arith.constant 1 : i32
    %763 = tpu.dynamic_rotate %169 by %c1_i32_130 dim 1 : vector<16x32xf32>, i32 -> vector<16x32xf32>
    %cst_131 = arith.constant 0.000000e+00 : f32
    %764 = vector.broadcast %cst_131 : f32 to vector<16x32xf32>
    %765 = arith.select %12, %763, %764 : vector<16x32xi1>, vector<16x32xf32>
    %c30_132 = arith.constant 30 : index
    %766 = memref.load %arg4[%c30_132] : memref<144xf32, #tpu.memory_space<smem>>
    %767 = vector.broadcast %766 : f32 to vector<16x32xf32>
    %768 = arith.mulf %767, %765 : vector<16x32xf32>
    %769 = arith.addf %750, %768 : vector<16x32xf32>
    %c66 = arith.constant 66 : index
    %770 = memref.load %arg4[%c66] : memref<144xf32, #tpu.memory_space<smem>>
    %771 = vector.broadcast %770 : f32 to vector<16x32xf32>
    %772 = arith.mulf %771, %765 : vector<16x32xf32>
    %773 = arith.addf %754, %772 : vector<16x32xf32>
    %c102 = arith.constant 102 : index
    %774 = memref.load %arg4[%c102] : memref<144xf32, #tpu.memory_space<smem>>
    %775 = vector.broadcast %774 : f32 to vector<16x32xf32>
    %776 = arith.mulf %775, %765 : vector<16x32xf32>
    %777 = arith.addf %758, %776 : vector<16x32xf32>
    %c138 = arith.constant 138 : index
    %778 = memref.load %arg4[%c138] : memref<144xf32, #tpu.memory_space<smem>>
    %779 = vector.broadcast %778 : f32 to vector<16x32xf32>
    %780 = arith.mulf %779, %765 : vector<16x32xf32>
    %781 = arith.addf %762, %780 : vector<16x32xf32>
    %c31_133 = arith.constant 31 : index
    %782 = memref.load %arg4[%c31_133] : memref<144xf32, #tpu.memory_space<smem>>
    %783 = vector.broadcast %782 : f32 to vector<16x32xf32>
    %784 = arith.mulf %783, %169 : vector<16x32xf32>
    %785 = arith.addf %769, %784 : vector<16x32xf32>
    %c67 = arith.constant 67 : index
    %786 = memref.load %arg4[%c67] : memref<144xf32, #tpu.memory_space<smem>>
    %787 = vector.broadcast %786 : f32 to vector<16x32xf32>
    %788 = arith.mulf %787, %169 : vector<16x32xf32>
    %789 = arith.addf %773, %788 : vector<16x32xf32>
    %c103 = arith.constant 103 : index
    %790 = memref.load %arg4[%c103] : memref<144xf32, #tpu.memory_space<smem>>
    %791 = vector.broadcast %790 : f32 to vector<16x32xf32>
    %792 = arith.mulf %791, %169 : vector<16x32xf32>
    %793 = arith.addf %777, %792 : vector<16x32xf32>
    %c139 = arith.constant 139 : index
    %794 = memref.load %arg4[%c139] : memref<144xf32, #tpu.memory_space<smem>>
    %795 = vector.broadcast %794 : f32 to vector<16x32xf32>
    %796 = arith.mulf %795, %169 : vector<16x32xf32>
    %797 = arith.addf %781, %796 : vector<16x32xf32>
    %c31_i32_134 = arith.constant 31 : i32
    %798 = tpu.dynamic_rotate %169 by %c31_i32_134 dim 1 : vector<16x32xf32>, i32 -> vector<16x32xf32>
    %cst_135 = arith.constant 0.000000e+00 : f32
    %799 = vector.broadcast %cst_135 : f32 to vector<16x32xf32>
    %800 = arith.select %15, %798, %799 : vector<16x32xi1>, vector<16x32xf32>
    %c32 = arith.constant 32 : index
    %801 = memref.load %arg4[%c32] : memref<144xf32, #tpu.memory_space<smem>>
    %802 = vector.broadcast %801 : f32 to vector<16x32xf32>
    %803 = arith.mulf %802, %800 : vector<16x32xf32>
    %804 = arith.addf %785, %803 : vector<16x32xf32>
    %c68 = arith.constant 68 : index
    %805 = memref.load %arg4[%c68] : memref<144xf32, #tpu.memory_space<smem>>
    %806 = vector.broadcast %805 : f32 to vector<16x32xf32>
    %807 = arith.mulf %806, %800 : vector<16x32xf32>
    %808 = arith.addf %789, %807 : vector<16x32xf32>
    %c104 = arith.constant 104 : index
    %809 = memref.load %arg4[%c104] : memref<144xf32, #tpu.memory_space<smem>>
    %810 = vector.broadcast %809 : f32 to vector<16x32xf32>
    %811 = arith.mulf %810, %800 : vector<16x32xf32>
    %812 = arith.addf %793, %811 : vector<16x32xf32>
    %c140 = arith.constant 140 : index
    %813 = memref.load %arg4[%c140] : memref<144xf32, #tpu.memory_space<smem>>
    %814 = vector.broadcast %813 : f32 to vector<16x32xf32>
    %815 = arith.mulf %814, %800 : vector<16x32xf32>
    %816 = arith.addf %797, %815 : vector<16x32xf32>
    %c15_i32_136 = arith.constant 15 : i32
    %817 = tpu.dynamic_rotate %169 by %c15_i32_136 dim 0 : vector<16x32xf32>, i32 -> vector<16x32xf32>
    %c1_i32_137 = arith.constant 1 : i32
    %818 = tpu.dynamic_rotate %817 by %c1_i32_137 dim 1 : vector<16x32xf32>, i32 -> vector<16x32xf32>
    %819 = arith.andi %5, %12 : vector<16x32xi1>
    %cst_138 = arith.constant 0.000000e+00 : f32
    %820 = vector.broadcast %cst_138 : f32 to vector<16x32xf32>
    %821 = arith.select %819, %818, %820 : vector<16x32xi1>, vector<16x32xf32>
    %c33 = arith.constant 33 : index
    %822 = memref.load %arg4[%c33] : memref<144xf32, #tpu.memory_space<smem>>
    %823 = vector.broadcast %822 : f32 to vector<16x32xf32>
    %824 = arith.mulf %823, %821 : vector<16x32xf32>
    %825 = arith.addf %804, %824 : vector<16x32xf32>
    %c69 = arith.constant 69 : index
    %826 = memref.load %arg4[%c69] : memref<144xf32, #tpu.memory_space<smem>>
    %827 = vector.broadcast %826 : f32 to vector<16x32xf32>
    %828 = arith.mulf %827, %821 : vector<16x32xf32>
    %829 = arith.addf %808, %828 : vector<16x32xf32>
    %c105 = arith.constant 105 : index
    %830 = memref.load %arg4[%c105] : memref<144xf32, #tpu.memory_space<smem>>
    %831 = vector.broadcast %830 : f32 to vector<16x32xf32>
    %832 = arith.mulf %831, %821 : vector<16x32xf32>
    %833 = arith.addf %812, %832 : vector<16x32xf32>
    %c141 = arith.constant 141 : index
    %834 = memref.load %arg4[%c141] : memref<144xf32, #tpu.memory_space<smem>>
    %835 = vector.broadcast %834 : f32 to vector<16x32xf32>
    %836 = arith.mulf %835, %821 : vector<16x32xf32>
    %837 = arith.addf %816, %836 : vector<16x32xf32>
    %c15_i32_139 = arith.constant 15 : i32
    %838 = tpu.dynamic_rotate %169 by %c15_i32_139 dim 0 : vector<16x32xf32>, i32 -> vector<16x32xf32>
    %cst_140 = arith.constant 0.000000e+00 : f32
    %839 = vector.broadcast %cst_140 : f32 to vector<16x32xf32>
    %840 = arith.select %5, %838, %839 : vector<16x32xi1>, vector<16x32xf32>
    %c34 = arith.constant 34 : index
    %841 = memref.load %arg4[%c34] : memref<144xf32, #tpu.memory_space<smem>>
    %842 = vector.broadcast %841 : f32 to vector<16x32xf32>
    %843 = arith.mulf %842, %840 : vector<16x32xf32>
    %844 = arith.addf %825, %843 : vector<16x32xf32>
    %c70 = arith.constant 70 : index
    %845 = memref.load %arg4[%c70] : memref<144xf32, #tpu.memory_space<smem>>
    %846 = vector.broadcast %845 : f32 to vector<16x32xf32>
    %847 = arith.mulf %846, %840 : vector<16x32xf32>
    %848 = arith.addf %829, %847 : vector<16x32xf32>
    %c106 = arith.constant 106 : index
    %849 = memref.load %arg4[%c106] : memref<144xf32, #tpu.memory_space<smem>>
    %850 = vector.broadcast %849 : f32 to vector<16x32xf32>
    %851 = arith.mulf %850, %840 : vector<16x32xf32>
    %852 = arith.addf %833, %851 : vector<16x32xf32>
    %c142 = arith.constant 142 : index
    %853 = memref.load %arg4[%c142] : memref<144xf32, #tpu.memory_space<smem>>
    %854 = vector.broadcast %853 : f32 to vector<16x32xf32>
    %855 = arith.mulf %854, %840 : vector<16x32xf32>
    %856 = arith.addf %837, %855 : vector<16x32xf32>
    %c15_i32_141 = arith.constant 15 : i32
    %857 = tpu.dynamic_rotate %169 by %c15_i32_141 dim 0 : vector<16x32xf32>, i32 -> vector<16x32xf32>
    %c31_i32_142 = arith.constant 31 : i32
    %858 = tpu.dynamic_rotate %857 by %c31_i32_142 dim 1 : vector<16x32xf32>, i32 -> vector<16x32xf32>
    %859 = arith.andi %5, %15 : vector<16x32xi1>
    %cst_143 = arith.constant 0.000000e+00 : f32
    %860 = vector.broadcast %cst_143 : f32 to vector<16x32xf32>
    %861 = arith.select %859, %858, %860 : vector<16x32xi1>, vector<16x32xf32>
    %c35 = arith.constant 35 : index
    %862 = memref.load %arg4[%c35] : memref<144xf32, #tpu.memory_space<smem>>
    %863 = vector.broadcast %862 : f32 to vector<16x32xf32>
    %864 = arith.mulf %863, %861 : vector<16x32xf32>
    %865 = arith.addf %844, %864 : vector<16x32xf32>
    %c71 = arith.constant 71 : index
    %866 = memref.load %arg4[%c71] : memref<144xf32, #tpu.memory_space<smem>>
    %867 = vector.broadcast %866 : f32 to vector<16x32xf32>
    %868 = arith.mulf %867, %861 : vector<16x32xf32>
    %869 = arith.addf %848, %868 : vector<16x32xf32>
    %c107 = arith.constant 107 : index
    %870 = memref.load %arg4[%c107] : memref<144xf32, #tpu.memory_space<smem>>
    %871 = vector.broadcast %870 : f32 to vector<16x32xf32>
    %872 = arith.mulf %871, %861 : vector<16x32xf32>
    %873 = arith.addf %852, %872 : vector<16x32xf32>
    %c143 = arith.constant 143 : index
    %874 = memref.load %arg4[%c143] : memref<144xf32, #tpu.memory_space<smem>>
    %875 = vector.broadcast %874 : f32 to vector<16x32xf32>
    %876 = arith.mulf %875, %861 : vector<16x32xf32>
    %877 = arith.addf %856, %876 : vector<16x32xf32>
    %c4_144 = arith.constant 4 : index
    %878 = memref.load %arg5[%c4_144] : memref<9xf32, #tpu.memory_space<smem>>
    %879 = vector.broadcast %878 : f32 to vector<16x32xf32>
    %880 = arith.mulf %879, %36 : vector<16x32xf32>
    %c0_145 = arith.constant 0 : index
    %881 = memref.load %arg5[%c0_145] : memref<9xf32, #tpu.memory_space<smem>>
    %c1_i32_146 = arith.constant 1 : i32
    %882 = tpu.dynamic_rotate %36 by %c1_i32_146 dim 0 : vector<16x32xf32>, i32 -> vector<16x32xf32>
    %c1_i32_147 = arith.constant 1 : i32
    %883 = tpu.dynamic_rotate %882 by %c1_i32_147 dim 1 : vector<16x32xf32>, i32 -> vector<16x32xf32>
    %884 = arith.andi %3, %12 : vector<16x32xi1>
    %cst_148 = arith.constant 0.000000e+00 : f32
    %885 = vector.broadcast %cst_148 : f32 to vector<16x32xf32>
    %886 = arith.select %884, %883, %885 : vector<16x32xi1>, vector<16x32xf32>
    %887 = vector.broadcast %881 : f32 to vector<16x32xf32>
    %888 = arith.mulf %887, %886 : vector<16x32xf32>
    %889 = arith.addf %880, %888 : vector<16x32xf32>
    %c1_149 = arith.constant 1 : index
    %890 = memref.load %arg5[%c1_149] : memref<9xf32, #tpu.memory_space<smem>>
    %c1_i32_150 = arith.constant 1 : i32
    %891 = tpu.dynamic_rotate %36 by %c1_i32_150 dim 0 : vector<16x32xf32>, i32 -> vector<16x32xf32>
    %cst_151 = arith.constant 0.000000e+00 : f32
    %892 = vector.broadcast %cst_151 : f32 to vector<16x32xf32>
    %893 = arith.select %3, %891, %892 : vector<16x32xi1>, vector<16x32xf32>
    %894 = vector.broadcast %890 : f32 to vector<16x32xf32>
    %895 = arith.mulf %894, %893 : vector<16x32xf32>
    %896 = arith.addf %889, %895 : vector<16x32xf32>
    %c2_152 = arith.constant 2 : index
    %897 = memref.load %arg5[%c2_152] : memref<9xf32, #tpu.memory_space<smem>>
    %c1_i32_153 = arith.constant 1 : i32
    %898 = tpu.dynamic_rotate %36 by %c1_i32_153 dim 0 : vector<16x32xf32>, i32 -> vector<16x32xf32>
    %c31_i32_154 = arith.constant 31 : i32
    %899 = tpu.dynamic_rotate %898 by %c31_i32_154 dim 1 : vector<16x32xf32>, i32 -> vector<16x32xf32>
    %900 = arith.andi %3, %15 : vector<16x32xi1>
    %cst_155 = arith.constant 0.000000e+00 : f32
    %901 = vector.broadcast %cst_155 : f32 to vector<16x32xf32>
    %902 = arith.select %900, %899, %901 : vector<16x32xi1>, vector<16x32xf32>
    %903 = vector.broadcast %897 : f32 to vector<16x32xf32>
    %904 = arith.mulf %903, %902 : vector<16x32xf32>
    %905 = arith.addf %896, %904 : vector<16x32xf32>
    %c3_156 = arith.constant 3 : index
    %906 = memref.load %arg5[%c3_156] : memref<9xf32, #tpu.memory_space<smem>>
    %c1_i32_157 = arith.constant 1 : i32
    %907 = tpu.dynamic_rotate %36 by %c1_i32_157 dim 1 : vector<16x32xf32>, i32 -> vector<16x32xf32>
    %cst_158 = arith.constant 0.000000e+00 : f32
    %908 = vector.broadcast %cst_158 : f32 to vector<16x32xf32>
    %909 = arith.select %12, %907, %908 : vector<16x32xi1>, vector<16x32xf32>
    %910 = vector.broadcast %906 : f32 to vector<16x32xf32>
    %911 = arith.mulf %910, %909 : vector<16x32xf32>
    %912 = arith.addf %905, %911 : vector<16x32xf32>
    %c5_159 = arith.constant 5 : index
    %913 = memref.load %arg5[%c5_159] : memref<9xf32, #tpu.memory_space<smem>>
    %c31_i32_160 = arith.constant 31 : i32
    %914 = tpu.dynamic_rotate %36 by %c31_i32_160 dim 1 : vector<16x32xf32>, i32 -> vector<16x32xf32>
    %cst_161 = arith.constant 0.000000e+00 : f32
    %915 = vector.broadcast %cst_161 : f32 to vector<16x32xf32>
    %916 = arith.select %15, %914, %915 : vector<16x32xi1>, vector<16x32xf32>
    %917 = vector.broadcast %913 : f32 to vector<16x32xf32>
    %918 = arith.mulf %917, %916 : vector<16x32xf32>
    %919 = arith.addf %912, %918 : vector<16x32xf32>
    %c6_162 = arith.constant 6 : index
    %920 = memref.load %arg5[%c6_162] : memref<9xf32, #tpu.memory_space<smem>>
    %c15_i32_163 = arith.constant 15 : i32
    %921 = tpu.dynamic_rotate %36 by %c15_i32_163 dim 0 : vector<16x32xf32>, i32 -> vector<16x32xf32>
    %c1_i32_164 = arith.constant 1 : i32
    %922 = tpu.dynamic_rotate %921 by %c1_i32_164 dim 1 : vector<16x32xf32>, i32 -> vector<16x32xf32>
    %923 = arith.andi %5, %12 : vector<16x32xi1>
    %cst_165 = arith.constant 0.000000e+00 : f32
    %924 = vector.broadcast %cst_165 : f32 to vector<16x32xf32>
    %925 = arith.select %923, %922, %924 : vector<16x32xi1>, vector<16x32xf32>
    %926 = vector.broadcast %920 : f32 to vector<16x32xf32>
    %927 = arith.mulf %926, %925 : vector<16x32xf32>
    %928 = arith.addf %919, %927 : vector<16x32xf32>
    %c7_166 = arith.constant 7 : index
    %929 = memref.load %arg5[%c7_166] : memref<9xf32, #tpu.memory_space<smem>>
    %c15_i32_167 = arith.constant 15 : i32
    %930 = tpu.dynamic_rotate %36 by %c15_i32_167 dim 0 : vector<16x32xf32>, i32 -> vector<16x32xf32>
    %cst_168 = arith.constant 0.000000e+00 : f32
    %931 = vector.broadcast %cst_168 : f32 to vector<16x32xf32>
    %932 = arith.select %5, %930, %931 : vector<16x32xi1>, vector<16x32xf32>
    %933 = vector.broadcast %929 : f32 to vector<16x32xf32>
    %934 = arith.mulf %933, %932 : vector<16x32xf32>
    %935 = arith.addf %928, %934 : vector<16x32xf32>
    %c8_169 = arith.constant 8 : index
    %936 = memref.load %arg5[%c8_169] : memref<9xf32, #tpu.memory_space<smem>>
    %c15_i32_170 = arith.constant 15 : i32
    %937 = tpu.dynamic_rotate %36 by %c15_i32_170 dim 0 : vector<16x32xf32>, i32 -> vector<16x32xf32>
    %c31_i32_171 = arith.constant 31 : i32
    %938 = tpu.dynamic_rotate %937 by %c31_i32_171 dim 1 : vector<16x32xf32>, i32 -> vector<16x32xf32>
    %939 = arith.andi %5, %15 : vector<16x32xi1>
    %cst_172 = arith.constant 0.000000e+00 : f32
    %940 = vector.broadcast %cst_172 : f32 to vector<16x32xf32>
    %941 = arith.select %939, %938, %940 : vector<16x32xi1>, vector<16x32xf32>
    %942 = vector.broadcast %936 : f32 to vector<16x32xf32>
    %943 = arith.mulf %942, %941 : vector<16x32xf32>
    %944 = arith.addf %935, %943 : vector<16x32xf32>
    %c4_173 = arith.constant 4 : index
    %945 = memref.load %arg6[%c4_173] : memref<9xf32, #tpu.memory_space<smem>>
    %946 = vector.broadcast %945 : f32 to vector<16x32xf32>
    %947 = arith.mulf %946, %944 : vector<16x32xf32>
    %c0_174 = arith.constant 0 : index
    %948 = memref.load %arg6[%c0_174] : memref<9xf32, #tpu.memory_space<smem>>
    %c1_i32_175 = arith.constant 1 : i32
    %949 = tpu.dynamic_rotate %944 by %c1_i32_175 dim 0 : vector<16x32xf32>, i32 -> vector<16x32xf32>
    %c1_i32_176 = arith.constant 1 : i32
    %950 = tpu.dynamic_rotate %949 by %c1_i32_176 dim 1 : vector<16x32xf32>, i32 -> vector<16x32xf32>
    %951 = arith.andi %3, %12 : vector<16x32xi1>
    %cst_177 = arith.constant 0.000000e+00 : f32
    %952 = vector.broadcast %cst_177 : f32 to vector<16x32xf32>
    %953 = arith.select %951, %950, %952 : vector<16x32xi1>, vector<16x32xf32>
    %954 = vector.broadcast %948 : f32 to vector<16x32xf32>
    %955 = arith.mulf %954, %953 : vector<16x32xf32>
    %956 = arith.addf %947, %955 : vector<16x32xf32>
    %c1_178 = arith.constant 1 : index
    %957 = memref.load %arg6[%c1_178] : memref<9xf32, #tpu.memory_space<smem>>
    %c1_i32_179 = arith.constant 1 : i32
    %958 = tpu.dynamic_rotate %944 by %c1_i32_179 dim 0 : vector<16x32xf32>, i32 -> vector<16x32xf32>
    %cst_180 = arith.constant 0.000000e+00 : f32
    %959 = vector.broadcast %cst_180 : f32 to vector<16x32xf32>
    %960 = arith.select %3, %958, %959 : vector<16x32xi1>, vector<16x32xf32>
    %961 = vector.broadcast %957 : f32 to vector<16x32xf32>
    %962 = arith.mulf %961, %960 : vector<16x32xf32>
    %963 = arith.addf %956, %962 : vector<16x32xf32>
    %c2_181 = arith.constant 2 : index
    %964 = memref.load %arg6[%c2_181] : memref<9xf32, #tpu.memory_space<smem>>
    %c1_i32_182 = arith.constant 1 : i32
    %965 = tpu.dynamic_rotate %944 by %c1_i32_182 dim 0 : vector<16x32xf32>, i32 -> vector<16x32xf32>
    %c31_i32_183 = arith.constant 31 : i32
    %966 = tpu.dynamic_rotate %965 by %c31_i32_183 dim 1 : vector<16x32xf32>, i32 -> vector<16x32xf32>
    %967 = arith.andi %3, %15 : vector<16x32xi1>
    %cst_184 = arith.constant 0.000000e+00 : f32
    %968 = vector.broadcast %cst_184 : f32 to vector<16x32xf32>
    %969 = arith.select %967, %966, %968 : vector<16x32xi1>, vector<16x32xf32>
    %970 = vector.broadcast %964 : f32 to vector<16x32xf32>
    %971 = arith.mulf %970, %969 : vector<16x32xf32>
    %972 = arith.addf %963, %971 : vector<16x32xf32>
    %c3_185 = arith.constant 3 : index
    %973 = memref.load %arg6[%c3_185] : memref<9xf32, #tpu.memory_space<smem>>
    %c1_i32_186 = arith.constant 1 : i32
    %974 = tpu.dynamic_rotate %944 by %c1_i32_186 dim 1 : vector<16x32xf32>, i32 -> vector<16x32xf32>
    %cst_187 = arith.constant 0.000000e+00 : f32
    %975 = vector.broadcast %cst_187 : f32 to vector<16x32xf32>
    %976 = arith.select %12, %974, %975 : vector<16x32xi1>, vector<16x32xf32>
    %977 = vector.broadcast %973 : f32 to vector<16x32xf32>
    %978 = arith.mulf %977, %976 : vector<16x32xf32>
    %979 = arith.addf %972, %978 : vector<16x32xf32>
    %c5_188 = arith.constant 5 : index
    %980 = memref.load %arg6[%c5_188] : memref<9xf32, #tpu.memory_space<smem>>
    %c31_i32_189 = arith.constant 31 : i32
    %981 = tpu.dynamic_rotate %944 by %c31_i32_189 dim 1 : vector<16x32xf32>, i32 -> vector<16x32xf32>
    %cst_190 = arith.constant 0.000000e+00 : f32
    %982 = vector.broadcast %cst_190 : f32 to vector<16x32xf32>
    %983 = arith.select %15, %981, %982 : vector<16x32xi1>, vector<16x32xf32>
    %984 = vector.broadcast %980 : f32 to vector<16x32xf32>
    %985 = arith.mulf %984, %983 : vector<16x32xf32>
    %986 = arith.addf %979, %985 : vector<16x32xf32>
    %c6_191 = arith.constant 6 : index
    %987 = memref.load %arg6[%c6_191] : memref<9xf32, #tpu.memory_space<smem>>
    %c15_i32_192 = arith.constant 15 : i32
    %988 = tpu.dynamic_rotate %944 by %c15_i32_192 dim 0 : vector<16x32xf32>, i32 -> vector<16x32xf32>
    %c1_i32_193 = arith.constant 1 : i32
    %989 = tpu.dynamic_rotate %988 by %c1_i32_193 dim 1 : vector<16x32xf32>, i32 -> vector<16x32xf32>
    %990 = arith.andi %5, %12 : vector<16x32xi1>
    %cst_194 = arith.constant 0.000000e+00 : f32
    %991 = vector.broadcast %cst_194 : f32 to vector<16x32xf32>
    %992 = arith.select %990, %989, %991 : vector<16x32xi1>, vector<16x32xf32>
    %993 = vector.broadcast %987 : f32 to vector<16x32xf32>
    %994 = arith.mulf %993, %992 : vector<16x32xf32>
    %995 = arith.addf %986, %994 : vector<16x32xf32>
    %c7_195 = arith.constant 7 : index
    %996 = memref.load %arg6[%c7_195] : memref<9xf32, #tpu.memory_space<smem>>
    %c15_i32_196 = arith.constant 15 : i32
    %997 = tpu.dynamic_rotate %944 by %c15_i32_196 dim 0 : vector<16x32xf32>, i32 -> vector<16x32xf32>
    %cst_197 = arith.constant 0.000000e+00 : f32
    %998 = vector.broadcast %cst_197 : f32 to vector<16x32xf32>
    %999 = arith.select %5, %997, %998 : vector<16x32xi1>, vector<16x32xf32>
    %1000 = vector.broadcast %996 : f32 to vector<16x32xf32>
    %1001 = arith.mulf %1000, %999 : vector<16x32xf32>
    %1002 = arith.addf %995, %1001 : vector<16x32xf32>
    %c8_198 = arith.constant 8 : index
    %1003 = memref.load %arg6[%c8_198] : memref<9xf32, #tpu.memory_space<smem>>
    %c15_i32_199 = arith.constant 15 : i32
    %1004 = tpu.dynamic_rotate %944 by %c15_i32_199 dim 0 : vector<16x32xf32>, i32 -> vector<16x32xf32>
    %c31_i32_200 = arith.constant 31 : i32
    %1005 = tpu.dynamic_rotate %1004 by %c31_i32_200 dim 1 : vector<16x32xf32>, i32 -> vector<16x32xf32>
    %1006 = arith.andi %5, %15 : vector<16x32xi1>
    %cst_201 = arith.constant 0.000000e+00 : f32
    %1007 = vector.broadcast %cst_201 : f32 to vector<16x32xf32>
    %1008 = arith.select %1006, %1005, %1007 : vector<16x32xi1>, vector<16x32xf32>
    %1009 = vector.broadcast %1003 : f32 to vector<16x32xf32>
    %1010 = arith.mulf %1009, %1008 : vector<16x32xf32>
    %1011 = arith.addf %1002, %1010 : vector<16x32xf32>
    %1012 = arith.negf %1011 : vector<16x32xf32>
    %1013 = math.exp %1012 : vector<16x32xf32>
    %cst_202 = arith.constant 1.000000e+00 : f32
    %1014 = vector.broadcast %cst_202 : f32 to vector<16x32xf32>
    %1015 = arith.addf %1014, %1013 : vector<16x32xf32>
    %1016 = arith.divf %1014, %1015 : vector<16x32xf32>
    %c4_203 = arith.constant 4 : index
    %1017 = memref.load %arg7[%c4_203] : memref<9xf32, #tpu.memory_space<smem>>
    %1018 = vector.broadcast %1017 : f32 to vector<16x32xf32>
    %1019 = arith.mulf %1018, %37 : vector<16x32xf32>
    %c0_204 = arith.constant 0 : index
    %1020 = memref.load %arg7[%c0_204] : memref<9xf32, #tpu.memory_space<smem>>
    %c1_i32_205 = arith.constant 1 : i32
    %1021 = tpu.dynamic_rotate %37 by %c1_i32_205 dim 0 : vector<16x32xf32>, i32 -> vector<16x32xf32>
    %c1_i32_206 = arith.constant 1 : i32
    %1022 = tpu.dynamic_rotate %1021 by %c1_i32_206 dim 1 : vector<16x32xf32>, i32 -> vector<16x32xf32>
    %1023 = arith.andi %3, %12 : vector<16x32xi1>
    %cst_207 = arith.constant 0.000000e+00 : f32
    %1024 = vector.broadcast %cst_207 : f32 to vector<16x32xf32>
    %1025 = arith.select %1023, %1022, %1024 : vector<16x32xi1>, vector<16x32xf32>
    %1026 = vector.broadcast %1020 : f32 to vector<16x32xf32>
    %1027 = arith.mulf %1026, %1025 : vector<16x32xf32>
    %1028 = arith.addf %1019, %1027 : vector<16x32xf32>
    %c1_208 = arith.constant 1 : index
    %1029 = memref.load %arg7[%c1_208] : memref<9xf32, #tpu.memory_space<smem>>
    %c1_i32_209 = arith.constant 1 : i32
    %1030 = tpu.dynamic_rotate %37 by %c1_i32_209 dim 0 : vector<16x32xf32>, i32 -> vector<16x32xf32>
    %cst_210 = arith.constant 0.000000e+00 : f32
    %1031 = vector.broadcast %cst_210 : f32 to vector<16x32xf32>
    %1032 = arith.select %3, %1030, %1031 : vector<16x32xi1>, vector<16x32xf32>
    %1033 = vector.broadcast %1029 : f32 to vector<16x32xf32>
    %1034 = arith.mulf %1033, %1032 : vector<16x32xf32>
    %1035 = arith.addf %1028, %1034 : vector<16x32xf32>
    %c2_211 = arith.constant 2 : index
    %1036 = memref.load %arg7[%c2_211] : memref<9xf32, #tpu.memory_space<smem>>
    %c1_i32_212 = arith.constant 1 : i32
    %1037 = tpu.dynamic_rotate %37 by %c1_i32_212 dim 0 : vector<16x32xf32>, i32 -> vector<16x32xf32>
    %c31_i32_213 = arith.constant 31 : i32
    %1038 = tpu.dynamic_rotate %1037 by %c31_i32_213 dim 1 : vector<16x32xf32>, i32 -> vector<16x32xf32>
    %1039 = arith.andi %3, %15 : vector<16x32xi1>
    %cst_214 = arith.constant 0.000000e+00 : f32
    %1040 = vector.broadcast %cst_214 : f32 to vector<16x32xf32>
    %1041 = arith.select %1039, %1038, %1040 : vector<16x32xi1>, vector<16x32xf32>
    %1042 = vector.broadcast %1036 : f32 to vector<16x32xf32>
    %1043 = arith.mulf %1042, %1041 : vector<16x32xf32>
    %1044 = arith.addf %1035, %1043 : vector<16x32xf32>
    %c3_215 = arith.constant 3 : index
    %1045 = memref.load %arg7[%c3_215] : memref<9xf32, #tpu.memory_space<smem>>
    %c1_i32_216 = arith.constant 1 : i32
    %1046 = tpu.dynamic_rotate %37 by %c1_i32_216 dim 1 : vector<16x32xf32>, i32 -> vector<16x32xf32>
    %cst_217 = arith.constant 0.000000e+00 : f32
    %1047 = vector.broadcast %cst_217 : f32 to vector<16x32xf32>
    %1048 = arith.select %12, %1046, %1047 : vector<16x32xi1>, vector<16x32xf32>
    %1049 = vector.broadcast %1045 : f32 to vector<16x32xf32>
    %1050 = arith.mulf %1049, %1048 : vector<16x32xf32>
    %1051 = arith.addf %1044, %1050 : vector<16x32xf32>
    %c5_218 = arith.constant 5 : index
    %1052 = memref.load %arg7[%c5_218] : memref<9xf32, #tpu.memory_space<smem>>
    %c31_i32_219 = arith.constant 31 : i32
    %1053 = tpu.dynamic_rotate %37 by %c31_i32_219 dim 1 : vector<16x32xf32>, i32 -> vector<16x32xf32>
    %cst_220 = arith.constant 0.000000e+00 : f32
    %1054 = vector.broadcast %cst_220 : f32 to vector<16x32xf32>
    %1055 = arith.select %15, %1053, %1054 : vector<16x32xi1>, vector<16x32xf32>
    %1056 = vector.broadcast %1052 : f32 to vector<16x32xf32>
    %1057 = arith.mulf %1056, %1055 : vector<16x32xf32>
    %1058 = arith.addf %1051, %1057 : vector<16x32xf32>
    %c6_221 = arith.constant 6 : index
    %1059 = memref.load %arg7[%c6_221] : memref<9xf32, #tpu.memory_space<smem>>
    %c15_i32_222 = arith.constant 15 : i32
    %1060 = tpu.dynamic_rotate %37 by %c15_i32_222 dim 0 : vector<16x32xf32>, i32 -> vector<16x32xf32>
    %c1_i32_223 = arith.constant 1 : i32
    %1061 = tpu.dynamic_rotate %1060 by %c1_i32_223 dim 1 : vector<16x32xf32>, i32 -> vector<16x32xf32>
    %1062 = arith.andi %5, %12 : vector<16x32xi1>
    %cst_224 = arith.constant 0.000000e+00 : f32
    %1063 = vector.broadcast %cst_224 : f32 to vector<16x32xf32>
    %1064 = arith.select %1062, %1061, %1063 : vector<16x32xi1>, vector<16x32xf32>
    %1065 = vector.broadcast %1059 : f32 to vector<16x32xf32>
    %1066 = arith.mulf %1065, %1064 : vector<16x32xf32>
    %1067 = arith.addf %1058, %1066 : vector<16x32xf32>
    %c7_225 = arith.constant 7 : index
    %1068 = memref.load %arg7[%c7_225] : memref<9xf32, #tpu.memory_space<smem>>
    %c15_i32_226 = arith.constant 15 : i32
    %1069 = tpu.dynamic_rotate %37 by %c15_i32_226 dim 0 : vector<16x32xf32>, i32 -> vector<16x32xf32>
    %cst_227 = arith.constant 0.000000e+00 : f32
    %1070 = vector.broadcast %cst_227 : f32 to vector<16x32xf32>
    %1071 = arith.select %5, %1069, %1070 : vector<16x32xi1>, vector<16x32xf32>
    %1072 = vector.broadcast %1068 : f32 to vector<16x32xf32>
    %1073 = arith.mulf %1072, %1071 : vector<16x32xf32>
    %1074 = arith.addf %1067, %1073 : vector<16x32xf32>
    %c8_228 = arith.constant 8 : index
    %1075 = memref.load %arg7[%c8_228] : memref<9xf32, #tpu.memory_space<smem>>
    %c15_i32_229 = arith.constant 15 : i32
    %1076 = tpu.dynamic_rotate %37 by %c15_i32_229 dim 0 : vector<16x32xf32>, i32 -> vector<16x32xf32>
    %c31_i32_230 = arith.constant 31 : i32
    %1077 = tpu.dynamic_rotate %1076 by %c31_i32_230 dim 1 : vector<16x32xf32>, i32 -> vector<16x32xf32>
    %1078 = arith.andi %5, %15 : vector<16x32xi1>
    %cst_231 = arith.constant 0.000000e+00 : f32
    %1079 = vector.broadcast %cst_231 : f32 to vector<16x32xf32>
    %1080 = arith.select %1078, %1077, %1079 : vector<16x32xi1>, vector<16x32xf32>
    %1081 = vector.broadcast %1075 : f32 to vector<16x32xf32>
    %1082 = arith.mulf %1081, %1080 : vector<16x32xf32>
    %1083 = arith.addf %1074, %1082 : vector<16x32xf32>
    %c4_232 = arith.constant 4 : index
    %1084 = memref.load %arg8[%c4_232] : memref<9xf32, #tpu.memory_space<smem>>
    %1085 = vector.broadcast %1084 : f32 to vector<16x32xf32>
    %1086 = arith.mulf %1085, %1083 : vector<16x32xf32>
    %c0_233 = arith.constant 0 : index
    %1087 = memref.load %arg8[%c0_233] : memref<9xf32, #tpu.memory_space<smem>>
    %c1_i32_234 = arith.constant 1 : i32
    %1088 = tpu.dynamic_rotate %1083 by %c1_i32_234 dim 0 : vector<16x32xf32>, i32 -> vector<16x32xf32>
    %c1_i32_235 = arith.constant 1 : i32
    %1089 = tpu.dynamic_rotate %1088 by %c1_i32_235 dim 1 : vector<16x32xf32>, i32 -> vector<16x32xf32>
    %1090 = arith.andi %3, %12 : vector<16x32xi1>
    %cst_236 = arith.constant 0.000000e+00 : f32
    %1091 = vector.broadcast %cst_236 : f32 to vector<16x32xf32>
    %1092 = arith.select %1090, %1089, %1091 : vector<16x32xi1>, vector<16x32xf32>
    %1093 = vector.broadcast %1087 : f32 to vector<16x32xf32>
    %1094 = arith.mulf %1093, %1092 : vector<16x32xf32>
    %1095 = arith.addf %1086, %1094 : vector<16x32xf32>
    %c1_237 = arith.constant 1 : index
    %1096 = memref.load %arg8[%c1_237] : memref<9xf32, #tpu.memory_space<smem>>
    %c1_i32_238 = arith.constant 1 : i32
    %1097 = tpu.dynamic_rotate %1083 by %c1_i32_238 dim 0 : vector<16x32xf32>, i32 -> vector<16x32xf32>
    %cst_239 = arith.constant 0.000000e+00 : f32
    %1098 = vector.broadcast %cst_239 : f32 to vector<16x32xf32>
    %1099 = arith.select %3, %1097, %1098 : vector<16x32xi1>, vector<16x32xf32>
    %1100 = vector.broadcast %1096 : f32 to vector<16x32xf32>
    %1101 = arith.mulf %1100, %1099 : vector<16x32xf32>
    %1102 = arith.addf %1095, %1101 : vector<16x32xf32>
    %c2_240 = arith.constant 2 : index
    %1103 = memref.load %arg8[%c2_240] : memref<9xf32, #tpu.memory_space<smem>>
    %c1_i32_241 = arith.constant 1 : i32
    %1104 = tpu.dynamic_rotate %1083 by %c1_i32_241 dim 0 : vector<16x32xf32>, i32 -> vector<16x32xf32>
    %c31_i32_242 = arith.constant 31 : i32
    %1105 = tpu.dynamic_rotate %1104 by %c31_i32_242 dim 1 : vector<16x32xf32>, i32 -> vector<16x32xf32>
    %1106 = arith.andi %3, %15 : vector<16x32xi1>
    %cst_243 = arith.constant 0.000000e+00 : f32
    %1107 = vector.broadcast %cst_243 : f32 to vector<16x32xf32>
    %1108 = arith.select %1106, %1105, %1107 : vector<16x32xi1>, vector<16x32xf32>
    %1109 = vector.broadcast %1103 : f32 to vector<16x32xf32>
    %1110 = arith.mulf %1109, %1108 : vector<16x32xf32>
    %1111 = arith.addf %1102, %1110 : vector<16x32xf32>
    %c3_244 = arith.constant 3 : index
    %1112 = memref.load %arg8[%c3_244] : memref<9xf32, #tpu.memory_space<smem>>
    %c1_i32_245 = arith.constant 1 : i32
    %1113 = tpu.dynamic_rotate %1083 by %c1_i32_245 dim 1 : vector<16x32xf32>, i32 -> vector<16x32xf32>
    %cst_246 = arith.constant 0.000000e+00 : f32
    %1114 = vector.broadcast %cst_246 : f32 to vector<16x32xf32>
    %1115 = arith.select %12, %1113, %1114 : vector<16x32xi1>, vector<16x32xf32>
    %1116 = vector.broadcast %1112 : f32 to vector<16x32xf32>
    %1117 = arith.mulf %1116, %1115 : vector<16x32xf32>
    %1118 = arith.addf %1111, %1117 : vector<16x32xf32>
    %c5_247 = arith.constant 5 : index
    %1119 = memref.load %arg8[%c5_247] : memref<9xf32, #tpu.memory_space<smem>>
    %c31_i32_248 = arith.constant 31 : i32
    %1120 = tpu.dynamic_rotate %1083 by %c31_i32_248 dim 1 : vector<16x32xf32>, i32 -> vector<16x32xf32>
    %cst_249 = arith.constant 0.000000e+00 : f32
    %1121 = vector.broadcast %cst_249 : f32 to vector<16x32xf32>
    %1122 = arith.select %15, %1120, %1121 : vector<16x32xi1>, vector<16x32xf32>
    %1123 = vector.broadcast %1119 : f32 to vector<16x32xf32>
    %1124 = arith.mulf %1123, %1122 : vector<16x32xf32>
    %1125 = arith.addf %1118, %1124 : vector<16x32xf32>
    %c6_250 = arith.constant 6 : index
    %1126 = memref.load %arg8[%c6_250] : memref<9xf32, #tpu.memory_space<smem>>
    %c15_i32_251 = arith.constant 15 : i32
    %1127 = tpu.dynamic_rotate %1083 by %c15_i32_251 dim 0 : vector<16x32xf32>, i32 -> vector<16x32xf32>
    %c1_i32_252 = arith.constant 1 : i32
    %1128 = tpu.dynamic_rotate %1127 by %c1_i32_252 dim 1 : vector<16x32xf32>, i32 -> vector<16x32xf32>
    %1129 = arith.andi %5, %12 : vector<16x32xi1>
    %cst_253 = arith.constant 0.000000e+00 : f32
    %1130 = vector.broadcast %cst_253 : f32 to vector<16x32xf32>
    %1131 = arith.select %1129, %1128, %1130 : vector<16x32xi1>, vector<16x32xf32>
    %1132 = vector.broadcast %1126 : f32 to vector<16x32xf32>
    %1133 = arith.mulf %1132, %1131 : vector<16x32xf32>
    %1134 = arith.addf %1125, %1133 : vector<16x32xf32>
    %c7_254 = arith.constant 7 : index
    %1135 = memref.load %arg8[%c7_254] : memref<9xf32, #tpu.memory_space<smem>>
    %c15_i32_255 = arith.constant 15 : i32
    %1136 = tpu.dynamic_rotate %1083 by %c15_i32_255 dim 0 : vector<16x32xf32>, i32 -> vector<16x32xf32>
    %cst_256 = arith.constant 0.000000e+00 : f32
    %1137 = vector.broadcast %cst_256 : f32 to vector<16x32xf32>
    %1138 = arith.select %5, %1136, %1137 : vector<16x32xi1>, vector<16x32xf32>
    %1139 = vector.broadcast %1135 : f32 to vector<16x32xf32>
    %1140 = arith.mulf %1139, %1138 : vector<16x32xf32>
    %1141 = arith.addf %1134, %1140 : vector<16x32xf32>
    %c8_257 = arith.constant 8 : index
    %1142 = memref.load %arg8[%c8_257] : memref<9xf32, #tpu.memory_space<smem>>
    %c15_i32_258 = arith.constant 15 : i32
    %1143 = tpu.dynamic_rotate %1083 by %c15_i32_258 dim 0 : vector<16x32xf32>, i32 -> vector<16x32xf32>
    %c31_i32_259 = arith.constant 31 : i32
    %1144 = tpu.dynamic_rotate %1143 by %c31_i32_259 dim 1 : vector<16x32xf32>, i32 -> vector<16x32xf32>
    %1145 = arith.andi %5, %15 : vector<16x32xi1>
    %cst_260 = arith.constant 0.000000e+00 : f32
    %1146 = vector.broadcast %cst_260 : f32 to vector<16x32xf32>
    %1147 = arith.select %1145, %1144, %1146 : vector<16x32xi1>, vector<16x32xf32>
    %1148 = vector.broadcast %1142 : f32 to vector<16x32xf32>
    %1149 = arith.mulf %1148, %1147 : vector<16x32xf32>
    %1150 = arith.addf %1141, %1149 : vector<16x32xf32>
    %1151 = arith.negf %1150 : vector<16x32xf32>
    %1152 = math.exp %1151 : vector<16x32xf32>
    %cst_261 = arith.constant 1.000000e+00 : f32
    %1153 = vector.broadcast %cst_261 : f32 to vector<16x32xf32>
    %1154 = arith.addf %1153, %1152 : vector<16x32xf32>
    %1155 = arith.divf %1153, %1154 : vector<16x32xf32>
    %1156 = arith.mulf %865, %1016 : vector<16x32xf32>
    %c0_262 = arith.constant 0 : index
    %c0_263 = arith.constant 0 : index
    %c0_264 = arith.constant 0 : index
    %1157 = vector.load %arg1[%c0_262, %c0_263, %c0_264] : memref<4x16x32xf32, #tpu.memory_space<vmem>>, vector<1x16x32xf32>
    %1158 = vector.shape_cast %1157 : vector<1x16x32xf32> to vector<16x32xf32>
    %1159 = arith.addf %1156, %1158 : vector<16x32xf32>
    %c0_265 = arith.constant 0 : index
    %c0_266 = arith.constant 0 : index
    %c0_267 = arith.constant 0 : index
    %1160 = vector.load %arg9[%c0_265, %c0_266, %c0_267] : memref<4x16x32xf32, #tpu.memory_space<vmem>>, vector<1x16x32xf32>
    %1161 = vector.shape_cast %1160 : vector<1x16x32xf32> to vector<16x32xf32>
    %1162 = vector.shape_cast %1159 : vector<16x32xf32> to vector<1x16x32xf32>
    tpu.vector_store %arg9[%c0_265, %c0_266, %c0_267], %1162 {strides = array<i32>} : memref<4x16x32xf32, #tpu.memory_space<vmem>>, vector<1x16x32xf32>,
    %1163 = arith.mulf %865, %1155 : vector<16x32xf32>
    %c0_268 = arith.constant 0 : index
    %c0_269 = arith.constant 0 : index
    %c0_270 = arith.constant 0 : index
    %1164 = vector.load %arg2[%c0_268, %c0_269, %c0_270] : memref<4x16x32xf32, #tpu.memory_space<vmem>>, vector<1x16x32xf32>
    %1165 = vector.shape_cast %1164 : vector<1x16x32xf32> to vector<16x32xf32>
    %1166 = arith.addf %1163, %1165 : vector<16x32xf32>
    %c0_271 = arith.constant 0 : index
    %c0_272 = arith.constant 0 : index
    %c0_273 = arith.constant 0 : index
    %1167 = vector.load %arg10[%c0_271, %c0_272, %c0_273] : memref<4x16x32xf32, #tpu.memory_space<vmem>>, vector<1x16x32xf32>
    %1168 = vector.shape_cast %1167 : vector<1x16x32xf32> to vector<16x32xf32>
    %1169 = vector.shape_cast %1166 : vector<16x32xf32> to vector<1x16x32xf32>
    tpu.vector_store %arg10[%c0_271, %c0_272, %c0_273], %1169 {strides = array<i32>} : memref<4x16x32xf32, #tpu.memory_space<vmem>>, vector<1x16x32xf32>,
    %1170 = arith.mulf %869, %1016 : vector<16x32xf32>
    %c1_274 = arith.constant 1 : index
    %c0_275 = arith.constant 0 : index
    %c0_276 = arith.constant 0 : index
    %1171 = vector.load %arg1[%c1_274, %c0_275, %c0_276] : memref<4x16x32xf32, #tpu.memory_space<vmem>>, vector<1x16x32xf32>
    %1172 = vector.shape_cast %1171 : vector<1x16x32xf32> to vector<16x32xf32>
    %1173 = arith.addf %1170, %1172 : vector<16x32xf32>
    %c1_277 = arith.constant 1 : index
    %c0_278 = arith.constant 0 : index
    %c0_279 = arith.constant 0 : index
    %1174 = vector.load %arg9[%c1_277, %c0_278, %c0_279] : memref<4x16x32xf32, #tpu.memory_space<vmem>>, vector<1x16x32xf32>
    %1175 = vector.shape_cast %1174 : vector<1x16x32xf32> to vector<16x32xf32>
    %1176 = vector.shape_cast %1173 : vector<16x32xf32> to vector<1x16x32xf32>
    tpu.vector_store %arg9[%c1_277, %c0_278, %c0_279], %1176 {strides = array<i32>} : memref<4x16x32xf32, #tpu.memory_space<vmem>>, vector<1x16x32xf32>,
    %1177 = arith.mulf %869, %1155 : vector<16x32xf32>
    %c1_280 = arith.constant 1 : index
    %c0_281 = arith.constant 0 : index
    %c0_282 = arith.constant 0 : index
    %1178 = vector.load %arg2[%c1_280, %c0_281, %c0_282] : memref<4x16x32xf32, #tpu.memory_space<vmem>>, vector<1x16x32xf32>
    %1179 = vector.shape_cast %1178 : vector<1x16x32xf32> to vector<16x32xf32>
    %1180 = arith.addf %1177, %1179 : vector<16x32xf32>
    %c1_283 = arith.constant 1 : index
    %c0_284 = arith.constant 0 : index
    %c0_285 = arith.constant 0 : index
    %1181 = vector.load %arg10[%c1_283, %c0_284, %c0_285] : memref<4x16x32xf32, #tpu.memory_space<vmem>>, vector<1x16x32xf32>
    %1182 = vector.shape_cast %1181 : vector<1x16x32xf32> to vector<16x32xf32>
    %1183 = vector.shape_cast %1180 : vector<16x32xf32> to vector<1x16x32xf32>
    tpu.vector_store %arg10[%c1_283, %c0_284, %c0_285], %1183 {strides = array<i32>} : memref<4x16x32xf32, #tpu.memory_space<vmem>>, vector<1x16x32xf32>,
    %1184 = arith.mulf %873, %1016 : vector<16x32xf32>
    %c2_286 = arith.constant 2 : index
    %c0_287 = arith.constant 0 : index
    %c0_288 = arith.constant 0 : index
    %1185 = vector.load %arg1[%c2_286, %c0_287, %c0_288] : memref<4x16x32xf32, #tpu.memory_space<vmem>>, vector<1x16x32xf32>
    %1186 = vector.shape_cast %1185 : vector<1x16x32xf32> to vector<16x32xf32>
    %1187 = arith.addf %1184, %1186 : vector<16x32xf32>
    %c2_289 = arith.constant 2 : index
    %c0_290 = arith.constant 0 : index
    %c0_291 = arith.constant 0 : index
    %1188 = vector.load %arg9[%c2_289, %c0_290, %c0_291] : memref<4x16x32xf32, #tpu.memory_space<vmem>>, vector<1x16x32xf32>
    %1189 = vector.shape_cast %1188 : vector<1x16x32xf32> to vector<16x32xf32>
    %1190 = vector.shape_cast %1187 : vector<16x32xf32> to vector<1x16x32xf32>
    tpu.vector_store %arg9[%c2_289, %c0_290, %c0_291], %1190 {strides = array<i32>} : memref<4x16x32xf32, #tpu.memory_space<vmem>>, vector<1x16x32xf32>,
    %1191 = arith.mulf %873, %1155 : vector<16x32xf32>
    %c2_292 = arith.constant 2 : index
    %c0_293 = arith.constant 0 : index
    %c0_294 = arith.constant 0 : index
    %1192 = vector.load %arg2[%c2_292, %c0_293, %c0_294] : memref<4x16x32xf32, #tpu.memory_space<vmem>>, vector<1x16x32xf32>
    %1193 = vector.shape_cast %1192 : vector<1x16x32xf32> to vector<16x32xf32>
    %1194 = arith.addf %1191, %1193 : vector<16x32xf32>
    %c2_295 = arith.constant 2 : index
    %c0_296 = arith.constant 0 : index
    %c0_297 = arith.constant 0 : index
    %1195 = vector.load %arg10[%c2_295, %c0_296, %c0_297] : memref<4x16x32xf32, #tpu.memory_space<vmem>>, vector<1x16x32xf32>
    %1196 = vector.shape_cast %1195 : vector<1x16x32xf32> to vector<16x32xf32>
    %1197 = vector.shape_cast %1194 : vector<16x32xf32> to vector<1x16x32xf32>
    tpu.vector_store %arg10[%c2_295, %c0_296, %c0_297], %1197 {strides = array<i32>} : memref<4x16x32xf32, #tpu.memory_space<vmem>>, vector<1x16x32xf32>,
    %1198 = arith.mulf %877, %1016 : vector<16x32xf32>
    %c3_298 = arith.constant 3 : index
    %c0_299 = arith.constant 0 : index
    %c0_300 = arith.constant 0 : index
    %1199 = vector.load %arg1[%c3_298, %c0_299, %c0_300] : memref<4x16x32xf32, #tpu.memory_space<vmem>>, vector<1x16x32xf32>
    %1200 = vector.shape_cast %1199 : vector<1x16x32xf32> to vector<16x32xf32>
    %1201 = arith.addf %1198, %1200 : vector<16x32xf32>
    %c3_301 = arith.constant 3 : index
    %c0_302 = arith.constant 0 : index
    %c0_303 = arith.constant 0 : index
    %1202 = vector.load %arg9[%c3_301, %c0_302, %c0_303] : memref<4x16x32xf32, #tpu.memory_space<vmem>>, vector<1x16x32xf32>
    %1203 = vector.shape_cast %1202 : vector<1x16x32xf32> to vector<16x32xf32>
    %1204 = vector.shape_cast %1201 : vector<16x32xf32> to vector<1x16x32xf32>
    tpu.vector_store %arg9[%c3_301, %c0_302, %c0_303], %1204 {strides = array<i32>} : memref<4x16x32xf32, #tpu.memory_space<vmem>>, vector<1x16x32xf32>,
    %1205 = arith.mulf %877, %1155 : vector<16x32xf32>
    %c3_304 = arith.constant 3 : index
    %c0_305 = arith.constant 0 : index
    %c0_306 = arith.constant 0 : index
    %1206 = vector.load %arg2[%c3_304, %c0_305, %c0_306] : memref<4x16x32xf32, #tpu.memory_space<vmem>>, vector<1x16x32xf32>
    %1207 = vector.shape_cast %1206 : vector<1x16x32xf32> to vector<16x32xf32>
    %1208 = arith.addf %1205, %1207 : vector<16x32xf32>
    %c3_307 = arith.constant 3 : index
    %c0_308 = arith.constant 0 : index
    %c0_309 = arith.constant 0 : index
    %1209 = vector.load %arg10[%c3_307, %c0_308, %c0_309] : memref<4x16x32xf32, #tpu.memory_space<vmem>>, vector<1x16x32xf32>
    %1210 = vector.shape_cast %1209 : vector<1x16x32xf32> to vector<16x32xf32>
    %1211 = vector.shape_cast %1208 : vector<16x32xf32> to vector<1x16x32xf32>
    tpu.vector_store %arg10[%c3_307, %c0_308, %c0_309], %1211 {strides = array<i32>} : memref<4x16x32xf32, #tpu.memory_space<vmem>>, vector<1x16x32xf32>,
    return
  }
  func.func @transform_0(%arg0: i32) -> (i32, i32, i32) {
    %c0_i32 = arith.constant 0 : i32
    %c0_i32_0 = arith.constant 0 : i32
    %c0_i32_1 = arith.constant 0 : i32
    %c0_i32_2 = arith.constant 0 : i32
    return %c0_i32, %c0_i32_0, %c0_i32_1 : i32, i32, i32
  }
  func.func @transform_1(%arg0: i32) -> (i32, i32, i32) {
    %c0_i32 = arith.constant 0 : i32
    %c0_i32_0 = arith.constant 0 : i32
    %c0_i32_1 = arith.constant 0 : i32
    %c0_i32_2 = arith.constant 0 : i32
    return %c0_i32, %c0_i32_0, %c0_i32_1 : i32, i32, i32
  }
  func.func @transform_2(%arg0: i32) -> i32 {
    %c0_i32 = arith.constant 0 : i32
    %c0_i32_0 = arith.constant 0 : i32
    return %c0_i32 : i32
  }
  func.func @transform_3(%arg0: i32) -> i32 {
    %c0_i32 = arith.constant 0 : i32
    %c0_i32_0 = arith.constant 0 : i32
    return %c0_i32 : i32
  }
  func.func @transform_4(%arg0: i32) -> i32 {
    %c0_i32 = arith.constant 0 : i32
    %c0_i32_0 = arith.constant 0 : i32
    return %c0_i32 : i32
  }
  func.func @transform_5(%arg0: i32) -> i32 {
    %c0_i32 = arith.constant 0 : i32
    %c0_i32_0 = arith.constant 0 : i32
    return %c0_i32 : i32
  }
  func.func @transform_6(%arg0: i32) -> i32 {
    %c0_i32 = arith.constant 0 : i32
    %c0_i32_0 = arith.constant 0 : i32
    return %c0_i32 : i32
  }
  func.func @transform_7(%arg0: i32) -> i32 {
    %c0_i32 = arith.constant 0 : i32
    %c0_i32_0 = arith.constant 0 : i32
    return %c0_i32 : i32
  }
  func.func @transform_8(%arg0: i32) -> (i32, i32, i32) {
    %c0_i32 = arith.constant 0 : i32
    %c0_i32_0 = arith.constant 0 : i32
    %c0_i32_1 = arith.constant 0 : i32
    %c0_i32_2 = arith.constant 0 : i32
    return %c0_i32, %c0_i32_0, %c0_i32_1 : i32, i32, i32
  }
  func.func @transform_9(%arg0: i32) -> (i32, i32, i32) {
    %c0_i32 = arith.constant 0 : i32
    %c0_i32_0 = arith.constant 0 : i32
    %c0_i32_1 = arith.constant 0 : i32
    %c0_i32_2 = arith.constant 0 : i32
    return %c0_i32, %c0_i32_0, %c0_i32_1 : i32, i32, i32
  }
}

</mosaic_0001>

<llo_original>
// kernel: cmi_sa_pallas.1
$region0: #{cmi_sa_pallas.1}
  #allocation0 [shape = 'u32[]', space=smem, size = 0x4, offset = 0x4, fixed_abs, tag = 'smem constant byte address 0x4 - core index']
  #allocation1 [shape = 'u32[144,128]{1,0:T(1,128)}', space=vmem, size = 0x12000, scoped, tag = 'internal scratch']
  %s0 = inlined_call_operand.vmem [shape: f32[4,16,32], index: 0, kind: input, shape index: {}]
  %s1 = inlined_call_operand.vmem [shape: f32[4,16,32], index: 1, kind: input, shape index: {}]
  %s2 = inlined_call_operand.vmem [shape: f32[32], index: 2, kind: input, shape index: {}]
  %s3 = inlined_call_operand.vmem [shape: f32[144], index: 3, kind: input, shape index: {}]
  %s4 = inlined_call_operand.vmem [shape: f32[9], index: 4, kind: input, shape index: {}]
  %s5 = inlined_call_operand.vmem [shape: f32[9], index: 5, kind: input, shape index: {}]
  %s6 = inlined_call_operand.vmem [shape: f32[9], index: 6, kind: input, shape index: {}]
  %s7 = inlined_call_operand.vmem [shape: f32[9], index: 7, kind: input, shape index: {}]
  %s8 = inlined_call_operand.vmem [shape: f32[4,16,32], index: 8, kind: output, shape index: {0}]
  %s9 = inlined_call_operand.vmem [shape: f32[4,16,32], index: 9, kind: output, shape index: {1}]
  %10 = xla_tuple %s8, %s9
  %s11 = sld [smem:[#allocation0]]
  $region74: #{cmi_sa_pallas.1} parent=0
    _
  %s13 = ssub.s32 1, %s11
  %s14 = scalar_select 0, %s13, %s11
  $region1: #{cmi_sa_pallas.1} parent=0
    #allocation2 [shape = 'u8[512]{0}', space=smem, size = 0x200, scoped, tag = 'input window, operand 2, single buffered']
    #allocation3 [shape = 's32[1]{0}', space=sflag, size = 0x4, scoped, tag = 'scoped memory for cmi_sa_pallas.1']
    #allocation4 [shape = 'u8[1024]{0}', space=smem, size = 0x400, scoped, tag = 'input window, operand 3, single buffered']
    #allocation5 [shape = 's32[1]{0}', space=sflag, size = 0x4, scoped, tag = 'scoped memory for cmi_sa_pallas.1']
    #allocation6 [shape = 'u8[512]{0}', space=smem, size = 0x200, scoped, tag = 'input window, operand 4, single buffered']
    #allocation7 [shape = 'u8[512]{0}', space=smem, size = 0x200, scoped, tag = 'input window, operand 5, single buffered']
    #allocation8 [shape = 's32[1]{0}', space=sflag, size = 0x4, scoped, tag = 'scoped memory for cmi_sa_pallas.1']
    #allocation9 [shape = 'u8[512]{0}', space=smem, size = 0x200, scoped, tag = 'input window, operand 6, single buffered']
    #allocation10 [shape = 'u8[512]{0}', space=smem, size = 0x200, scoped, tag = 'input window, operand 7, single buffered']
    #allocation11 [shape = 's32[1]{0}', space=sflag, size = 0x4, scoped, tag = 'scoped memory for cmi_sa_pallas.1']
    %15 = vsyncpa [#allocation3], 0
    %16 = vsyncpa [#allocation5], 0
    %17 = vsyncpa [#allocation8], 0
    %18 = vsyncpa [#allocation11], 0
    // Predicated region
    $region2: #{cmi_sa_pallas.1} parent=1 // pred_check
      _
    $region3: #{cmi_sa_pallas.1} parent=1 // pred_check_branch
      %20 = sbr.rel (0) target = $region5
    $region4: #{cmi_sa_pallas.1} parent=1 // pred_region
      _
    $region5: #{cmi_sa_pallas.1} parent=1 // pred_fallthru
      _
    // Predicated region
    $region6: #{cmi_sa_pallas.1} parent=1 // pred_check
      _
    $region7: #{cmi_sa_pallas.1} parent=1 // pred_check_branch
      %22 = sbr.rel (0) target = $region9
    $region8: #{cmi_sa_pallas.1} parent=1 // pred_region
      _
    $region9: #{cmi_sa_pallas.1} parent=1 // pred_fallthru
      _
    // Predicated region
    $region10: #{cmi_sa_pallas.1} parent=1 // pred_check
      _
    $region11: #{cmi_sa_pallas.1} parent=1 // pred_check_branch
      %24 = sbr.rel (0) target = $region13
    $region12: #{cmi_sa_pallas.1} parent=1 // pred_region
      %s26 = ssub.s32 16, 16
      %27 = vsyncadd [#allocation3], %s26
      %s29 = sshll.u32 %s2, 4
      %s30 = int_to_ptr.vmem [resolvable:$true] %s29
      %32 = dma.vmem_to_smem %s30, 16, [#allocation2], [#allocation3]
    $region13: #{cmi_sa_pallas.1} parent=1 // pred_fallthru
      _
    // Predicated region
    $region14: #{cmi_sa_pallas.1} parent=1 // pred_check
      _
    $region15: #{cmi_sa_pallas.1} parent=1 // pred_check_branch
      %34 = sbr.rel (0) target = $region17
    $region16: #{cmi_sa_pallas.1} parent=1 // pred_region
      %s36 = ssub.s32 32, 32
      %37 = vsyncadd [#allocation5], %s36
      %s39 = sshll.u32 %s3, 4
      %s40 = int_to_ptr.vmem [resolvable:$true] %s39
      %42 = dma.vmem_to_smem %s40, 32, [#allocation4], [#allocation5]
    $region17: #{cmi_sa_pallas.1} parent=1 // pred_fallthru
      _
    // Predicated region
    $region18: #{cmi_sa_pallas.1} parent=1 // pred_check
      _
    $region19: #{cmi_sa_pallas.1} parent=1 // pred_check_branch
      %44 = sbr.rel (0) target = $region21
    $region20: #{cmi_sa_pallas.1} parent=1 // pred_region
      %s46 = ssub.s32 16, 16
      %47 = vsyncadd [#allocation5], %s46
      %s49 = sshll.u32 %s4, 4
      %s50 = int_to_ptr.vmem [resolvable:$true] %s49
      %52 = dma.vmem_to_smem %s50, 16, [#allocation6], [#allocation5]
    $region21: #{cmi_sa_pallas.1} parent=1 // pred_fallthru
      _
    // Predicated region
    $region22: #{cmi_sa_pallas.1} parent=1 // pred_check
      _
    $region23: #{cmi_sa_pallas.1} parent=1 // pred_check_branch
      %54 = sbr.rel (0) target = $region25
    $region24: #{cmi_sa_pallas.1} parent=1 // pred_region
      %s56 = ssub.s32 16, 16
      %57 = vsyncadd [#allocation8], %s56
      %s59 = sshll.u32 %s5, 4
      %s60 = int_to_ptr.vmem [resolvable:$true] %s59
      %62 = dma.vmem_to_smem %s60, 16, [#allocation7], [#allocation8]
    $region25: #{cmi_sa_pallas.1} parent=1 // pred_fallthru
      _
    // Predicated region
    $region26: #{cmi_sa_pallas.1} parent=1 // pred_check
      _
    $region27: #{cmi_sa_pallas.1} parent=1 // pred_check_branch
      %64 = sbr.rel (0) target = $region29
    $region28: #{cmi_sa_pallas.1} parent=1 // pred_region
      %s66 = ssub.s32 16, 16
      %67 = vsyncadd [#allocation8], %s66
      %s69 = sshll.u32 %s6, 4
      %s70 = int_to_ptr.vmem [resolvable:$true] %s69
      %72 = dma.vmem_to_smem %s70, 16, [#allocation9], [#allocation8]
    $region29: #{cmi_sa_pallas.1} parent=1 // pred_fallthru
      _
    // Predicated region
    $region30: #{cmi_sa_pallas.1} parent=1 // pred_check
      _
    $region31: #{cmi_sa_pallas.1} parent=1 // pred_check_branch
      %74 = sbr.rel (0) target = $region33
    $region32: #{cmi_sa_pallas.1} parent=1 // pred_region
      %s76 = ssub.s32 16, 16
      %77 = vsyncadd [#allocation11], %s76
      %s79 = sshll.u32 %s7, 4
      %s80 = int_to_ptr.vmem [resolvable:$true] %s79
      %82 = dma.vmem_to_smem %s80, 16, [#allocation10], [#allocation11]
    $region33: #{cmi_sa_pallas.1} parent=1 // pred_fallthru
      _
    // Predicated region
    $region34: #{cmi_sa_pallas.1} parent=1 // pred_check
      _
    $region35: #{cmi_sa_pallas.1} parent=1 // pred_check_branch
      %84 = sbr.rel (0) target = $region37
    $region36: #{cmi_sa_pallas.1} parent=1 // pred_region
      %85 = dma.done [#allocation3], 16
    $region37: #{cmi_sa_pallas.1} parent=1 // pred_fallthru
      _
    // Predicated region
    $region38: #{cmi_sa_pallas.1} parent=1 // pred_check
      _
    $region39: #{cmi_sa_pallas.1} parent=1 // pred_check_branch
      %87 = sbr.rel (0) target = $region41
    $region40: #{cmi_sa_pallas.1} parent=1 // pred_region
      %88 = dma.done [#allocation5], 32
    $region41: #{cmi_sa_pallas.1} parent=1 // pred_fallthru
      _
    // Predicated region
    $region42: #{cmi_sa_pallas.1} parent=1 // pred_check
      _
    $region43: #{cmi_sa_pallas.1} parent=1 // pred_check_branch
      %90 = sbr.rel (0) target = $region45
    $region44: #{cmi_sa_pallas.1} parent=1 // pred_region
      %91 = dma.done [#allocation5], 16
    $region45: #{cmi_sa_pallas.1} parent=1 // pred_fallthru
      _
    // Predicated region
    $region46: #{cmi_sa_pallas.1} parent=1 // pred_check
      _
    $region47: #{cmi_sa_pallas.1} parent=1 // pred_check_branch
      %93 = sbr.rel (0) target = $region49
    $region48: #{cmi_sa_pallas.1} parent=1 // pred_region
      %94 = dma.done [#allocation8], 16
    $region49: #{cmi_sa_pallas.1} parent=1 // pred_fallthru
      _
    // Predicated region
    $region50: #{cmi_sa_pallas.1} parent=1 // pred_check
      _
    $region51: #{cmi_sa_pallas.1} parent=1 // pred_check_branch
      %96 = sbr.rel (0) target = $region53
    $region52: #{cmi_sa_pallas.1} parent=1 // pred_region
      %97 = dma.done [#allocation8], 16
    $region53: #{cmi_sa_pallas.1} parent=1 // pred_fallthru
      _
    // Predicated region
    $region54: #{cmi_sa_pallas.1} parent=1 // pred_check
      _
    $region55: #{cmi_sa_pallas.1} parent=1 // pred_check_branch
      %99 = sbr.rel (0) target = $region57
    $region56: #{cmi_sa_pallas.1} parent=1 // pred_region
      %100 = dma.done [#allocation11], 16
    $region57: #{cmi_sa_pallas.1} parent=1 // pred_fallthru
      _
    %101 = sfence
    %v102 = vlaneseq
    %v103 = vshrl.u32 %v102, 7
    %v104 = vadd.s32 %v103, 8
    %v105 = vlaneseq
    %v106 = vand.u32 %v105, 127
    %vm107 = vcmp.ne.s32.totalorder %v103, 0
    %vm108 = vcmp.ne.s32.totalorder %v104, 0
    %vm109 = vcmp.ne.s32.totalorder %v103, 15
    %vm110 = vcmp.ne.s32.totalorder %v104, 15
    %vm111 = vcmp.ne.s32.totalorder %v106, 0
    %vm112 = vcmp.ne.s32.totalorder %v106, 31
    %vm113 = vcmp.ne.s32.totalorder %v106, 16
    %vm114 = vmand %vm111, %vm113
    %vm115 = vcmp.ne.s32.totalorder %v106, 15
    %vm116 = vmand %vm112, %vm115
    %v117 = vld [vmem:[%s0] sm:$0xff]
    %v118 = vld [vmem:[%s0 + $0x8] sm:$0xff]
    %s119 = scalar_lea.vmem %s0, 16
    %v120 = vld [vmem:[%s119] sm:$0xff]
    %v121 = vld [vmem:[%s119 + $0x8] sm:$0xff]
    %s122 = scalar_lea.vmem %s0, 32
    %v123 = vld [vmem:[%s122] sm:$0xff]
    %v124 = vld [vmem:[%s122 + $0x8] sm:$0xff]
    %s125 = scalar_lea.vmem %s0, 48
    %v126 = vld [vmem:[%s125] sm:$0xff]
    %v127 = vld [vmem:[%s125 + $0x8] sm:$0xff]
    %v128 = vld [vmem:[%s1] sm:$0xff]
    %v129 = vld [vmem:[%s1 + $0x8] sm:$0xff]
    %s130 = scalar_lea.vmem %s1, 16
    %v131 = vld [vmem:[%s130] sm:$0xff]
    %v132 = vld [vmem:[%s130 + $0x8] sm:$0xff]
    %s133 = scalar_lea.vmem %s1, 32
    %v134 = vld [vmem:[%s133] sm:$0xff]
    %v135 = vld [vmem:[%s133 + $0x8] sm:$0xff]
    %s136 = scalar_lea.vmem %s1, 48
    %v137 = vld [vmem:[%s136] sm:$0xff]
    %v138 = vld [vmem:[%s136 + $0x8] sm:$0xff]
    %v139 = vmax.f32 %v117, %v120
    %v140 = vmax.f32 %v118, %v121
    %v141 = vmax.f32 %v128, %v131
    %v142 = vmax.f32 %v129, %v132
    %v143 = vmax.f32 %v139, %v123
    %v144 = vmax.f32 %v140, %v124
    %v145 = vmax.f32 %v141, %v134
    %v146 = vmax.f32 %v142, %v135
    %v147 = vmax.f32 %v143, %v126
    %v148 = vmax.f32 %v144, %v127
    %v149 = vmax.f32 %v145, %v137
    %v150 = vmax.f32 %v146, %v138
    %s151 = sld [smem:[#allocation2]]
    %v152 = vstv %s151
    %v153 = vmul.f32 %v152, %v117
    %v154 = vmul.f32 %v152, %v118
    %s155 = sld [smem:[#allocation2 + $0x1]]
    %v156 = vstv %s155
    %v157 = vmul.f32 %v156, %v120
    %v158 = vmul.f32 %v156, %v121
    %v159 = vadd.f32 %v153, %v157
    %v160 = vadd.f32 %v154, %v158
    %s161 = sld [smem:[#allocation2 + $0x2]]
    %v162 = vstv %s161
    %v163 = vmul.f32 %v162, %v123
    %v164 = vmul.f32 %v162, %v124
    %v165 = vadd.f32 %v159, %v163
    %v166 = vadd.f32 %v160, %v164
    %s167 = sld [smem:[#allocation2 + $0x3]]
    %v168 = vstv %s167
    %v169 = vmul.f32 %v168, %v126
    %v170 = vmul.f32 %v168, %v127
    %v171 = vadd.f32 %v165, %v169
    %v172 = vadd.f32 %v166, %v170
    %s173 = sld [smem:[#allocation2 + $0x4]]
    %v174 = vstv %s173
    %v175 = vmul.f32 %v174, %v128
    %v176 = vmul.f32 %v174, %v129
    %v177 = vadd.f32 %v171, %v175
    %v178 = vadd.f32 %v172, %v176
    %s179 = sld [smem:[#allocation2 + $0x5]]
    %v180 = vstv %s179
    %v181 = vmul.f32 %v180, %v131
    %v182 = vmul.f32 %v180, %v132
    %v183 = vadd.f32 %v177, %v181
    %v184 = vadd.f32 %v178, %v182
    %s185 = sld [smem:[#allocation2 + $0x6]]
    %v186 = vstv %s185
    %v187 = vmul.f32 %v186, %v134
    %v188 = vmul.f32 %v186, %v135
    %v189 = vadd.f32 %v183, %v187
    %v190 = vadd.f32 %v184, %v188
    %s191 = sld [smem:[#allocation2 + $0x7]]
    %v192 = vstv %s191
    %v193 = vmul.f32 %v192, %v137
    %v194 = vmul.f32 %v192, %v138
    %v195 = vadd.f32 %v189, %v193
    %v196 = vadd.f32 %v190, %v194
    %v197 = vmax.f32 %v195, 0.0
    %v198 = vmax.f32 %v196, 0.0
    %s199 = sld [smem:[#allocation2 + $0x8]]
    %v200 = vstv %s199
    %v201 = vmul.f32 %v200, %v117
    %v202 = vmul.f32 %v200, %v118
    %s203 = sld [smem:[#allocation2 + $0x9]]
    %v204 = vstv %s203
    %v205 = vmul.f32 %v204, %v120
    %v206 = vmul.f32 %v204, %v121
    %v207 = vadd.f32 %v201, %v205
    %v208 = vadd.f32 %v202, %v206
    %s209 = sld [smem:[#allocation2 + $0xa]]
    %v210 = vstv %s209
    %v211 = vmul.f32 %v210, %v123
    %v212 = vmul.f32 %v210, %v124
    %v213 = vadd.f32 %v207, %v211
    %v214 = vadd.f32 %v208, %v212
    %s215 = sld [smem:[#allocation2 + $0xb]]
    %v216 = vstv %s215
    %v217 = vmul.f32 %v216, %v126
    %v218 = vmul.f32 %v216, %v127
    %v219 = vadd.f32 %v213, %v217
    %v220 = vadd.f32 %v214, %v218
    %s221 = sld [smem:[#allocation2 + $0xc]]
    %v222 = vstv %s221
    %v223 = vmul.f32 %v222, %v128
    %v224 = vmul.f32 %v222, %v129
    %v225 = vadd.f32 %v219, %v223
    %v226 = vadd.f32 %v220, %v224
    %s227 = sld [smem:[#allocation2 + $0xd]]
    %v228 = vstv %s227
    %v229 = vmul.f32 %v228, %v131
    %v230 = vmul.f32 %v228, %v132
    %v231 = vadd.f32 %v225, %v229
    %v232 = vadd.f32 %v226, %v230
    %s233 = sld [smem:[#allocation2 + $0xe]]
    %v234 = vstv %s233
    %v235 = vmul.f32 %v234, %v134
    %v236 = vmul.f32 %v234, %v135
    %v237 = vadd.f32 %v231, %v235
    %v238 = vadd.f32 %v232, %v236
    %s239 = sld [smem:[#allocation2 + $0xf]]
    %v240 = vstv %s239
    %v241 = vmul.f32 %v240, %v137
    %v242 = vmul.f32 %v240, %v138
    %v243 = vadd.f32 %v237, %v241
    %v244 = vadd.f32 %v238, %v242
    %v245 = vmax.f32 %v243, 0.0
    %v246 = vmax.f32 %v244, 0.0
    %s247 = sld [smem:[#allocation2 + $0x10]]
    %v248 = vstv %s247
    %v249 = vmul.f32 %v248, %v117
    %v250 = vmul.f32 %v248, %v118
    %s251 = sld [smem:[#allocation2 + $0x11]]
    %v252 = vstv %s251
    %v253 = vmul.f32 %v252, %v120
    %v254 = vmul.f32 %v252, %v121
    %v255 = vadd.f32 %v249, %v253
    %v256 = vadd.f32 %v250, %v254
    %s257 = sld [smem:[#allocation2 + $0x12]]
    %v258 = vstv %s257
    %v259 = vmul.f32 %v258, %v123
    %v260 = vmul.f32 %v258, %v124
    %v261 = vadd.f32 %v255, %v259
    %v262 = vadd.f32 %v256, %v260
    %s263 = sld [smem:[#allocation2 + $0x13]]
    %v264 = vstv %s263
    %v265 = vmul.f32 %v264, %v126
    %v266 = vmul.f32 %v264, %v127
    %v267 = vadd.f32 %v261, %v265
    %v268 = vadd.f32 %v262, %v266
    %s269 = sld [smem:[#allocation2 + $0x14]]
    %v270 = vstv %s269
    %v271 = vmul.f32 %v270, %v128
    %v272 = vmul.f32 %v270, %v129
    %v273 = vadd.f32 %v267, %v271
    %v274 = vadd.f32 %v268, %v272
    %s275 = sld [smem:[#allocation2 + $0x15]]
    %v276 = vstv %s275
    %v277 = vmul.f32 %v276, %v131
    %v278 = vmul.f32 %v276, %v132
    %v279 = vadd.f32 %v273, %v277
    %v280 = vadd.f32 %v274, %v278
    %s281 = sld [smem:[#allocation2 + $0x16]]
    %v282 = vstv %s281
    %v283 = vmul.f32 %v282, %v134
    %v284 = vmul.f32 %v282, %v135
    %v285 = vadd.f32 %v279, %v283
    %v286 = vadd.f32 %v280, %v284
    %s287 = sld [smem:[#allocation2 + $0x17]]
    %v288 = vstv %s287
    %v289 = vmul.f32 %v288, %v137
    %v290 = vmul.f32 %v288, %v138
    %v291 = vadd.f32 %v285, %v289
    %v292 = vadd.f32 %v286, %v290
    %v293 = vmax.f32 %v291, 0.0
    %v294 = vmax.f32 %v292, 0.0
    %s295 = sld [smem:[#allocation2 + $0x18]]
    %v296 = vstv %s295
    %v297 = vmul.f32 %v296, %v117
    %v298 = vmul.f32 %v296, %v118
    %s299 = sld [smem:[#allocation2 + $0x19]]
    %v300 = vstv %s299
    %v301 = vmul.f32 %v300, %v120
    %v302 = vmul.f32 %v300, %v121
    %v303 = vadd.f32 %v297, %v301
    %v304 = vadd.f32 %v298, %v302
    %s305 = sld [smem:[#allocation2 + $0x1a]]
    %v306 = vstv %s305
    %v307 = vmul.f32 %v306, %v123
    %v308 = vmul.f32 %v306, %v124
    %v309 = vadd.f32 %v303, %v307
    %v310 = vadd.f32 %v304, %v308
    %s311 = sld [smem:[#allocation2 + $0x1b]]
    %v312 = vstv %s311
    %v313 = vmul.f32 %v312, %v126
    %v314 = vmul.f32 %v312, %v127
    %v315 = vadd.f32 %v309, %v313
    %v316 = vadd.f32 %v310, %v314
    %s317 = sld [smem:[#allocation2 + $0x1c]]
    %v318 = vstv %s317
    %v319 = vmul.f32 %v318, %v128
    %v320 = vmul.f32 %v318, %v129
    %v321 = vadd.f32 %v315, %v319
    %v322 = vadd.f32 %v316, %v320
    %s323 = sld [smem:[#allocation2 + $0x1d]]
    %v324 = vstv %s323
    %v325 = vmul.f32 %v324, %v131
    %v326 = vmul.f32 %v324, %v132
    %v327 = vadd.f32 %v321, %v325
    %v328 = vadd.f32 %v322, %v326
    %s329 = sld [smem:[#allocation2 + $0x1e]]
    %v330 = vstv %s329
    %v331 = vmul.f32 %v330, %v134
    %v332 = vmul.f32 %v330, %v135
    %v333 = vadd.f32 %v327, %v331
    %v334 = vadd.f32 %v328, %v332
    %s335 = sld [smem:[#allocation2 + $0x1f]]
    %v336 = vstv %s335
    %v337 = vmul.f32 %v336, %v137
    %v338 = vmul.f32 %v336, %v138
    %v339 = vadd.f32 %v333, %v337
    %v340 = vadd.f32 %v334, %v338
    %v341 = vmax.f32 %v339, 0.0
    %v342 = vmax.f32 %v340, 0.0
    %v343 = vrot.slane %v197, 7
    %v344 = vrot.slane %v198, 7
    %vm345 = vcmp.lt.s32.totalorder %v103, 1
    %v346 = vsel %vm345, %v343, %v344
    %v347 = vsel %vm345, %v344, %v343
    %vm348 = vcmask 1047808
    %349 = vrot.lane.b32.xlu0 %v347, 32
    %v350 = vpop.permute.xlu0 %349
    %v351 = vsel %vm348, %v350, %v347
    %352 = vrot.lane.b32.xlu0 %v346, 32
    %v353 = vpop.permute.xlu0 %352
    %v354 = vsel %vm348, %v353, %v346
    %355 = vrot.lane.b32.xlu0 %v351, 32
    %v356 = vpop.permute.xlu0 %355
    %357 = vrot.lane.b32.xlu0 %v354, 32
    %v358 = vpop.permute.xlu0 %357
    %v359 = vsel %vm348, %v356, %v347
    %v360 = vsel %vm348, %v358, %v346
    %vm361 = vmand %vm107, %vm114
    %vm362 = vmand %vm108, %vm114
    %365 = vrot.lane.b32.xlu0 %v359, 97
    %v366 = vpop.permute.xlu0 %365
    %367 = vrot.lane.b32.xlu0 %v360, 97
    %v368 = vpop.permute.xlu0 %367
    %v371 = vsel %vm361, %v366, 0.0
    %v372 = vsel %vm362, %v368, 0.0
    %s373 = sld [smem:[#allocation4]]
    %v374 = vstv %s373
    %v375 = vmul.f32 %v374, %v371
    %v376 = vmul.f32 %v374, %v372
    %v377 = vadd.f32 %v375, 0.0
    %v378 = vadd.f32 %v376, 0.0
    %s379 = sld [smem:[#allocation4 + $0x24]]
    %v380 = vstv %s379
    %v381 = vmul.f32 %v380, %v371
    %v382 = vmul.f32 %v380, %v372
    %v383 = vadd.f32 %v381, 0.0
    %v384 = vadd.f32 %v382, 0.0
    %s385 = sld [smem:[#allocation4 + $0x48]]
    %v386 = vstv %s385
    %v387 = vmul.f32 %v386, %v371
    %v388 = vmul.f32 %v386, %v372
    %v389 = vadd.f32 %v387, 0.0
    %v390 = vadd.f32 %v388, 0.0
    %s391 = sld [smem:[#allocation4 + $0x6c]]
    %v392 = vstv %s391
    %v393 = vmul.f32 %v392, %v371
    %v394 = vmul.f32 %v392, %v372
    %v395 = vadd.f32 %v393, 0.0
    %v396 = vadd.f32 %v394, 0.0
    %v397 = vsel %vm107, %v347, 0.0
    %v398 = vsel %vm108, %v346, 0.0
    %s399 = sld [smem:[#allocation4 + $0x1]]
    %v400 = vstv %s399
    %v401 = vmul.f32 %v400, %v397
    %v402 = vmul.f32 %v400, %v398
    %v403 = vadd.f32 %v377, %v401
    %v404 = vadd.f32 %v378, %v402
    %s405 = sld [smem:[#allocation4 + $0x25]]
    %v406 = vstv %s405
    %v407 = vmul.f32 %v406, %v397
    %v408 = vmul.f32 %v406, %v398
    %v409 = vadd.f32 %v383, %v407
    %v410 = vadd.f32 %v384, %v408
    %s411 = sld [smem:[#allocation4 + $0x49]]
    %v412 = vstv %s411
    %v413 = vmul.f32 %v412, %v397
    %v414 = vmul.f32 %v412, %v398
    %v415 = vadd.f32 %v389, %v413
    %v416 = vadd.f32 %v390, %v414
    %s417 = sld [smem:[#allocation4 + $0x6d]]
    %v418 = vstv %s417
    %v419 = vmul.f32 %v418, %v397
    %v420 = vmul.f32 %v418, %v398
    %v421 = vadd.f32 %v395, %v419
    %v422 = vadd.f32 %v396, %v420
    %vm423 = vmand %vm107, %vm116
    %vm424 = vmand %vm108, %vm116
    %425 = vrot.lane.b32.xlu0 %v359, 127
    %v426 = vpop.permute.xlu0 %425
    %427 = vrot.lane.b32.xlu0 %v360, 127
    %v428 = vpop.permute.xlu0 %427
    %v431 = vsel %vm423, %v426, 0.0
    %v432 = vsel %vm424, %v428, 0.0
    %s433 = sld [smem:[#allocation4 + $0x2]]
    %v434 = vstv %s433
    %v435 = vmul.f32 %v434, %v431
    %v436 = vmul.f32 %v434, %v432
    %v437 = vadd.f32 %v403, %v435
    %v438 = vadd.f32 %v404, %v436
    %s439 = sld [smem:[#allocation4 + $0x26]]
    %v440 = vstv %s439
    %v441 = vmul.f32 %v440, %v431
    %v442 = vmul.f32 %v440, %v432
    %v443 = vadd.f32 %v409, %v441
    %v444 = vadd.f32 %v410, %v442
    %s445 = sld [smem:[#allocation4 + $0x4a]]
    %v446 = vstv %s445
    %v447 = vmul.f32 %v446, %v431
    %v448 = vmul.f32 %v446, %v432
    %v449 = vadd.f32 %v415, %v447
    %v450 = vadd.f32 %v416, %v448
    %s451 = sld [smem:[#allocation4 + $0x6e]]
    %v452 = vstv %s451
    %v453 = vmul.f32 %v452, %v431
    %v454 = vmul.f32 %v452, %v432
    %v455 = vadd.f32 %v421, %v453
    %v456 = vadd.f32 %v422, %v454
    %457 = vrot.lane.b32.xlu0 %v197, 32
    %v458 = vpop.permute.xlu0 %457
    %v459 = vsel %vm348, %v458, %v197
    %460 = vrot.lane.b32.xlu0 %v198, 32
    %v461 = vpop.permute.xlu0 %460
    %v462 = vsel %vm348, %v461, %v198
    %463 = vrot.lane.b32.xlu0 %v459, 32
    %v464 = vpop.permute.xlu0 %463
    %465 = vrot.lane.b32.xlu0 %v462, 32
    %v466 = vpop.permute.xlu0 %465
    %v467 = vsel %vm348, %v464, %v197
    %v468 = vsel %vm348, %v466, %v198
    %471 = vrot.lane.b32.xlu0 %v467, 97
    %v472 = vpop.permute.xlu0 %471
    %473 = vrot.lane.b32.xlu0 %v468, 97
    %v474 = vpop.permute.xlu0 %473
    %v477 = vsel %vm114, %v472, 0.0
    %v478 = vsel %vm114, %v474, 0.0
    %s479 = sld [smem:[#allocation4 + $0x3]]
    %v480 = vstv %s479
    %v481 = vmul.f32 %v480, %v477
    %v482 = vmul.f32 %v480, %v478
    %v483 = vadd.f32 %v437, %v481
    %v484 = vadd.f32 %v438, %v482
    %s485 = sld [smem:[#allocation4 + $0x27]]
    %v486 = vstv %s485
    %v487 = vmul.f32 %v486, %v477
    %v488 = vmul.f32 %v486, %v478
    %v489 = vadd.f32 %v443, %v487
    %v490 = vadd.f32 %v444, %v488
    %s491 = sld [smem:[#allocation4 + $0x4b]]
    %v492 = vstv %s491
    %v493 = vmul.f32 %v492, %v477
    %v494 = vmul.f32 %v492, %v478
    %v495 = vadd.f32 %v449, %v493
    %v496 = vadd.f32 %v450, %v494
    %s497 = sld [smem:[#allocation4 + $0x6f]]
    %v498 = vstv %s497
    %v499 = vmul.f32 %v498, %v477
    %v500 = vmul.f32 %v498, %v478
    %v501 = vadd.f32 %v455, %v499
    %v502 = vadd.f32 %v456, %v500
    %s503 = sld [smem:[#allocation4 + $0x4]]
    %v504 = vstv %s503
    %v505 = vmul.f32 %v504, %v197
    %v506 = vmul.f32 %v504, %v198
    %v507 = vadd.f32 %v483, %v505
    %v508 = vadd.f32 %v484, %v506
    %s509 = sld [smem:[#allocation4 + $0x28]]
    %v510 = vstv %s509
    %v511 = vmul.f32 %v510, %v197
    %v512 = vmul.f32 %v510, %v198
    %v513 = vadd.f32 %v489, %v511
    %v514 = vadd.f32 %v490, %v512
    %s515 = sld [smem:[#allocation4 + $0x4c]]
    %v516 = vstv %s515
    %v517 = vmul.f32 %v516, %v197
    %v518 = vmul.f32 %v516, %v198
    %v519 = vadd.f32 %v495, %v517
    %v520 = vadd.f32 %v496, %v518
    %s521 = sld [smem:[#allocation4 + $0x70]]
    %v522 = vstv %s521
    %v523 = vmul.f32 %v522, %v197
    %v524 = vmul.f32 %v522, %v198
    %v525 = vadd.f32 %v501, %v523
    %v526 = vadd.f32 %v502, %v524
    %527 = vrot.lane.b32.xlu0 %v467, 127
    %v528 = vpop.permute.xlu0 %527
    %529 = vrot.lane.b32.xlu0 %v468, 127
    %v530 = vpop.permute.xlu0 %529
    %v533 = vsel %vm116, %v528, 0.0
    %v534 = vsel %vm116, %v530, 0.0
    %s535 = sld [smem:[#allocation4 + $0x5]]
    %v536 = vstv %s535
    %v537 = vmul.f32 %v536, %v533
    %v538 = vmul.f32 %v536, %v534
    %v539 = vadd.f32 %v507, %v537
    %v540 = vadd.f32 %v508, %v538
    %s541 = sld [smem:[#allocation4 + $0x29]]
    %v542 = vstv %s541
    %v543 = vmul.f32 %v542, %v533
    %v544 = vmul.f32 %v542, %v534
    %v545 = vadd.f32 %v513, %v543
    %v546 = vadd.f32 %v514, %v544
    %s547 = sld [smem:[#allocation4 + $0x4d]]
    %v548 = vstv %s547
    %v549 = vmul.f32 %v548, %v533
    %v550 = vmul.f32 %v548, %v534
    %v551 = vadd.f32 %v519, %v549
    %v552 = vadd.f32 %v520, %v550
    %s553 = sld [smem:[#allocation4 + $0x71]]
    %v554 = vstv %s553
    %v555 = vmul.f32 %v554, %v533
    %v556 = vmul.f32 %v554, %v534
    %v557 = vadd.f32 %v525, %v555
    %v558 = vadd.f32 %v526, %v556
    %v559 = vrot.slane %v197, 1
    %v560 = vrot.slane %v198, 1
    %vm561 = vcmp.lt.s32.totalorder %v103, 7
    %v562 = vsel %vm561, %v559, %v560
    %v563 = vsel %vm561, %v560, %v559
    %564 = vrot.lane.b32.xlu0 %v562, 32
    %v565 = vpop.permute.xlu0 %564
    %v566 = vsel %vm348, %v565, %v562
    %567 = vrot.lane.b32.xlu0 %v563, 32
    %v568 = vpop.permute.xlu0 %567
    %v569 = vsel %vm348, %v568, %v563
    %570 = vrot.lane.b32.xlu0 %v566, 32
    %v571 = vpop.permute.xlu0 %570
    %572 = vrot.lane.b32.xlu0 %v569, 32
    %v573 = vpop.permute.xlu0 %572
    %v574 = vsel %vm348, %v571, %v562
    %v575 = vsel %vm348, %v573, %v563
    %vm576 = vmand %vm109, %vm114
    %vm577 = vmand %vm110, %vm114
    %580 = vrot.lane.b32.xlu0 %v574, 97
    %v581 = vpop.permute.xlu0 %580
    %582 = vrot.lane.b32.xlu0 %v575, 97
    %v583 = vpop.permute.xlu0 %582
    %v586 = vsel %vm576, %v581, 0.0
    %v587 = vsel %vm577, %v583, 0.0
    %s588 = sld [smem:[#allocation4 + $0x6]]
    %v589 = vstv %s588
    %v590 = vmul.f32 %v589, %v586
    %v591 = vmul.f32 %v589, %v587
    %v592 = vadd.f32 %v539, %v590
    %v593 = vadd.f32 %v540, %v591
    %s594 = sld [smem:[#allocation4 + $0x2a]]
    %v595 = vstv %s594
    %v596 = vmul.f32 %v595, %v586
    %v597 = vmul.f32 %v595, %v587
    %v598 = vadd.f32 %v545, %v596
    %v599 = vadd.f32 %v546, %v597
    %s600 = sld [smem:[#allocation4 + $0x4e]]
    %v601 = vstv %s600
    %v602 = vmul.f32 %v601, %v586
    %v603 = vmul.f32 %v601, %v587
    %v604 = vadd.f32 %v551, %v602
    %v605 = vadd.f32 %v552, %v603
    %s606 = sld [smem:[#allocation4 + $0x72]]
    %v607 = vstv %s606
    %v608 = vmul.f32 %v607, %v586
    %v609 = vmul.f32 %v607, %v587
    %v610 = vadd.f32 %v557, %v608
    %v611 = vadd.f32 %v558, %v609
    %v612 = vsel %vm109, %v562, 0.0
    %v613 = vsel %vm110, %v563, 0.0
    %s614 = sld [smem:[#allocation4 + $0x7]]
    %v615 = vstv %s614
    %v616 = vmul.f32 %v615, %v612
    %v617 = vmul.f32 %v615, %v613
    %v618 = vadd.f32 %v592, %v616
    %v619 = vadd.f32 %v593, %v617
    %s620 = sld [smem:[#allocation4 + $0x2b]]
    %v621 = vstv %s620
    %v622 = vmul.f32 %v621, %v612
    %v623 = vmul.f32 %v621, %v613
    %v624 = vadd.f32 %v598, %v622
    %v625 = vadd.f32 %v599, %v623
    %s626 = sld [smem:[#allocation4 + $0x4f]]
    %v627 = vstv %s626
    %v628 = vmul.f32 %v627, %v612
    %v629 = vmul.f32 %v627, %v613
    %v630 = vadd.f32 %v604, %v628
    %v631 = vadd.f32 %v605, %v629
    %s632 = sld [smem:[#allocation4 + $0x73]]
    %v633 = vstv %s632
    %v634 = vmul.f32 %v633, %v612
    %v635 = vmul.f32 %v633, %v613
    %v636 = vadd.f32 %v610, %v634
    %v637 = vadd.f32 %v611, %v635
    %vm638 = vmand %vm109, %vm116
    %vm639 = vmand %vm110, %vm116
    %640 = vrot.lane.b32.xlu0 %v574, 127
    %v641 = vpop.permute.xlu0 %640
    %642 = vrot.lane.b32.xlu0 %v575, 127
    %v643 = vpop.permute.xlu0 %642
    %v646 = vsel %vm638, %v641, 0.0
    %v647 = vsel %vm639, %v643, 0.0
    %s648 = sld [smem:[#allocation4 + $0x8]]
    %v649 = vstv %s648
    %v650 = vmul.f32 %v649, %v646
    %v651 = vmul.f32 %v649, %v647
    %v652 = vadd.f32 %v618, %v650
    %v653 = vadd.f32 %v619, %v651
    %s654 = sld [smem:[#allocation4 + $0x2c]]
    %v655 = vstv %s654
    %v656 = vmul.f32 %v655, %v646
    %v657 = vmul.f32 %v655, %v647
    %v658 = vadd.f32 %v624, %v656
    %v659 = vadd.f32 %v625, %v657
    %s660 = sld [smem:[#allocation4 + $0x50]]
    %v661 = vstv %s660
    %v662 = vmul.f32 %v661, %v646
    %v663 = vmul.f32 %v661, %v647
    %v664 = vadd.f32 %v630, %v662
    %v665 = vadd.f32 %v631, %v663
    %s666 = sld [smem:[#allocation4 + $0x74]]
    %v667 = vstv %s666
    %v668 = vmul.f32 %v667, %v646
    %v669 = vmul.f32 %v667, %v647
    %v670 = vadd.f32 %v636, %v668
    %v671 = vadd.f32 %v637, %v669
    %v672 = vrot.slane %v245, 7
    %v673 = vrot.slane %v246, 7
    %v674 = vsel %vm345, %v672, %v673
    %v675 = vsel %vm345, %v673, %v672
    %676 = vrot.lane.b32.xlu0 %v675, 32
    %v677 = vpop.permute.xlu0 %676
    %v678 = vsel %vm348, %v677, %v675
    %679 = vrot.lane.b32.xlu0 %v674, 32
    %v680 = vpop.permute.xlu0 %679
    %v681 = vsel %vm348, %v680, %v674
    %682 = vrot.lane.b32.xlu0 %v678, 32
    %v683 = vpop.permute.xlu0 %682
    %684 = vrot.lane.b32.xlu0 %v681, 32
    %v685 = vpop.permute.xlu0 %684
    %v686 = vsel %vm348, %v683, %v675
    %v687 = vsel %vm348, %v685, %v674
    %690 = vrot.lane.b32.xlu0 %v686, 97
    %v691 = vpop.permute.xlu0 %690
    %692 = vrot.lane.b32.xlu0 %v687, 97
    %v693 = vpop.permute.xlu0 %692
    %v696 = vsel %vm361, %v691, 0.0
    %v697 = vsel %vm362, %v693, 0.0
    %s698 = sld [smem:[#allocation4 + $0x9]]
    %v699 = vstv %s698
    %v700 = vmul.f32 %v699, %v696
    %v701 = vmul.f32 %v699, %v697
    %v702 = vadd.f32 %v652, %v700
    %v703 = vadd.f32 %v653, %v701
    %s704 = sld [smem:[#allocation4 + $0x2d]]
    %v705 = vstv %s704
    %v706 = vmul.f32 %v705, %v696
    %v707 = vmul.f32 %v705, %v697
    %v708 = vadd.f32 %v658, %v706
    %v709 = vadd.f32 %v659, %v707
    %s710 = sld [smem:[#allocation4 + $0x51]]
    %v711 = vstv %s710
    %v712 = vmul.f32 %v711, %v696
    %v713 = vmul.f32 %v711, %v697
    %v714 = vadd.f32 %v664, %v712
    %v715 = vadd.f32 %v665, %v713
    %s716 = sld [smem:[#allocation4 + $0x75]]
    %v717 = vstv %s716
    %v718 = vmul.f32 %v717, %v696
    %v719 = vmul.f32 %v717, %v697
    %v720 = vadd.f32 %v670, %v718
    %v721 = vadd.f32 %v671, %v719
    %v722 = vsel %vm107, %v675, 0.0
    %v723 = vsel %vm108, %v674, 0.0
    %s724 = sld [smem:[#allocation4 + $0xa]]
    %v725 = vstv %s724
    %v726 = vmul.f32 %v725, %v722
    %v727 = vmul.f32 %v725, %v723
    %v728 = vadd.f32 %v702, %v726
    %v729 = vadd.f32 %v703, %v727
    %s730 = sld [smem:[#allocation4 + $0x2e]]
    %v731 = vstv %s730
    %v732 = vmul.f32 %v731, %v722
    %v733 = vmul.f32 %v731, %v723
    %v734 = vadd.f32 %v708, %v732
    %v735 = vadd.f32 %v709, %v733
    %s736 = sld [smem:[#allocation4 + $0x52]]
    %v737 = vstv %s736
    %v738 = vmul.f32 %v737, %v722
    %v739 = vmul.f32 %v737, %v723
    %v740 = vadd.f32 %v714, %v738
    %v741 = vadd.f32 %v715, %v739
    %s742 = sld [smem:[#allocation4 + $0x76]]
    %v743 = vstv %s742
    %v744 = vmul.f32 %v743, %v722
    %v745 = vmul.f32 %v743, %v723
    %v746 = vadd.f32 %v720, %v744
    %v747 = vadd.f32 %v721, %v745
    %748 = vrot.lane.b32.xlu0 %v686, 127
    %v749 = vpop.permute.xlu0 %748
    %750 = vrot.lane.b32.xlu0 %v687, 127
    %v751 = vpop.permute.xlu0 %750
    %v754 = vsel %vm423, %v749, 0.0
    %v755 = vsel %vm424, %v751, 0.0
    %s756 = sld [smem:[#allocation4 + $0xb]]
    %v757 = vstv %s756
    %v758 = vmul.f32 %v757, %v754
    %v759 = vmul.f32 %v757, %v755
    %v760 = vadd.f32 %v728, %v758
    %v761 = vadd.f32 %v729, %v759
    %s762 = sld [smem:[#allocation4 + $0x2f]]
    %v763 = vstv %s762
    %v764 = vmul.f32 %v763, %v754
    %v765 = vmul.f32 %v763, %v755
    %v766 = vadd.f32 %v734, %v764
    %v767 = vadd.f32 %v735, %v765
    %s768 = sld [smem:[#allocation4 + $0x53]]
    %v769 = vstv %s768
    %v770 = vmul.f32 %v769, %v754
    %v771 = vmul.f32 %v769, %v755
    %v772 = vadd.f32 %v740, %v770
    %v773 = vadd.f32 %v741, %v771
    %s774 = sld [smem:[#allocation4 + $0x77]]
    %v775 = vstv %s774
    %v776 = vmul.f32 %v775, %v754
    %v777 = vmul.f32 %v775, %v755
    %v778 = vadd.f32 %v746, %v776
    %v779 = vadd.f32 %v747, %v777
    %780 = vrot.lane.b32.xlu0 %v245, 32
    %v781 = vpop.permute.xlu0 %780
    %v782 = vsel %vm348, %v781, %v245
    %783 = vrot.lane.b32.xlu0 %v246, 32
    %v784 = vpop.permute.xlu0 %783
    %v785 = vsel %vm348, %v784, %v246
    %786 = vrot.lane.b32.xlu0 %v782, 32
    %v787 = vpop.permute.xlu0 %786
    %788 = vrot.lane.b32.xlu0 %v785, 32
    %v789 = vpop.permute.xlu0 %788
    %v790 = vsel %vm348, %v787, %v245
    %v791 = vsel %vm348, %v789, %v246
    %794 = vrot.lane.b32.xlu0 %v790, 97
    %v795 = vpop.permute.xlu0 %794
    %796 = vrot.lane.b32.xlu0 %v791, 97
    %v797 = vpop.permute.xlu0 %796
    %v800 = vsel %vm114, %v795, 0.0
    %v801 = vsel %vm114, %v797, 0.0
    %s802 = sld [smem:[#allocation4 + $0xc]]
    %v803 = vstv %s802
    %v804 = vmul.f32 %v803, %v800
    %v805 = vmul.f32 %v803, %v801
    %v806 = vadd.f32 %v760, %v804
    %v807 = vadd.f32 %v761, %v805
    %s808 = sld [smem:[#allocation4 + $0x30]]
    %v809 = vstv %s808
    %v810 = vmul.f32 %v809, %v800
    %v811 = vmul.f32 %v809, %v801
    %v812 = vadd.f32 %v766, %v810
    %v813 = vadd.f32 %v767, %v811
    %s814 = sld [smem:[#allocation4 + $0x54]]
    %v815 = vstv %s814
    %v816 = vmul.f32 %v815, %v800
    %v817 = vmul.f32 %v815, %v801
    %v818 = vadd.f32 %v772, %v816
    %v819 = vadd.f32 %v773, %v817
    %s820 = sld [smem:[#allocation4 + $0x78]]
    %v821 = vstv %s820
    %v822 = vmul.f32 %v821, %v800
    %v823 = vmul.f32 %v821, %v801
    %v824 = vadd.f32 %v778, %v822
    %v825 = vadd.f32 %v779, %v823
    %s826 = sld [smem:[#allocation4 + $0xd]]
    %v827 = vstv %s826
    %v828 = vmul.f32 %v827, %v245
    %v829 = vmul.f32 %v827, %v246
    %v830 = vadd.f32 %v806, %v828
    %v831 = vadd.f32 %v807, %v829
    %s832 = sld [smem:[#allocation4 + $0x31]]
    %v833 = vstv %s832
    %v834 = vmul.f32 %v833, %v245
    %v835 = vmul.f32 %v833, %v246
    %v836 = vadd.f32 %v812, %v834
    %v837 = vadd.f32 %v813, %v835
    %s838 = sld [smem:[#allocation4 + $0x55]]
    %v839 = vstv %s838
    %v840 = vmul.f32 %v839, %v245
    %v841 = vmul.f32 %v839, %v246
    %v842 = vadd.f32 %v818, %v840
    %v843 = vadd.f32 %v819, %v841
    %s844 = sld [smem:[#allocation4 + $0x79]]
    %v845 = vstv %s844
    %v846 = vmul.f32 %v845, %v245
    %v847 = vmul.f32 %v845, %v246
    %v848 = vadd.f32 %v824, %v846
    %v849 = vadd.f32 %v825, %v847
    %850 = vrot.lane.b32.xlu0 %v790, 127
    %v851 = vpop.permute.xlu0 %850
    %852 = vrot.lane.b32.xlu0 %v791, 127
    %v853 = vpop.permute.xlu0 %852
    %v856 = vsel %vm116, %v851, 0.0
    %v857 = vsel %vm116, %v853, 0.0
    %s858 = sld [smem:[#allocation4 + $0xe]]
    %v859 = vstv %s858
    %v860 = vmul.f32 %v859, %v856
    %v861 = vmul.f32 %v859, %v857
    %v862 = vadd.f32 %v830, %v860
    %v863 = vadd.f32 %v831, %v861
    %s864 = sld [smem:[#allocation4 + $0x32]]
    %v865 = vstv %s864
    %v866 = vmul.f32 %v865, %v856
    %v867 = vmul.f32 %v865, %v857
    %v868 = vadd.f32 %v836, %v866
    %v869 = vadd.f32 %v837, %v867
    %s870 = sld [smem:[#allocation4 + $0x56]]
    %v871 = vstv %s870
    %v872 = vmul.f32 %v871, %v856
    %v873 = vmul.f32 %v871, %v857
    %v874 = vadd.f32 %v842, %v872
    %v875 = vadd.f32 %v843, %v873
    %s876 = sld [smem:[#allocation4 + $0x7a]]
    %v877 = vstv %s876
    %v878 = vmul.f32 %v877, %v856
    %v879 = vmul.f32 %v877, %v857
    %v880 = vadd.f32 %v848, %v878
    %v881 = vadd.f32 %v849, %v879
    %v882 = vrot.slane %v245, 1
    %v883 = vrot.slane %v246, 1
    %v884 = vsel %vm561, %v882, %v883
    %v885 = vsel %vm561, %v883, %v882
    %886 = vrot.lane.b32.xlu0 %v884, 32
    %v887 = vpop.permute.xlu0 %886
    %v888 = vsel %vm348, %v887, %v884
    %889 = vrot.lane.b32.xlu0 %v885, 32
    %v890 = vpop.permute.xlu0 %889
    %v891 = vsel %vm348, %v890, %v885
    %892 = vrot.lane.b32.xlu0 %v888, 32
    %v893 = vpop.permute.xlu0 %892
    %894 = vrot.lane.b32.xlu0 %v891, 32
    %v895 = vpop.permute.xlu0 %894
    %v896 = vsel %vm348, %v893, %v884
    %v897 = vsel %vm348, %v895, %v885
    %900 = vrot.lane.b32.xlu0 %v896, 97
    %v901 = vpop.permute.xlu0 %900
    %902 = vrot.lane.b32.xlu0 %v897, 97
    %v903 = vpop.permute.xlu0 %902
    %v906 = vsel %vm576, %v901, 0.0
    %v907 = vsel %vm577, %v903, 0.0
    %s908 = sld [smem:[#allocation4 + $0xf]]
    %v909 = vstv %s908
    %v910 = vmul.f32 %v909, %v906
    %v911 = vmul.f32 %v909, %v907
    %v912 = vadd.f32 %v862, %v910
    %v913 = vadd.f32 %v863, %v911
    %s914 = sld [smem:[#allocation4 + $0x33]]
    %v915 = vstv %s914
    %v916 = vmul.f32 %v915, %v906
    %v917 = vmul.f32 %v915, %v907
    %v918 = vadd.f32 %v868, %v916
    %v919 = vadd.f32 %v869, %v917
    %s920 = sld [smem:[#allocation4 + $0x57]]
    %v921 = vstv %s920
    %v922 = vmul.f32 %v921, %v906
    %v923 = vmul.f32 %v921, %v907
    %v924 = vadd.f32 %v874, %v922
    %v925 = vadd.f32 %v875, %v923
    %s926 = sld [smem:[#allocation4 + $0x7b]]
    %v927 = vstv %s926
    %v928 = vmul.f32 %v927, %v906
    %v929 = vmul.f32 %v927, %v907
    %v930 = vadd.f32 %v880, %v928
    %v931 = vadd.f32 %v881, %v929
    %v932 = vsel %vm109, %v884, 0.0
    %v933 = vsel %vm110, %v885, 0.0
    %s934 = sld [smem:[#allocation4 + $0x10]]
    %v935 = vstv %s934
    %v936 = vmul.f32 %v935, %v932
    %v937 = vmul.f32 %v935, %v933
    %v938 = vadd.f32 %v912, %v936
    %v939 = vadd.f32 %v913, %v937
    %s940 = sld [smem:[#allocation4 + $0x34]]
    %v941 = vstv %s940
    %v942 = vmul.f32 %v941, %v932
    %v943 = vmul.f32 %v941, %v933
    %v944 = vadd.f32 %v918, %v942
    %v945 = vadd.f32 %v919, %v943
    %s946 = sld [smem:[#allocation4 + $0x58]]
    %v947 = vstv %s946
    %v948 = vmul.f32 %v947, %v932
    %v949 = vmul.f32 %v947, %v933
    %v950 = vadd.f32 %v924, %v948
    %v951 = vadd.f32 %v925, %v949
    %s952 = sld [smem:[#allocation4 + $0x7c]]
    %v953 = vstv %s952
    %v954 = vmul.f32 %v953, %v932
    %v955 = vmul.f32 %v953, %v933
    %v956 = vadd.f32 %v930, %v954
    %v957 = vadd.f32 %v931, %v955
    %958 = vrot.lane.b32.xlu0 %v896, 127
    %v959 = vpop.permute.xlu0 %958
    %960 = vrot.lane.b32.xlu0 %v897, 127
    %v961 = vpop.permute.xlu0 %960
    %v964 = vsel %vm638, %v959, 0.0
    %v965 = vsel %vm639, %v961, 0.0
    %s966 = sld [smem:[#allocation4 + $0x11]]
    %v967 = vstv %s966
    %v968 = vmul.f32 %v967, %v964
    %v969 = vmul.f32 %v967, %v965
    %v970 = vadd.f32 %v938, %v968
    %v971 = vadd.f32 %v939, %v969
    %s972 = sld [smem:[#allocation4 + $0x35]]
    %v973 = vstv %s972
    %v974 = vmul.f32 %v973, %v964
    %v975 = vmul.f32 %v973, %v965
    %v976 = vadd.f32 %v944, %v974
    %v977 = vadd.f32 %v945, %v975
    %s978 = sld [smem:[#allocation4 + $0x59]]
    %v979 = vstv %s978
    %v980 = vmul.f32 %v979, %v964
    %v981 = vmul.f32 %v979, %v965
    %v982 = vadd.f32 %v950, %v980
    %v983 = vadd.f32 %v951, %v981
    %s984 = sld [smem:[#allocation4 + $0x7d]]
    %v985 = vstv %s984
    %v986 = vmul.f32 %v985, %v964
    %v987 = vmul.f32 %v985, %v965
    %v988 = vadd.f32 %v956, %v986
    %v989 = vadd.f32 %v957, %v987
    %v990 = vrot.slane %v293, 7
    %v991 = vrot.slane %v294, 7
    %v992 = vsel %vm345, %v990, %v991
    %v993 = vsel %vm345, %v991, %v990
    %994 = vrot.lane.b32.xlu0 %v993, 32
    %v995 = vpop.permute.xlu0 %994
    %v996 = vsel %vm348, %v995, %v993
    %997 = vrot.lane.b32.xlu0 %v992, 32
    %v998 = vpop.permute.xlu0 %997
    %v999 = vsel %vm348, %v998, %v992
    %1000 = vrot.lane.b32.xlu0 %v996, 32
    %v1001 = vpop.permute.xlu0 %1000
    %1002 = vrot.lane.b32.xlu0 %v999, 32
    %v1003 = vpop.permute.xlu0 %1002
    %v1004 = vsel %vm348, %v1001, %v993
    %v1005 = vsel %vm348, %v1003, %v992
    %1008 = vrot.lane.b32.xlu0 %v1004, 97
    %v1009 = vpop.permute.xlu0 %1008
    %1010 = vrot.lane.b32.xlu0 %v1005, 97
    %v1011 = vpop.permute.xlu0 %1010
    %v1014 = vsel %vm361, %v1009, 0.0
    %v1015 = vsel %vm362, %v1011, 0.0
    %s1016 = sld [smem:[#allocation4 + $0x12]]
    %v1017 = vstv %s1016
    %v1018 = vmul.f32 %v1017, %v1014
    %v1019 = vmul.f32 %v1017, %v1015
    %v1020 = vadd.f32 %v970, %v1018
    %v1021 = vadd.f32 %v971, %v1019
    %s1022 = sld [smem:[#allocation4 + $0x36]]
    %v1023 = vstv %s1022
    %v1024 = vmul.f32 %v1023, %v1014
    %v1025 = vmul.f32 %v1023, %v1015
    %v1026 = vadd.f32 %v976, %v1024
    %v1027 = vadd.f32 %v977, %v1025
    %s1028 = sld [smem:[#allocation4 + $0x5a]]
    %v1029 = vstv %s1028
    %v1030 = vmul.f32 %v1029, %v1014
    %v1031 = vmul.f32 %v1029, %v1015
    %v1032 = vadd.f32 %v982, %v1030
    %v1033 = vadd.f32 %v983, %v1031
    %s1034 = sld [smem:[#allocation4 + $0x7e]]
    %v1035 = vstv %s1034
    %v1036 = vmul.f32 %v1035, %v1014
    %v1037 = vmul.f32 %v1035, %v1015
    %v1038 = vadd.f32 %v988, %v1036
    %v1039 = vadd.f32 %v989, %v1037
    %v1040 = vsel %vm107, %v993, 0.0
    %v1041 = vsel %vm108, %v992, 0.0
    %s1042 = sld [smem:[#allocation4 + $0x13]]
    %v1043 = vstv %s1042
    %v1044 = vmul.f32 %v1043, %v1040
    %v1045 = vmul.f32 %v1043, %v1041
    %v1046 = vadd.f32 %v1020, %v1044
    %v1047 = vadd.f32 %v1021, %v1045
    %s1048 = sld [smem:[#allocation4 + $0x37]]
    %v1049 = vstv %s1048
    %v1050 = vmul.f32 %v1049, %v1040
    %v1051 = vmul.f32 %v1049, %v1041
    %v1052 = vadd.f32 %v1026, %v1050
    %v1053 = vadd.f32 %v1027, %v1051
    %s1054 = sld [smem:[#allocation4 + $0x5b]]
    %v1055 = vstv %s1054
    %v1056 = vmul.f32 %v1055, %v1040
    %v1057 = vmul.f32 %v1055, %v1041
    %v1058 = vadd.f32 %v1032, %v1056
    %v1059 = vadd.f32 %v1033, %v1057
    %s1060 = sld [smem:[#allocation4 + $0x7f]]
    %v1061 = vstv %s1060
    %v1062 = vmul.f32 %v1061, %v1040
    %v1063 = vmul.f32 %v1061, %v1041
    %v1064 = vadd.f32 %v1038, %v1062
    %v1065 = vadd.f32 %v1039, %v1063
    %1066 = vrot.lane.b32.xlu0 %v1004, 127
    %v1067 = vpop.permute.xlu0 %1066
    %1068 = vrot.lane.b32.xlu0 %v1005, 127
    %v1069 = vpop.permute.xlu0 %1068
    %v1072 = vsel %vm423, %v1067, 0.0
    %v1073 = vsel %vm424, %v1069, 0.0
    %s1074 = sld [smem:[#allocation4 + $0x14]]
    %v1075 = vstv %s1074
    %v1076 = vmul.f32 %v1075, %v1072
    %v1077 = vmul.f32 %v1075, %v1073
    %v1078 = vadd.f32 %v1046, %v1076
    %v1079 = vadd.f32 %v1047, %v1077
    %s1080 = sld [smem:[#allocation4 + $0x38]]
    %v1081 = vstv %s1080
    %v1082 = vmul.f32 %v1081, %v1072
    %v1083 = vmul.f32 %v1081, %v1073
    %v1084 = vadd.f32 %v1052, %v1082
    %v1085 = vadd.f32 %v1053, %v1083
    %s1086 = sld [smem:[#allocation4 + $0x5c]]
    %v1087 = vstv %s1086
    %v1088 = vmul.f32 %v1087, %v1072
    %v1089 = vmul.f32 %v1087, %v1073
    %v1090 = vadd.f32 %v1058, %v1088
    %v1091 = vadd.f32 %v1059, %v1089
    %s1092 = sld [smem:[#allocation4 + $0x80]]
    %v1093 = vstv %s1092
    %v1094 = vmul.f32 %v1093, %v1072
    %v1095 = vmul.f32 %v1093, %v1073
    %v1096 = vadd.f32 %v1064, %v1094
    %v1097 = vadd.f32 %v1065, %v1095
    %1098 = vrot.lane.b32.xlu0 %v293, 32
    %v1099 = vpop.permute.xlu0 %1098
    %v1100 = vsel %vm348, %v1099, %v293
    %1101 = vrot.lane.b32.xlu0 %v294, 32
    %v1102 = vpop.permute.xlu0 %1101
    %v1103 = vsel %vm348, %v1102, %v294
    %1104 = vrot.lane.b32.xlu0 %v1100, 32
    %v1105 = vpop.permute.xlu0 %1104
    %1106 = vrot.lane.b32.xlu0 %v1103, 32
    %v1107 = vpop.permute.xlu0 %1106
    %v1108 = vsel %vm348, %v1105, %v293
    %v1109 = vsel %vm348, %v1107, %v294
    %1112 = vrot.lane.b32.xlu0 %v1108, 97
    %v1113 = vpop.permute.xlu0 %1112
    %1114 = vrot.lane.b32.xlu0 %v1109, 97
    %v1115 = vpop.permute.xlu0 %1114
    %v1118 = vsel %vm114, %v1113, 0.0
    %v1119 = vsel %vm114, %v1115, 0.0
    %s1120 = sld [smem:[#allocation4 + $0x15]]
    %v1121 = vstv %s1120
    %v1122 = vmul.f32 %v1121, %v1118
    %v1123 = vmul.f32 %v1121, %v1119
    %v1124 = vadd.f32 %v1078, %v1122
    %v1125 = vadd.f32 %v1079, %v1123
    %s1126 = sld [smem:[#allocation4 + $0x39]]
    %v1127 = vstv %s1126
    %v1128 = vmul.f32 %v1127, %v1118
    %v1129 = vmul.f32 %v1127, %v1119
    %v1130 = vadd.f32 %v1084, %v1128
    %v1131 = vadd.f32 %v1085, %v1129
    %s1132 = sld [smem:[#allocation4 + $0x5d]]
    %v1133 = vstv %s1132
    %v1134 = vmul.f32 %v1133, %v1118
    %v1135 = vmul.f32 %v1133, %v1119
    %v1136 = vadd.f32 %v1090, %v1134
    %v1137 = vadd.f32 %v1091, %v1135
    %s1138 = sld [smem:[#allocation4 + $0x81]]
    %v1139 = vstv %s1138
    %v1140 = vmul.f32 %v1139, %v1118
    %v1141 = vmul.f32 %v1139, %v1119
    %v1142 = vadd.f32 %v1096, %v1140
    %v1143 = vadd.f32 %v1097, %v1141
    %s1144 = sld [smem:[#allocation4 + $0x16]]
    %v1145 = vstv %s1144
    %v1146 = vmul.f32 %v1145, %v293
    %v1147 = vmul.f32 %v1145, %v294
    %v1148 = vadd.f32 %v1124, %v1146
    %v1149 = vadd.f32 %v1125, %v1147
    %s1150 = sld [smem:[#allocation4 + $0x3a]]
    %v1151 = vstv %s1150
    %v1152 = vmul.f32 %v1151, %v293
    %v1153 = vmul.f32 %v1151, %v294
    %v1154 = vadd.f32 %v1130, %v1152
    %v1155 = vadd.f32 %v1131, %v1153
    %s1156 = sld [smem:[#allocation4 + $0x5e]]
    %v1157 = vstv %s1156
    %v1158 = vmul.f32 %v1157, %v293
    %v1159 = vmul.f32 %v1157, %v294
    %v1160 = vadd.f32 %v1136, %v1158
    %v1161 = vadd.f32 %v1137, %v1159
    %s1162 = sld [smem:[#allocation4 + $0x82]]
    %v1163 = vstv %s1162
    %v1164 = vmul.f32 %v1163, %v293
    %v1165 = vmul.f32 %v1163, %v294
    %v1166 = vadd.f32 %v1142, %v1164
    %v1167 = vadd.f32 %v1143, %v1165
    %1168 = vrot.lane.b32.xlu0 %v1108, 127
    %v1169 = vpop.permute.xlu0 %1168
    %1170 = vrot.lane.b32.xlu0 %v1109, 127
    %v1171 = vpop.permute.xlu0 %1170
    %v1174 = vsel %vm116, %v1169, 0.0
    %v1175 = vsel %vm116, %v1171, 0.0
    %s1176 = sld [smem:[#allocation4 + $0x17]]
    %v1177 = vstv %s1176
    %v1178 = vmul.f32 %v1177, %v1174
    %v1179 = vmul.f32 %v1177, %v1175
    %v1180 = vadd.f32 %v1148, %v1178
    %v1181 = vadd.f32 %v1149, %v1179
    %s1182 = sld [smem:[#allocation4 + $0x3b]]
    %v1183 = vstv %s1182
    %v1184 = vmul.f32 %v1183, %v1174
    %v1185 = vmul.f32 %v1183, %v1175
    %v1186 = vadd.f32 %v1154, %v1184
    %v1187 = vadd.f32 %v1155, %v1185
    %s1188 = sld [smem:[#allocation4 + $0x5f]]
    %v1189 = vstv %s1188
    %v1190 = vmul.f32 %v1189, %v1174
    %v1191 = vmul.f32 %v1189, %v1175
    %v1192 = vadd.f32 %v1160, %v1190
    %v1193 = vadd.f32 %v1161, %v1191
    %s1194 = sld [smem:[#allocation4 + $0x83]]
    %v1195 = vstv %s1194
    %v1196 = vmul.f32 %v1195, %v1174
    %v1197 = vmul.f32 %v1195, %v1175
    %v1198 = vadd.f32 %v1166, %v1196
    %v1199 = vadd.f32 %v1167, %v1197
    %v1200 = vrot.slane %v293, 1
    %v1201 = vrot.slane %v294, 1
    %v1202 = vsel %vm561, %v1200, %v1201
    %v1203 = vsel %vm561, %v1201, %v1200
    %1204 = vrot.lane.b32.xlu0 %v1202, 32
    %v1205 = vpop.permute.xlu0 %1204
    %v1206 = vsel %vm348, %v1205, %v1202
    %1207 = vrot.lane.b32.xlu0 %v1203, 32
    %v1208 = vpop.permute.xlu0 %1207
    %v1209 = vsel %vm348, %v1208, %v1203
    %1210 = vrot.lane.b32.xlu0 %v1206, 32
    %v1211 = vpop.permute.xlu0 %1210
    %1212 = vrot.lane.b32.xlu0 %v1209, 32
    %v1213 = vpop.permute.xlu0 %1212
    %v1214 = vsel %vm348, %v1211, %v1202
    %v1215 = vsel %vm348, %v1213, %v1203
    %1218 = vrot.lane.b32.xlu0 %v1214, 97
    %v1219 = vpop.permute.xlu0 %1218
    %1220 = vrot.lane.b32.xlu0 %v1215, 97
    %v1221 = vpop.permute.xlu0 %1220
    %v1224 = vsel %vm576, %v1219, 0.0
    %v1225 = vsel %vm577, %v1221, 0.0
    %s1226 = sld [smem:[#allocation4 + $0x18]]
    %v1227 = vstv %s1226
    %v1228 = vmul.f32 %v1227, %v1224
    %v1229 = vmul.f32 %v1227, %v1225
    %v1230 = vadd.f32 %v1180, %v1228
    %v1231 = vadd.f32 %v1181, %v1229
    %s1232 = sld [smem:[#allocation4 + $0x3c]]
    %v1233 = vstv %s1232
    %v1234 = vmul.f32 %v1233, %v1224
    %v1235 = vmul.f32 %v1233, %v1225
    %v1236 = vadd.f32 %v1186, %v1234
    %v1237 = vadd.f32 %v1187, %v1235
    %s1238 = sld [smem:[#allocation4 + $0x60]]
    %v1239 = vstv %s1238
    %v1240 = vmul.f32 %v1239, %v1224
    %v1241 = vmul.f32 %v1239, %v1225
    %v1242 = vadd.f32 %v1192, %v1240
    %v1243 = vadd.f32 %v1193, %v1241
    %s1244 = sld [smem:[#allocation4 + $0x84]]
    %v1245 = vstv %s1244
    %v1246 = vmul.f32 %v1245, %v1224
    %v1247 = vmul.f32 %v1245, %v1225
    %v1248 = vadd.f32 %v1198, %v1246
    %v1249 = vadd.f32 %v1199, %v1247
    %v1250 = vsel %vm109, %v1202, 0.0
    %v1251 = vsel %vm110, %v1203, 0.0
    %s1252 = sld [smem:[#allocation4 + $0x19]]
    %v1253 = vstv %s1252
    %v1254 = vmul.f32 %v1253, %v1250
    %v1255 = vmul.f32 %v1253, %v1251
    %v1256 = vadd.f32 %v1230, %v1254
    %v1257 = vadd.f32 %v1231, %v1255
    %s1258 = sld [smem:[#allocation4 + $0x3d]]
    %v1259 = vstv %s1258
    %v1260 = vmul.f32 %v1259, %v1250
    %v1261 = vmul.f32 %v1259, %v1251
    %v1262 = vadd.f32 %v1236, %v1260
    %v1263 = vadd.f32 %v1237, %v1261
    %s1264 = sld [smem:[#allocation4 + $0x61]]
    %v1265 = vstv %s1264
    %v1266 = vmul.f32 %v1265, %v1250
    %v1267 = vmul.f32 %v1265, %v1251
    %v1268 = vadd.f32 %v1242, %v1266
    %v1269 = vadd.f32 %v1243, %v1267
    %s1270 = sld [smem:[#allocation4 + $0x85]]
    %v1271 = vstv %s1270
    %v1272 = vmul.f32 %v1271, %v1250
    %v1273 = vmul.f32 %v1271, %v1251
    %v1274 = vadd.f32 %v1248, %v1272
    %v1275 = vadd.f32 %v1249, %v1273
    %1276 = vrot.lane.b32.xlu0 %v1214, 127
    %v1277 = vpop.permute.xlu0 %1276
    %1278 = vrot.lane.b32.xlu0 %v1215, 127
    %v1279 = vpop.permute.xlu0 %1278
    %v1282 = vsel %vm638, %v1277, 0.0
    %v1283 = vsel %vm639, %v1279, 0.0
    %s1284 = sld [smem:[#allocation4 + $0x1a]]
    %v1285 = vstv %s1284
    %v1286 = vmul.f32 %v1285, %v1282
    %v1287 = vmul.f32 %v1285, %v1283
    %v1288 = vadd.f32 %v1256, %v1286
    %v1289 = vadd.f32 %v1257, %v1287
    %s1290 = sld [smem:[#allocation4 + $0x3e]]
    %v1291 = vstv %s1290
    %v1292 = vmul.f32 %v1291, %v1282
    %v1293 = vmul.f32 %v1291, %v1283
    %v1294 = vadd.f32 %v1262, %v1292
    %v1295 = vadd.f32 %v1263, %v1293
    %s1296 = sld [smem:[#allocation4 + $0x62]]
    %v1297 = vstv %s1296
    %v1298 = vmul.f32 %v1297, %v1282
    %v1299 = vmul.f32 %v1297, %v1283
    %v1300 = vadd.f32 %v1268, %v1298
    %v1301 = vadd.f32 %v1269, %v1299
    %s1302 = sld [smem:[#allocation4 + $0x86]]
    %v1303 = vstv %s1302
    %v1304 = vmul.f32 %v1303, %v1282
    %v1305 = vmul.f32 %v1303, %v1283
    %v1306 = vadd.f32 %v1274, %v1304
    %v1307 = vadd.f32 %v1275, %v1305
    %v1308 = vrot.slane %v341, 7
    %v1309 = vrot.slane %v342, 7
    %v1310 = vsel %vm345, %v1308, %v1309
    %v1311 = vsel %vm345, %v1309, %v1308
    %1312 = vrot.lane.b32.xlu0 %v1311, 32
    %v1313 = vpop.permute.xlu0 %1312
    %v1314 = vsel %vm348, %v1313, %v1311
    %1315 = vrot.lane.b32.xlu0 %v1310, 32
    %v1316 = vpop.permute.xlu0 %1315
    %v1317 = vsel %vm348, %v1316, %v1310
    %1318 = vrot.lane.b32.xlu0 %v1314, 32
    %v1319 = vpop.permute.xlu0 %1318
    %1320 = vrot.lane.b32.xlu0 %v1317, 32
    %v1321 = vpop.permute.xlu0 %1320
    %v1322 = vsel %vm348, %v1319, %v1311
    %v1323 = vsel %vm348, %v1321, %v1310
    %1326 = vrot.lane.b32.xlu0 %v1322, 97
    %v1327 = vpop.permute.xlu0 %1326
    %1328 = vrot.lane.b32.xlu0 %v1323, 97
    %v1329 = vpop.permute.xlu0 %1328
    %v1332 = vsel %vm361, %v1327, 0.0
    %v1333 = vsel %vm362, %v1329, 0.0
    %s1334 = sld [smem:[#allocation4 + $0x1b]]
    %v1335 = vstv %s1334
    %v1336 = vmul.f32 %v1335, %v1332
    %v1337 = vmul.f32 %v1335, %v1333
    %v1338 = vadd.f32 %v1288, %v1336
    %v1339 = vadd.f32 %v1289, %v1337
    %s1340 = sld [smem:[#allocation4 + $0x3f]]
    %v1341 = vstv %s1340
    %v1342 = vmul.f32 %v1341, %v1332
    %v1343 = vmul.f32 %v1341, %v1333
    %v1344 = vadd.f32 %v1294, %v1342
    %v1345 = vadd.f32 %v1295, %v1343
    %s1346 = sld [smem:[#allocation4 + $0x63]]
    %v1347 = vstv %s1346
    %v1348 = vmul.f32 %v1347, %v1332
    %v1349 = vmul.f32 %v1347, %v1333
    %v1350 = vadd.f32 %v1300, %v1348
    %v1351 = vadd.f32 %v1301, %v1349
    %s1352 = sld [smem:[#allocation4 + $0x87]]
    %v1353 = vstv %s1352
    %v1354 = vmul.f32 %v1353, %v1332
    %v1355 = vmul.f32 %v1353, %v1333
    %v1356 = vadd.f32 %v1306, %v1354
    %v1357 = vadd.f32 %v1307, %v1355
    %v1358 = vsel %vm107, %v1311, 0.0
    %v1359 = vsel %vm108, %v1310, 0.0
    %s1360 = sld [smem:[#allocation4 + $0x1c]]
    %v1361 = vstv %s1360
    %v1362 = vmul.f32 %v1361, %v1358
    %v1363 = vmul.f32 %v1361, %v1359
    %v1364 = vadd.f32 %v1338, %v1362
    %v1365 = vadd.f32 %v1339, %v1363
    %s1366 = sld [smem:[#allocation4 + $0x40]]
    %v1367 = vstv %s1366
    %v1368 = vmul.f32 %v1367, %v1358
    %v1369 = vmul.f32 %v1367, %v1359
    %v1370 = vadd.f32 %v1344, %v1368
    %v1371 = vadd.f32 %v1345, %v1369
    %s1372 = sld [smem:[#allocation4 + $0x64]]
    %v1373 = vstv %s1372
    %v1374 = vmul.f32 %v1373, %v1358
    %v1375 = vmul.f32 %v1373, %v1359
    %v1376 = vadd.f32 %v1350, %v1374
    %v1377 = vadd.f32 %v1351, %v1375
    %s1378 = sld [smem:[#allocation4 + $0x88]]
    %v1379 = vstv %s1378
    %v1380 = vmul.f32 %v1379, %v1358
    %v1381 = vmul.f32 %v1379, %v1359
    %v1382 = vadd.f32 %v1356, %v1380
    %v1383 = vadd.f32 %v1357, %v1381
    %1384 = vrot.lane.b32.xlu0 %v1322, 127
    %v1385 = vpop.permute.xlu0 %1384
    %1386 = vrot.lane.b32.xlu0 %v1323, 127
    %v1387 = vpop.permute.xlu0 %1386
    %v1390 = vsel %vm423, %v1385, 0.0
    %v1391 = vsel %vm424, %v1387, 0.0
    %s1392 = sld [smem:[#allocation4 + $0x1d]]
    %v1393 = vstv %s1392
    %v1394 = vmul.f32 %v1393, %v1390
    %v1395 = vmul.f32 %v1393, %v1391
    %v1396 = vadd.f32 %v1364, %v1394
    %v1397 = vadd.f32 %v1365, %v1395
    %s1398 = sld [smem:[#allocation4 + $0x41]]
    %v1399 = vstv %s1398
    %v1400 = vmul.f32 %v1399, %v1390
    %v1401 = vmul.f32 %v1399, %v1391
    %v1402 = vadd.f32 %v1370, %v1400
    %v1403 = vadd.f32 %v1371, %v1401
    %s1404 = sld [smem:[#allocation4 + $0x65]]
    %v1405 = vstv %s1404
    %v1406 = vmul.f32 %v1405, %v1390
    %v1407 = vmul.f32 %v1405, %v1391
    %v1408 = vadd.f32 %v1376, %v1406
    %v1409 = vadd.f32 %v1377, %v1407
    %s1410 = sld [smem:[#allocation4 + $0x89]]
    %v1411 = vstv %s1410
    %v1412 = vmul.f32 %v1411, %v1390
    %v1413 = vmul.f32 %v1411, %v1391
    %v1414 = vadd.f32 %v1382, %v1412
    %v1415 = vadd.f32 %v1383, %v1413
    %1416 = vrot.lane.b32.xlu0 %v341, 32
    %v1417 = vpop.permute.xlu0 %1416
    %v1418 = vsel %vm348, %v1417, %v341
    %1419 = vrot.lane.b32.xlu0 %v342, 32
    %v1420 = vpop.permute.xlu0 %1419
    %v1421 = vsel %vm348, %v1420, %v342
    %1422 = vrot.lane.b32.xlu0 %v1418, 32
    %v1423 = vpop.permute.xlu0 %1422
    %1424 = vrot.lane.b32.xlu0 %v1421, 32
    %v1425 = vpop.permute.xlu0 %1424
    %v1426 = vsel %vm348, %v1423, %v341
    %v1427 = vsel %vm348, %v1425, %v342
    %1430 = vrot.lane.b32.xlu0 %v1426, 97
    %v1431 = vpop.permute.xlu0 %1430
    %1432 = vrot.lane.b32.xlu0 %v1427, 97
    %v1433 = vpop.permute.xlu0 %1432
    %v1436 = vsel %vm114, %v1431, 0.0
    %v1437 = vsel %vm114, %v1433, 0.0
    %s1438 = sld [smem:[#allocation4 + $0x1e]]
    %v1439 = vstv %s1438
    %v1440 = vmul.f32 %v1439, %v1436
    %v1441 = vmul.f32 %v1439, %v1437
    %v1442 = vadd.f32 %v1396, %v1440
    %v1443 = vadd.f32 %v1397, %v1441
    %s1444 = sld [smem:[#allocation4 + $0x42]]
    %v1445 = vstv %s1444
    %v1446 = vmul.f32 %v1445, %v1436
    %v1447 = vmul.f32 %v1445, %v1437
    %v1448 = vadd.f32 %v1402, %v1446
    %v1449 = vadd.f32 %v1403, %v1447
    %s1450 = sld [smem:[#allocation4 + $0x66]]
    %v1451 = vstv %s1450
    %v1452 = vmul.f32 %v1451, %v1436
    %v1453 = vmul.f32 %v1451, %v1437
    %v1454 = vadd.f32 %v1408, %v1452
    %v1455 = vadd.f32 %v1409, %v1453
    %s1456 = sld [smem:[#allocation4 + $0x8a]]
    %v1457 = vstv %s1456
    %v1458 = vmul.f32 %v1457, %v1436
    %v1459 = vmul.f32 %v1457, %v1437
    %v1460 = vadd.f32 %v1414, %v1458
    %v1461 = vadd.f32 %v1415, %v1459
    %s1462 = sld [smem:[#allocation4 + $0x1f]]
    %v1463 = vstv %s1462
    %v1464 = vmul.f32 %v1463, %v341
    %v1465 = vmul.f32 %v1463, %v342
    %v1466 = vadd.f32 %v1442, %v1464
    %v1467 = vadd.f32 %v1443, %v1465
    %s1468 = sld [smem:[#allocation4 + $0x43]]
    %v1469 = vstv %s1468
    %v1470 = vmul.f32 %v1469, %v341
    %v1471 = vmul.f32 %v1469, %v342
    %v1472 = vadd.f32 %v1448, %v1470
    %v1473 = vadd.f32 %v1449, %v1471
    %s1474 = sld [smem:[#allocation4 + $0x67]]
    %v1475 = vstv %s1474
    %v1476 = vmul.f32 %v1475, %v341
    %v1477 = vmul.f32 %v1475, %v342
    %v1478 = vadd.f32 %v1454, %v1476
    %v1479 = vadd.f32 %v1455, %v1477
    %s1480 = sld [smem:[#allocation4 + $0x8b]]
    %v1481 = vstv %s1480
    %v1482 = vmul.f32 %v1481, %v341
    %v1483 = vmul.f32 %v1481, %v342
    %v1484 = vadd.f32 %v1460, %v1482
    %v1485 = vadd.f32 %v1461, %v1483
    %1486 = vrot.lane.b32.xlu0 %v1426, 127
    %v1487 = vpop.permute.xlu0 %1486
    %1488 = vrot.lane.b32.xlu0 %v1427, 127
    %v1489 = vpop.permute.xlu0 %1488
    %v1492 = vsel %vm116, %v1487, 0.0
    %v1493 = vsel %vm116, %v1489, 0.0
    %s1494 = sld [smem:[#allocation4 + $0x20]]
    %v1495 = vstv %s1494
    %v1496 = vmul.f32 %v1495, %v1492
    %v1497 = vmul.f32 %v1495, %v1493
    %v1498 = vadd.f32 %v1466, %v1496
    %v1499 = vadd.f32 %v1467, %v1497
    %s1500 = sld [smem:[#allocation4 + $0x44]]
    %v1501 = vstv %s1500
    %v1502 = vmul.f32 %v1501, %v1492
    %v1503 = vmul.f32 %v1501, %v1493
    %v1504 = vadd.f32 %v1472, %v1502
    %v1505 = vadd.f32 %v1473, %v1503
    %s1506 = sld [smem:[#allocation4 + $0x68]]
    %v1507 = vstv %s1506
    %v1508 = vmul.f32 %v1507, %v1492
    %v1509 = vmul.f32 %v1507, %v1493
    %v1510 = vadd.f32 %v1478, %v1508
    %v1511 = vadd.f32 %v1479, %v1509
    %s1512 = sld [smem:[#allocation4 + $0x8c]]
    %v1513 = vstv %s1512
    %v1514 = vmul.f32 %v1513, %v1492
    %v1515 = vmul.f32 %v1513, %v1493
    %v1516 = vadd.f32 %v1484, %v1514
    %v1517 = vadd.f32 %v1485, %v1515
    %v1518 = vrot.slane %v341, 1
    %v1519 = vrot.slane %v342, 1
    %v1520 = vsel %vm561, %v1518, %v1519
    %v1521 = vsel %vm561, %v1519, %v1518
    %1522 = vrot.lane.b32.xlu0 %v1520, 32
    %v1523 = vpop.permute.xlu0 %1522
    %v1524 = vsel %vm348, %v1523, %v1520
    %1525 = vrot.lane.b32.xlu0 %v1521, 32
    %v1526 = vpop.permute.xlu0 %1525
    %v1527 = vsel %vm348, %v1526, %v1521
    %1528 = vrot.lane.b32.xlu0 %v1524, 32
    %v1529 = vpop.permute.xlu0 %1528
    %1530 = vrot.lane.b32.xlu0 %v1527, 32
    %v1531 = vpop.permute.xlu0 %1530
    %v1532 = vsel %vm348, %v1529, %v1520
    %v1533 = vsel %vm348, %v1531, %v1521
    %1536 = vrot.lane.b32.xlu0 %v1532, 97
    %v1537 = vpop.permute.xlu0 %1536
    %1538 = vrot.lane.b32.xlu0 %v1533, 97
    %v1539 = vpop.permute.xlu0 %1538
    %v1542 = vsel %vm576, %v1537, 0.0
    %v1543 = vsel %vm577, %v1539, 0.0
    %s1544 = sld [smem:[#allocation4 + $0x21]]
    %v1545 = vstv %s1544
    %v1546 = vmul.f32 %v1545, %v1542
    %v1547 = vmul.f32 %v1545, %v1543
    %v1548 = vadd.f32 %v1498, %v1546
    %v1549 = vadd.f32 %v1499, %v1547
    %s1550 = sld [smem:[#allocation4 + $0x45]]
    %v1551 = vstv %s1550
    %v1552 = vmul.f32 %v1551, %v1542
    %v1553 = vmul.f32 %v1551, %v1543
    %v1554 = vadd.f32 %v1504, %v1552
    %v1555 = vadd.f32 %v1505, %v1553
    %s1556 = sld [smem:[#allocation4 + $0x69]]
    %v1557 = vstv %s1556
    %v1558 = vmul.f32 %v1557, %v1542
    %v1559 = vmul.f32 %v1557, %v1543
    %v1560 = vadd.f32 %v1510, %v1558
    %v1561 = vadd.f32 %v1511, %v1559
    %s1562 = sld [smem:[#allocation4 + $0x8d]]
    %v1563 = vstv %s1562
    %v1564 = vmul.f32 %v1563, %v1542
    %v1565 = vmul.f32 %v1563, %v1543
    %v1566 = vadd.f32 %v1516, %v1564
    %v1567 = vadd.f32 %v1517, %v1565
    %v1568 = vsel %vm109, %v1520, 0.0
    %v1569 = vsel %vm110, %v1521, 0.0
    %s1570 = sld [smem:[#allocation4 + $0x22]]
    %v1571 = vstv %s1570
    %v1572 = vmul.f32 %v1571, %v1568
    %v1573 = vmul.f32 %v1571, %v1569
    %v1574 = vadd.f32 %v1548, %v1572
    %v1575 = vadd.f32 %v1549, %v1573
    %s1576 = sld [smem:[#allocation4 + $0x46]]
    %v1577 = vstv %s1576
    %v1578 = vmul.f32 %v1577, %v1568
    %v1579 = vmul.f32 %v1577, %v1569
    %v1580 = vadd.f32 %v1554, %v1578
    %v1581 = vadd.f32 %v1555, %v1579
    %s1582 = sld [smem:[#allocation4 + $0x6a]]
    %v1583 = vstv %s1582
    %v1584 = vmul.f32 %v1583, %v1568
    %v1585 = vmul.f32 %v1583, %v1569
    %v1586 = vadd.f32 %v1560, %v1584
    %v1587 = vadd.f32 %v1561, %v1585
    %s1588 = sld [smem:[#allocation4 + $0x8e]]
    %v1589 = vstv %s1588
    %v1590 = vmul.f32 %v1589, %v1568
    %v1591 = vmul.f32 %v1589, %v1569
    %v1592 = vadd.f32 %v1566, %v1590
    %v1593 = vadd.f32 %v1567, %v1591
    %1594 = vrot.lane.b32.xlu0 %v1532, 127
    %v1595 = vpop.permute.xlu0 %1594
    %1596 = vrot.lane.b32.xlu0 %v1533, 127
    %v1597 = vpop.permute.xlu0 %1596
    %v1600 = vsel %vm638, %v1595, 0.0
    %v1601 = vsel %vm639, %v1597, 0.0
    %s1602 = sld [smem:[#allocation4 + $0x23]]
    %v1603 = vstv %s1602
    %v1604 = vmul.f32 %v1603, %v1600
    %v1605 = vmul.f32 %v1603, %v1601
    %v1606 = vadd.f32 %v1574, %v1604
    %v1607 = vadd.f32 %v1575, %v1605
    %s1608 = sld [smem:[#allocation4 + $0x47]]
    %v1609 = vstv %s1608
    %v1610 = vmul.f32 %v1609, %v1600
    %v1611 = vmul.f32 %v1609, %v1601
    %v1612 = vadd.f32 %v1580, %v1610
    %v1613 = vadd.f32 %v1581, %v1611
    %s1614 = sld [smem:[#allocation4 + $0x6b]]
    %v1615 = vstv %s1614
    %v1616 = vmul.f32 %v1615, %v1600
    %v1617 = vmul.f32 %v1615, %v1601
    %v1618 = vadd.f32 %v1586, %v1616
    %v1619 = vadd.f32 %v1587, %v1617
    %s1620 = sld [smem:[#allocation4 + $0x8f]]
    %v1621 = vstv %s1620
    %v1622 = vmul.f32 %v1621, %v1600
    %v1623 = vmul.f32 %v1621, %v1601
    %v1624 = vadd.f32 %v1592, %v1622
    %v1625 = vadd.f32 %v1593, %v1623
    %s1626 = sld [smem:[#allocation6 + $0x4]]
    %v1627 = vstv %s1626
    %v1628 = vmul.f32 %v1627, %v147
    %v1629 = vmul.f32 %v1627, %v148
    %s1630 = sld [smem:[#allocation6]]
    %v1631 = vrot.slane %v147, 7
    %v1632 = vrot.slane %v148, 7
    %v1633 = vsel %vm345, %v1631, %v1632
    %v1634 = vsel %vm345, %v1632, %v1631
    %1635 = vrot.lane.b32.xlu0 %v1634, 32
    %v1636 = vpop.permute.xlu0 %1635
    %v1637 = vsel %vm348, %v1636, %v1634
    %1638 = vrot.lane.b32.xlu0 %v1633, 32
    %v1639 = vpop.permute.xlu0 %1638
    %v1640 = vsel %vm348, %v1639, %v1633
    %1641 = vrot.lane.b32.xlu0 %v1637, 32
    %v1642 = vpop.permute.xlu0 %1641
    %1643 = vrot.lane.b32.xlu0 %v1640, 32
    %v1644 = vpop.permute.xlu0 %1643
    %v1645 = vsel %vm348, %v1642, %v1634
    %v1646 = vsel %vm348, %v1644, %v1633
    %1649 = vrot.lane.b32.xlu0 %v1645, 97
    %v1650 = vpop.permute.xlu0 %1649
    %1651 = vrot.lane.b32.xlu0 %v1646, 97
    %v1652 = vpop.permute.xlu0 %1651
    %v1655 = vsel %vm361, %v1650, 0.0
    %v1656 = vsel %vm362, %v1652, 0.0
    %v1657 = vstv %s1630
    %v1658 = vmul.f32 %v1657, %v1655
    %v1659 = vmul.f32 %v1657, %v1656
    %v1660 = vadd.f32 %v1628, %v1658
    %v1661 = vadd.f32 %v1629, %v1659
    %s1662 = sld [smem:[#allocation6 + $0x1]]
    %v1663 = vsel %vm107, %v1634, 0.0
    %v1664 = vsel %vm108, %v1633, 0.0
    %v1665 = vstv %s1662
    %v1666 = vmul.f32 %v1665, %v1663
    %v1667 = vmul.f32 %v1665, %v1664
    %v1668 = vadd.f32 %v1660, %v1666
    %v1669 = vadd.f32 %v1661, %v1667
    %s1670 = sld [smem:[#allocation6 + $0x2]]
    %1671 = vrot.lane.b32.xlu0 %v1645, 127
    %v1672 = vpop.permute.xlu0 %1671
    %1673 = vrot.lane.b32.xlu0 %v1646, 127
    %v1674 = vpop.permute.xlu0 %1673
    %v1677 = vsel %vm423, %v1672, 0.0
    %v1678 = vsel %vm424, %v1674, 0.0
    %v1679 = vstv %s1670
    %v1680 = vmul.f32 %v1679, %v1677
    %v1681 = vmul.f32 %v1679, %v1678
    %v1682 = vadd.f32 %v1668, %v1680
    %v1683 = vadd.f32 %v1669, %v1681
    %s1684 = sld [smem:[#allocation6 + $0x3]]
    %1685 = vrot.lane.b32.xlu0 %v147, 32
    %v1686 = vpop.permute.xlu0 %1685
    %v1687 = vsel %vm348, %v1686, %v147
    %1688 = vrot.lane.b32.xlu0 %v148, 32
    %v1689 = vpop.permute.xlu0 %1688
    %v1690 = vsel %vm348, %v1689, %v148
    %1691 = vrot.lane.b32.xlu0 %v1687, 32
    %v1692 = vpop.permute.xlu0 %1691
    %1693 = vrot.lane.b32.xlu0 %v1690, 32
    %v1694 = vpop.permute.xlu0 %1693
    %v1695 = vsel %vm348, %v1692, %v147
    %v1696 = vsel %vm348, %v1694, %v148
    %1699 = vrot.lane.b32.xlu0 %v1695, 97
    %v1700 = vpop.permute.xlu0 %1699
    %1701 = vrot.lane.b32.xlu0 %v1696, 97
    %v1702 = vpop.permute.xlu0 %1701
    %v1705 = vsel %vm114, %v1700, 0.0
    %v1706 = vsel %vm114, %v1702, 0.0
    %v1707 = vstv %s1684
    %v1708 = vmul.f32 %v1707, %v1705
    %v1709 = vmul.f32 %v1707, %v1706
    %v1710 = vadd.f32 %v1682, %v1708
    %v1711 = vadd.f32 %v1683, %v1709
    %s1712 = sld [smem:[#allocation6 + $0x5]]
    %1713 = vrot.lane.b32.xlu0 %v1695, 127
    %v1714 = vpop.permute.xlu0 %1713
    %1715 = vrot.lane.b32.xlu0 %v1696, 127
    %v1716 = vpop.permute.xlu0 %1715
    %v1719 = vsel %vm116, %v1714, 0.0
    %v1720 = vsel %vm116, %v1716, 0.0
    %v1721 = vstv %s1712
    %v1722 = vmul.f32 %v1721, %v1719
    %v1723 = vmul.f32 %v1721, %v1720
    %v1724 = vadd.f32 %v1710, %v1722
    %v1725 = vadd.f32 %v1711, %v1723
    %s1726 = sld [smem:[#allocation6 + $0x6]]
    %v1727 = vrot.slane %v147, 1
    %v1728 = vrot.slane %v148, 1
    %v1729 = vsel %vm561, %v1727, %v1728
    %v1730 = vsel %vm561, %v1728, %v1727
    %1731 = vrot.lane.b32.xlu0 %v1729, 32
    %v1732 = vpop.permute.xlu0 %1731
    %v1733 = vsel %vm348, %v1732, %v1729
    %1734 = vrot.lane.b32.xlu0 %v1730, 32
    %v1735 = vpop.permute.xlu0 %1734
    %v1736 = vsel %vm348, %v1735, %v1730
    %1737 = vrot.lane.b32.xlu0 %v1733, 32
    %v1738 = vpop.permute.xlu0 %1737
    %1739 = vrot.lane.b32.xlu0 %v1736, 32
    %v1740 = vpop.permute.xlu0 %1739
    %v1741 = vsel %vm348, %v1738, %v1729
    %v1742 = vsel %vm348, %v1740, %v1730
    %1745 = vrot.lane.b32.xlu0 %v1741, 97
    %v1746 = vpop.permute.xlu0 %1745
    %1747 = vrot.lane.b32.xlu0 %v1742, 97
    %v1748 = vpop.permute.xlu0 %1747
    %v1751 = vsel %vm576, %v1746, 0.0
    %v1752 = vsel %vm577, %v1748, 0.0
    %v1753 = vstv %s1726
    %v1754 = vmul.f32 %v1753, %v1751
    %v1755 = vmul.f32 %v1753, %v1752
    %v1756 = vadd.f32 %v1724, %v1754
    %v1757 = vadd.f32 %v1725, %v1755
    %s1758 = sld [smem:[#allocation6 + $0x7]]
    %v1759 = vsel %vm109, %v1729, 0.0
    %v1760 = vsel %vm110, %v1730, 0.0
    %v1761 = vstv %s1758
    %v1762 = vmul.f32 %v1761, %v1759
    %v1763 = vmul.f32 %v1761, %v1760
    %v1764 = vadd.f32 %v1756, %v1762
    %v1765 = vadd.f32 %v1757, %v1763
    %s1766 = sld [smem:[#allocation6 + $0x8]]
    %1767 = vrot.lane.b32.xlu0 %v1741, 127
    %v1768 = vpop.permute.xlu0 %1767
    %1769 = vrot.lane.b32.xlu0 %v1742, 127
    %v1770 = vpop.permute.xlu0 %1769
    %v1773 = vsel %vm638, %v1768, 0.0
    %v1774 = vsel %vm639, %v1770, 0.0
    %v1775 = vstv %s1766
    %v1776 = vmul.f32 %v1775, %v1773
    %v1777 = vmul.f32 %v1775, %v1774
    %v1778 = vadd.f32 %v1764, %v1776
    %v1779 = vadd.f32 %v1765, %v1777
    %s1780 = sld [smem:[#allocation7 + $0x4]]
    %v1781 = vstv %s1780
    %v1782 = vmul.f32 %v1781, %v1778
    %v1783 = vmul.f32 %v1781, %v1779
    %s1784 = sld [smem:[#allocation7]]
    %v1785 = vrot.slane %v1778, 7
    %v1786 = vrot.slane %v1779, 7
    %v1787 = vsel %vm345, %v1785, %v1786
    %v1788 = vsel %vm345, %v1786, %v1785
    %1789 = vrot.lane.b32.xlu0 %v1788, 32
    %v1790 = vpop.permute.xlu0 %1789
    %v1791 = vsel %vm348, %v1790, %v1788
    %1792 = vrot.lane.b32.xlu0 %v1787, 32
    %v1793 = vpop.permute.xlu0 %1792
    %v1794 = vsel %vm348, %v1793, %v1787
    %1795 = vrot.lane.b32.xlu0 %v1791, 32
    %v1796 = vpop.permute.xlu0 %1795
    %1797 = vrot.lane.b32.xlu0 %v1794, 32
    %v1798 = vpop.permute.xlu0 %1797
    %v1799 = vsel %vm348, %v1796, %v1788
    %v1800 = vsel %vm348, %v1798, %v1787
    %1803 = vrot.lane.b32.xlu0 %v1799, 97
    %v1804 = vpop.permute.xlu0 %1803
    %1805 = vrot.lane.b32.xlu0 %v1800, 97
    %v1806 = vpop.permute.xlu0 %1805
    %v1809 = vsel %vm361, %v1804, 0.0
    %v1810 = vsel %vm362, %v1806, 0.0
    %v1811 = vstv %s1784
    %v1812 = vmul.f32 %v1811, %v1809
    %v1813 = vmul.f32 %v1811, %v1810
    %v1814 = vadd.f32 %v1782, %v1812
    %v1815 = vadd.f32 %v1783, %v1813
    %s1816 = sld [smem:[#allocation7 + $0x1]]
    %v1817 = vsel %vm107, %v1788, 0.0
    %v1818 = vsel %vm108, %v1787, 0.0
    %v1819 = vstv %s1816
    %v1820 = vmul.f32 %v1819, %v1817
    %v1821 = vmul.f32 %v1819, %v1818
    %v1822 = vadd.f32 %v1814, %v1820
    %v1823 = vadd.f32 %v1815, %v1821
    %s1824 = sld [smem:[#allocation7 + $0x2]]
    %1825 = vrot.lane.b32.xlu0 %v1799, 127
    %v1826 = vpop.permute.xlu0 %1825
    %1827 = vrot.lane.b32.xlu0 %v1800, 127
    %v1828 = vpop.permute.xlu0 %1827
    %v1831 = vsel %vm423, %v1826, 0.0
    %v1832 = vsel %vm424, %v1828, 0.0
    %v1833 = vstv %s1824
    %v1834 = vmul.f32 %v1833, %v1831
    %v1835 = vmul.f32 %v1833, %v1832
    %v1836 = vadd.f32 %v1822, %v1834
    %v1837 = vadd.f32 %v1823, %v1835
    %s1838 = sld [smem:[#allocation7 + $0x3]]
    %1839 = vrot.lane.b32.xlu0 %v1778, 32
    %v1840 = vpop.permute.xlu0 %1839
    %v1841 = vsel %vm348, %v1840, %v1778
    %1842 = vrot.lane.b32.xlu0 %v1779, 32
    %v1843 = vpop.permute.xlu0 %1842
    %v1844 = vsel %vm348, %v1843, %v1779
    %1845 = vrot.lane.b32.xlu0 %v1841, 32
    %v1846 = vpop.permute.xlu0 %1845
    %1847 = vrot.lane.b32.xlu0 %v1844, 32
    %v1848 = vpop.permute.xlu0 %1847
    %v1849 = vsel %vm348, %v1846, %v1778
    %v1850 = vsel %vm348, %v1848, %v1779
    %1853 = vrot.lane.b32.xlu0 %v1849, 97
    %v1854 = vpop.permute.xlu0 %1853
    %1855 = vrot.lane.b32.xlu0 %v1850, 97
    %v1856 = vpop.permute.xlu0 %1855
    %v1859 = vsel %vm114, %v1854, 0.0
    %v1860 = vsel %vm114, %v1856, 0.0
    %v1861 = vstv %s1838
    %v1862 = vmul.f32 %v1861, %v1859
    %v1863 = vmul.f32 %v1861, %v1860
    %v1864 = vadd.f32 %v1836, %v1862
    %v1865 = vadd.f32 %v1837, %v1863
    %s1866 = sld [smem:[#allocation7 + $0x5]]
    %1867 = vrot.lane.b32.xlu0 %v1849, 127
    %v1868 = vpop.permute.xlu0 %1867
    %1869 = vrot.lane.b32.xlu0 %v1850, 127
    %v1870 = vpop.permute.xlu0 %1869
    %v1873 = vsel %vm116, %v1868, 0.0
    %v1874 = vsel %vm116, %v1870, 0.0
    %v1875 = vstv %s1866
    %v1876 = vmul.f32 %v1875, %v1873
    %v1877 = vmul.f32 %v1875, %v1874
    %v1878 = vadd.f32 %v1864, %v1876
    %v1879 = vadd.f32 %v1865, %v1877
    %s1880 = sld [smem:[#allocation7 + $0x6]]
    %v1881 = vrot.slane %v1778, 1
    %v1882 = vrot.slane %v1779, 1
    %v1883 = vsel %vm561, %v1881, %v1882
    %v1884 = vsel %vm561, %v1882, %v1881
    %1885 = vrot.lane.b32.xlu0 %v1883, 32
    %v1886 = vpop.permute.xlu0 %1885
    %v1887 = vsel %vm348, %v1886, %v1883
    %1888 = vrot.lane.b32.xlu0 %v1884, 32
    %v1889 = vpop.permute.xlu0 %1888
    %v1890 = vsel %vm348, %v1889, %v1884
    %1891 = vrot.lane.b32.xlu0 %v1887, 32
    %v1892 = vpop.permute.xlu0 %1891
    %1893 = vrot.lane.b32.xlu0 %v1890, 32
    %v1894 = vpop.permute.xlu0 %1893
    %v1895 = vsel %vm348, %v1892, %v1883
    %v1896 = vsel %vm348, %v1894, %v1884
    %1899 = vrot.lane.b32.xlu0 %v1895, 97
    %v1900 = vpop.permute.xlu0 %1899
    %1901 = vrot.lane.b32.xlu0 %v1896, 97
    %v1902 = vpop.permute.xlu0 %1901
    %v1905 = vsel %vm576, %v1900, 0.0
    %v1906 = vsel %vm577, %v1902, 0.0
    %v1907 = vstv %s1880
    %v1908 = vmul.f32 %v1907, %v1905
    %v1909 = vmul.f32 %v1907, %v1906
    %v1910 = vadd.f32 %v1878, %v1908
    %v1911 = vadd.f32 %v1879, %v1909
    %s1912 = sld [smem:[#allocation7 + $0x7]]
    %v1913 = vsel %vm109, %v1883, 0.0
    %v1914 = vsel %vm110, %v1884, 0.0
    %v1915 = vstv %s1912
    %v1916 = vmul.f32 %v1915, %v1913
    %v1917 = vmul.f32 %v1915, %v1914
    %v1918 = vadd.f32 %v1910, %v1916
    %v1919 = vadd.f32 %v1911, %v1917
    %s1920 = sld [smem:[#allocation7 + $0x8]]
    %1921 = vrot.lane.b32.xlu0 %v1895, 127
    %v1922 = vpop.permute.xlu0 %1921
    %1923 = vrot.lane.b32.xlu0 %v1896, 127
    %v1924 = vpop.permute.xlu0 %1923
    %v1927 = vsel %vm638, %v1922, 0.0
    %v1928 = vsel %vm639, %v1924, 0.0
    %v1929 = vstv %s1920
    %v1930 = vmul.f32 %v1929, %v1927
    %v1931 = vmul.f32 %v1929, %v1928
    %v1932 = vadd.f32 %v1918, %v1930
    %v1933 = vadd.f32 %v1919, %v1931
    %v1934 = vxor.u32 %v1932, 2147483648
    %v1935 = vxor.u32 %v1933, 2147483648
    %v1936 = vmul.f32 %v1934, 1.442695
    %v1937 = vpow.pop %v1936
    %v1938 = vmul.f32 %v1935, 1.442695
    %v1939 = vpow.pop %v1938
    %v1940 = vadd.f32 %v1937, 1.0
    %v1941 = vadd.f32 %v1939, 1.0
    %v1942 = vrcp.pop %v1940
    %v1943 = vmul.f32 1.0, %v1942
    %v1944 = vrcp.pop %v1941
    %v1945 = vmul.f32 1.0, %v1944
    %s1946 = sld [smem:[#allocation9 + $0x4]]
    %v1947 = vstv %s1946
    %v1948 = vmul.f32 %v1947, %v149
    %v1949 = vmul.f32 %v1947, %v150
    %s1950 = sld [smem:[#allocation9]]
    %v1951 = vrot.slane %v149, 7
    %v1952 = vrot.slane %v150, 7
    %v1953 = vsel %vm345, %v1951, %v1952
    %v1954 = vsel %vm345, %v1952, %v1951
    %1955 = vrot.lane.b32.xlu0 %v1954, 32
    %v1956 = vpop.permute.xlu0 %1955
    %v1957 = vsel %vm348, %v1956, %v1954
    %1958 = vrot.lane.b32.xlu0 %v1953, 32
    %v1959 = vpop.permute.xlu0 %1958
    %v1960 = vsel %vm348, %v1959, %v1953
    %1961 = vrot.lane.b32.xlu0 %v1957, 32
    %v1962 = vpop.permute.xlu0 %1961
    %1963 = vrot.lane.b32.xlu0 %v1960, 32
    %v1964 = vpop.permute.xlu0 %1963
    %v1965 = vsel %vm348, %v1962, %v1954
    %v1966 = vsel %vm348, %v1964, %v1953
    %1969 = vrot.lane.b32.xlu0 %v1965, 97
    %v1970 = vpop.permute.xlu0 %1969
    %1971 = vrot.lane.b32.xlu0 %v1966, 97
    %v1972 = vpop.permute.xlu0 %1971
    %v1975 = vsel %vm361, %v1970, 0.0
    %v1976 = vsel %vm362, %v1972, 0.0
    %v1977 = vstv %s1950
    %v1978 = vmul.f32 %v1977, %v1975
    %v1979 = vmul.f32 %v1977, %v1976
    %v1980 = vadd.f32 %v1948, %v1978
    %v1981 = vadd.f32 %v1949, %v1979
    %s1982 = sld [smem:[#allocation9 + $0x1]]
    %v1983 = vsel %vm107, %v1954, 0.0
    %v1984 = vsel %vm108, %v1953, 0.0
    %v1985 = vstv %s1982
    %v1986 = vmul.f32 %v1985, %v1983
    %v1987 = vmul.f32 %v1985, %v1984
    %v1988 = vadd.f32 %v1980, %v1986
    %v1989 = vadd.f32 %v1981, %v1987
    %s1990 = sld [smem:[#allocation9 + $0x2]]
    %1991 = vrot.lane.b32.xlu0 %v1965, 127
    %v1992 = vpop.permute.xlu0 %1991
    %1993 = vrot.lane.b32.xlu0 %v1966, 127
    %v1994 = vpop.permute.xlu0 %1993
    %v1997 = vsel %vm423, %v1992, 0.0
    %v1998 = vsel %vm424, %v1994, 0.0
    %v1999 = vstv %s1990
    %v2000 = vmul.f32 %v1999, %v1997
    %v2001 = vmul.f32 %v1999, %v1998
    %v2002 = vadd.f32 %v1988, %v2000
    %v2003 = vadd.f32 %v1989, %v2001
    %s2004 = sld [smem:[#allocation9 + $0x3]]
    %2005 = vrot.lane.b32.xlu0 %v149, 32
    %v2006 = vpop.permute.xlu0 %2005
    %v2007 = vsel %vm348, %v2006, %v149
    %2008 = vrot.lane.b32.xlu0 %v150, 32
    %v2009 = vpop.permute.xlu0 %2008
    %v2010 = vsel %vm348, %v2009, %v150
    %2011 = vrot.lane.b32.xlu0 %v2007, 32
    %v2012 = vpop.permute.xlu0 %2011
    %2013 = vrot.lane.b32.xlu0 %v2010, 32
    %v2014 = vpop.permute.xlu0 %2013
    %v2015 = vsel %vm348, %v2012, %v149
    %v2016 = vsel %vm348, %v2014, %v150
    %2019 = vrot.lane.b32.xlu0 %v2015, 97
    %v2020 = vpop.permute.xlu0 %2019
    %2021 = vrot.lane.b32.xlu0 %v2016, 97
    %v2022 = vpop.permute.xlu0 %2021
    %v2025 = vsel %vm114, %v2020, 0.0
    %v2026 = vsel %vm114, %v2022, 0.0
    %v2027 = vstv %s2004
    %v2028 = vmul.f32 %v2027, %v2025
    %v2029 = vmul.f32 %v2027, %v2026
    %v2030 = vadd.f32 %v2002, %v2028
    %v2031 = vadd.f32 %v2003, %v2029
    %s2032 = sld [smem:[#allocation9 + $0x5]]
    %2033 = vrot.lane.b32.xlu0 %v2015, 127
    %v2034 = vpop.permute.xlu0 %2033
    %2035 = vrot.lane.b32.xlu0 %v2016, 127
    %v2036 = vpop.permute.xlu0 %2035
    %v2039 = vsel %vm116, %v2034, 0.0
    %v2040 = vsel %vm116, %v2036, 0.0
    %v2041 = vstv %s2032
    %v2042 = vmul.f32 %v2041, %v2039
    %v2043 = vmul.f32 %v2041, %v2040
    %v2044 = vadd.f32 %v2030, %v2042
    %v2045 = vadd.f32 %v2031, %v2043
    %s2046 = sld [smem:[#allocation9 + $0x6]]
    %v2047 = vrot.slane %v149, 1
    %v2048 = vrot.slane %v150, 1
    %v2049 = vsel %vm561, %v2047, %v2048
    %v2050 = vsel %vm561, %v2048, %v2047
    %2051 = vrot.lane.b32.xlu0 %v2049, 32
    %v2052 = vpop.permute.xlu0 %2051
    %v2053 = vsel %vm348, %v2052, %v2049
    %2054 = vrot.lane.b32.xlu0 %v2050, 32
    %v2055 = vpop.permute.xlu0 %2054
    %v2056 = vsel %vm348, %v2055, %v2050
    %2057 = vrot.lane.b32.xlu0 %v2053, 32
    %v2058 = vpop.permute.xlu0 %2057
    %2059 = vrot.lane.b32.xlu0 %v2056, 32
    %v2060 = vpop.permute.xlu0 %2059
    %v2061 = vsel %vm348, %v2058, %v2049
    %v2062 = vsel %vm348, %v2060, %v2050
    %2065 = vrot.lane.b32.xlu0 %v2061, 97
    %v2066 = vpop.permute.xlu0 %2065
    %2067 = vrot.lane.b32.xlu0 %v2062, 97
    %v2068 = vpop.permute.xlu0 %2067
    %v2071 = vsel %vm576, %v2066, 0.0
    %v2072 = vsel %vm577, %v2068, 0.0
    %v2073 = vstv %s2046
    %v2074 = vmul.f32 %v2073, %v2071
    %v2075 = vmul.f32 %v2073, %v2072
    %v2076 = vadd.f32 %v2044, %v2074
    %v2077 = vadd.f32 %v2045, %v2075
    %s2078 = sld [smem:[#allocation9 + $0x7]]
    %v2079 = vsel %vm109, %v2049, 0.0
    %v2080 = vsel %vm110, %v2050, 0.0
    %v2081 = vstv %s2078
    %v2082 = vmul.f32 %v2081, %v2079
    %v2083 = vmul.f32 %v2081, %v2080
    %v2084 = vadd.f32 %v2076, %v2082
    %v2085 = vadd.f32 %v2077, %v2083
    %s2086 = sld [smem:[#allocation9 + $0x8]]
    %2087 = vrot.lane.b32.xlu0 %v2061, 127
    %v2088 = vpop.permute.xlu0 %2087
    %2089 = vrot.lane.b32.xlu0 %v2062, 127
    %v2090 = vpop.permute.xlu0 %2089
    %v2093 = vsel %vm638, %v2088, 0.0
    %v2094 = vsel %vm639, %v2090, 0.0
    %v2095 = vstv %s2086
    %v2096 = vmul.f32 %v2095, %v2093
    %v2097 = vmul.f32 %v2095, %v2094
    %v2098 = vadd.f32 %v2084, %v2096
    %v2099 = vadd.f32 %v2085, %v2097
    %s2100 = sld [smem:[#allocation10 + $0x4]]
    %v2101 = vstv %s2100
    %v2102 = vmul.f32 %v2101, %v2098
    %v2103 = vmul.f32 %v2101, %v2099
    %s2104 = sld [smem:[#allocation10]]
    %v2105 = vrot.slane %v2098, 7
    %v2106 = vrot.slane %v2099, 7
    %v2107 = vsel %vm345, %v2105, %v2106
    %v2108 = vsel %vm345, %v2106, %v2105
    %2109 = vrot.lane.b32.xlu0 %v2108, 32
    %v2110 = vpop.permute.xlu0 %2109
    %v2111 = vsel %vm348, %v2110, %v2108
    %2112 = vrot.lane.b32.xlu0 %v2107, 32
    %v2113 = vpop.permute.xlu0 %2112
    %v2114 = vsel %vm348, %v2113, %v2107
    %2115 = vrot.lane.b32.xlu0 %v2111, 32
    %v2116 = vpop.permute.xlu0 %2115
    %2117 = vrot.lane.b32.xlu0 %v2114, 32
    %v2118 = vpop.permute.xlu0 %2117
    %v2119 = vsel %vm348, %v2116, %v2108
    %v2120 = vsel %vm348, %v2118, %v2107
    %2123 = vrot.lane.b32.xlu0 %v2119, 97
    %v2124 = vpop.permute.xlu0 %2123
    %2125 = vrot.lane.b32.xlu0 %v2120, 97
    %v2126 = vpop.permute.xlu0 %2125
    %v2129 = vsel %vm361, %v2124, 0.0
    %v2130 = vsel %vm362, %v2126, 0.0
    %v2131 = vstv %s2104
    %v2132 = vmul.f32 %v2131, %v2129
    %v2133 = vmul.f32 %v2131, %v2130
    %v2134 = vadd.f32 %v2102, %v2132
    %v2135 = vadd.f32 %v2103, %v2133
    %s2136 = sld [smem:[#allocation10 + $0x1]]
    %v2137 = vsel %vm107, %v2108, 0.0
    %v2138 = vsel %vm108, %v2107, 0.0
    %v2139 = vstv %s2136
    %v2140 = vmul.f32 %v2139, %v2137
    %v2141 = vmul.f32 %v2139, %v2138
    %v2142 = vadd.f32 %v2134, %v2140
    %v2143 = vadd.f32 %v2135, %v2141
    %s2144 = sld [smem:[#allocation10 + $0x2]]
    %2145 = vrot.lane.b32.xlu0 %v2119, 127
    %v2146 = vpop.permute.xlu0 %2145
    %2147 = vrot.lane.b32.xlu0 %v2120, 127
    %v2148 = vpop.permute.xlu0 %2147
    %v2151 = vsel %vm423, %v2146, 0.0
    %v2152 = vsel %vm424, %v2148, 0.0
    %v2153 = vstv %s2144
    %v2154 = vmul.f32 %v2153, %v2151
    %v2155 = vmul.f32 %v2153, %v2152
    %v2156 = vadd.f32 %v2142, %v2154
    %v2157 = vadd.f32 %v2143, %v2155
    %s2158 = sld [smem:[#allocation10 + $0x3]]
    %2159 = vrot.lane.b32.xlu0 %v2098, 32
    %v2160 = vpop.permute.xlu0 %2159
    %v2161 = vsel %vm348, %v2160, %v2098
    %2162 = vrot.lane.b32.xlu0 %v2099, 32
    %v2163 = vpop.permute.xlu0 %2162
    %v2164 = vsel %vm348, %v2163, %v2099
    %2165 = vrot.lane.b32.xlu0 %v2161, 32
    %v2166 = vpop.permute.xlu0 %2165
    %2167 = vrot.lane.b32.xlu0 %v2164, 32
    %v2168 = vpop.permute.xlu0 %2167
    %v2169 = vsel %vm348, %v2166, %v2098
    %v2170 = vsel %vm348, %v2168, %v2099
    %2173 = vrot.lane.b32.xlu0 %v2169, 97
    %v2174 = vpop.permute.xlu0 %2173
    %2175 = vrot.lane.b32.xlu0 %v2170, 97
    %v2176 = vpop.permute.xlu0 %2175
    %v2179 = vsel %vm114, %v2174, 0.0
    %v2180 = vsel %vm114, %v2176, 0.0
    %v2181 = vstv %s2158
    %v2182 = vmul.f32 %v2181, %v2179
    %v2183 = vmul.f32 %v2181, %v2180
    %v2184 = vadd.f32 %v2156, %v2182
    %v2185 = vadd.f32 %v2157, %v2183
    %s2186 = sld [smem:[#allocation10 + $0x5]]
    %2187 = vrot.lane.b32.xlu0 %v2169, 127
    %v2188 = vpop.permute.xlu0 %2187
    %2189 = vrot.lane.b32.xlu0 %v2170, 127
    %v2190 = vpop.permute.xlu0 %2189
    %v2193 = vsel %vm116, %v2188, 0.0
    %v2194 = vsel %vm116, %v2190, 0.0
    %v2195 = vstv %s2186
    %v2196 = vmul.f32 %v2195, %v2193
    %v2197 = vmul.f32 %v2195, %v2194
    %v2198 = vadd.f32 %v2184, %v2196
    %v2199 = vadd.f32 %v2185, %v2197
    %s2200 = sld [smem:[#allocation10 + $0x6]]
    %v2201 = vrot.slane %v2098, 1
    %v2202 = vrot.slane %v2099, 1
    %v2203 = vsel %vm561, %v2201, %v2202
    %v2204 = vsel %vm561, %v2202, %v2201
    %2205 = vrot.lane.b32.xlu0 %v2203, 32
    %v2206 = vpop.permute.xlu0 %2205
    %v2207 = vsel %vm348, %v2206, %v2203
    %2208 = vrot.lane.b32.xlu0 %v2204, 32
    %v2209 = vpop.permute.xlu0 %2208
    %v2210 = vsel %vm348, %v2209, %v2204
    %2211 = vrot.lane.b32.xlu0 %v2207, 32
    %v2212 = vpop.permute.xlu0 %2211
    %2213 = vrot.lane.b32.xlu0 %v2210, 32
    %v2214 = vpop.permute.xlu0 %2213
    %v2215 = vsel %vm348, %v2212, %v2203
    %v2216 = vsel %vm348, %v2214, %v2204
    %2219 = vrot.lane.b32.xlu0 %v2215, 97
    %v2220 = vpop.permute.xlu0 %2219
    %2221 = vrot.lane.b32.xlu0 %v2216, 97
    %v2222 = vpop.permute.xlu0 %2221
    %v2225 = vsel %vm576, %v2220, 0.0
    %v2226 = vsel %vm577, %v2222, 0.0
    %v2227 = vstv %s2200
    %v2228 = vmul.f32 %v2227, %v2225
    %v2229 = vmul.f32 %v2227, %v2226
    %v2230 = vadd.f32 %v2198, %v2228
    %v2231 = vadd.f32 %v2199, %v2229
    %s2232 = sld [smem:[#allocation10 + $0x7]]
    %v2233 = vsel %vm109, %v2203, 0.0
    %v2234 = vsel %vm110, %v2204, 0.0
    %v2235 = vstv %s2232
    %v2236 = vmul.f32 %v2235, %v2233
    %v2237 = vmul.f32 %v2235, %v2234
    %v2238 = vadd.f32 %v2230, %v2236
    %v2239 = vadd.f32 %v2231, %v2237
    %s2240 = sld [smem:[#allocation10 + $0x8]]
    %2241 = vrot.lane.b32.xlu0 %v2215, 127
    %v2242 = vpop.permute.xlu0 %2241
    %2243 = vrot.lane.b32.xlu0 %v2216, 127
    %v2244 = vpop.permute.xlu0 %2243
    %v2247 = vsel %vm638, %v2242, 0.0
    %v2248 = vsel %vm639, %v2244, 0.0
    %v2249 = vstv %s2240
    %v2250 = vmul.f32 %v2249, %v2247
    %v2251 = vmul.f32 %v2249, %v2248
    %v2252 = vadd.f32 %v2238, %v2250
    %v2253 = vadd.f32 %v2239, %v2251
    %v2254 = vxor.u32 %v2252, 2147483648
    %v2255 = vxor.u32 %v2253, 2147483648
    %v2256 = vmul.f32 %v2254, 1.442695
    %v2257 = vpow.pop %v2256
    %v2258 = vmul.f32 %v2255, 1.442695
    %v2259 = vpow.pop %v2258
    %v2260 = vadd.f32 %v2257, 1.0
    %v2261 = vadd.f32 %v2259, 1.0
    %v2262 = vrcp.pop %v2260
    %v2263 = vmul.f32 1.0, %v2262
    %v2264 = vrcp.pop %v2261
    %v2265 = vmul.f32 1.0, %v2264
    %v2266 = vmul.f32 %v1606, %v1943
    %v2267 = vmul.f32 %v1607, %v1945
    %v2268 = vadd.f32 %v2266, %v117
    %v2269 = vadd.f32 %v2267, %v118
    %vm2270 = vcmask 261120
    %2271 = vst.msk [vmem:[%s8] sm:$0xff] %vm2270, %v2268
    %2272 = vst.msk [vmem:[%s8 + $0x8] sm:$0xff] %vm2270, %v2269
    %v2273 = vmul.f32 %v1606, %v2263
    %v2274 = vmul.f32 %v1607, %v2265
    %v2275 = vld [vmem:[%s1] sm:$0xff]
    %v2276 = vld [vmem:[%s1 + $0x8] sm:$0xff]
    %v2277 = vadd.f32 %v2273, %v2275
    %v2278 = vadd.f32 %v2274, %v2276
    %2279 = vst.msk [vmem:[%s9] sm:$0xff] %vm2270, %v2277
    %2280 = vst.msk [vmem:[%s9 + $0x8] sm:$0xff] %vm2270, %v2278
    %v2281 = vmul.f32 %v1612, %v1943
    %v2282 = vmul.f32 %v1613, %v1945
    %v2283 = vld [vmem:[%s119] sm:$0xff]
    %v2284 = vld [vmem:[%s119 + $0x8] sm:$0xff]
    %v2285 = vadd.f32 %v2281, %v2283
    %v2286 = vadd.f32 %v2282, %v2284
    %s2287 = scalar_lea.vmem %s8, 16
    %2288 = vst.msk [vmem:[%s2287] sm:$0xff] %vm2270, %v2285
    %2289 = vst.msk [vmem:[%s2287 + $0x8] sm:$0xff] %vm2270, %v2286
    %v2290 = vmul.f32 %v1612, %v2263
    %v2291 = vmul.f32 %v1613, %v2265
    %v2292 = vld [vmem:[%s130] sm:$0xff]
    %v2293 = vld [vmem:[%s130 + $0x8] sm:$0xff]
    %v2294 = vadd.f32 %v2290, %v2292
    %v2295 = vadd.f32 %v2291, %v2293
    %s2296 = scalar_lea.vmem %s9, 16
    %2297 = vst.msk [vmem:[%s2296] sm:$0xff] %vm2270, %v2294
    %2298 = vst.msk [vmem:[%s2296 + $0x8] sm:$0xff] %vm2270, %v2295
    %v2299 = vmul.f32 %v1618, %v1943
    %v2300 = vmul.f32 %v1619, %v1945
    %v2301 = vld [vmem:[%s122] sm:$0xff]
    %v2302 = vld [vmem:[%s122 + $0x8] sm:$0xff]
    %v2303 = vadd.f32 %v2299, %v2301
    %v2304 = vadd.f32 %v2300, %v2302
    %s2305 = scalar_lea.vmem %s8, 32
    %2306 = vst.msk [vmem:[%s2305] sm:$0xff] %vm2270, %v2303
    %2307 = vst.msk [vmem:[%s2305 + $0x8] sm:$0xff] %vm2270, %v2304
    %v2308 = vmul.f32 %v1618, %v2263
    %v2309 = vmul.f32 %v1619, %v2265
    %v2310 = vld [vmem:[%s133] sm:$0xff]
    %v2311 = vld [vmem:[%s133 + $0x8] sm:$0xff]
    %v2312 = vadd.f32 %v2308, %v2310
    %v2313 = vadd.f32 %v2309, %v2311
    %s2314 = scalar_lea.vmem %s9, 32
    %2315 = vst.msk [vmem:[%s2314] sm:$0xff] %vm2270, %v2312
    %2316 = vst.msk [vmem:[%s2314 + $0x8] sm:$0xff] %vm2270, %v2313
    %v2317 = vmul.f32 %v1624, %v1943
    %v2318 = vmul.f32 %v1625, %v1945
    %v2319 = vld [vmem:[%s125] sm:$0xff]
    %v2320 = vld [vmem:[%s125 + $0x8] sm:$0xff]
    %v2321 = vadd.f32 %v2317, %v2319
    %v2322 = vadd.f32 %v2318, %v2320
    %s2323 = scalar_lea.vmem %s8, 48
    %2324 = vst.msk [vmem:[%s2323] sm:$0xff] %vm2270, %v2321
    %2325 = vst.msk [vmem:[%s2323 + $0x8] sm:$0xff] %vm2270, %v2322
    %v2326 = vmul.f32 %v1624, %v2263
    %v2327 = vmul.f32 %v1625, %v2265
    %v2328 = vld [vmem:[%s136] sm:$0xff]
    %v2329 = vld [vmem:[%s136 + $0x8] sm:$0xff]
    %v2330 = vadd.f32 %v2326, %v2328
    %v2331 = vadd.f32 %v2327, %v2329
    %s2332 = scalar_lea.vmem %s9, 48
    %2333 = vst.msk [vmem:[%s2332] sm:$0xff] %vm2270, %v2330
    %2334 = vst.msk [vmem:[%s2332 + $0x8] sm:$0xff] %vm2270, %v2331
    // Predicated region
    $region58: #{cmi_sa_pallas.1} parent=1 // pred_check
      _
    $region59: #{cmi_sa_pallas.1} parent=1 // pred_check_branch
      %2336 = sbr.rel (0) target = $region61
    $region60: #{cmi_sa_pallas.1} parent=1 // pred_region
      _
    $region61: #{cmi_sa_pallas.1} parent=1 // pred_fallthru
      _
    // Predicated region
    $region62: #{cmi_sa_pallas.1} parent=1 // pred_check
      _
    $region63: #{cmi_sa_pallas.1} parent=1 // pred_check_branch
      %2338 = sbr.rel (0) target = $region65
    $region64: #{cmi_sa_pallas.1} parent=1 // pred_region
      _
    $region65: #{cmi_sa_pallas.1} parent=1 // pred_fallthru
      _
    // Predicated region
    $region66: #{cmi_sa_pallas.1} parent=1 // pred_check
      _
    $region67: #{cmi_sa_pallas.1} parent=1 // pred_check_branch
      %2340 = sbr.rel (0) target = $region69
    $region68: #{cmi_sa_pallas.1} parent=1 // pred_region
      _
    $region69: #{cmi_sa_pallas.1} parent=1 // pred_fallthru
      _
    // Predicated region
    $region70: #{cmi_sa_pallas.1} parent=1 // pred_check
      _
    $region71: #{cmi_sa_pallas.1} parent=1 // pred_check_branch
      %2342 = sbr.rel (0) target = $region73
    $region72: #{cmi_sa_pallas.1} parent=1 // pred_region
      _
    $region73: #{cmi_sa_pallas.1} parent=1 // pred_fallthru
      _
    %2343 = vsyncpa [#allocation3], 1
    %2344 = vsyncpa [#allocation5], 1
    %2345 = vsyncpa [#allocation8], 1
    %2346 = vsyncpa [#allocation11], 1

</llo_original>
